<compile_context>
chip_gen: v7x
topology: tpu7x:2x2x1
jax: 0.10.0
libtpu: 0.0.40
codegen_flags: <defaults>
</compile_context>

<pallas_src>
import functools

import jax
import jax.numpy as jnp
from jax import lax
from jax.experimental import pallas as pl
from jax.experimental.pallas import tpu as pltpu


def _round_up(x, m):
    return ((x + m - 1) // m) * m


# ----------------------------------------------------------------------------
# scale_factor == 2.0: nearest x2 upsample fused with Conv2d(C, C, 3, padding=1)
# ----------------------------------------------------------------------------
def _upsample_conv_kernel(x_ref, w_ref, b_ref, m_ref, e_ref, o_ref,
                          xu_ref, pat_ref, *, H, W, C, G):
    Wu = 2 * W
    S = 4 * H * W                        # Hu * Wu

    xb = x_ref[0].astype(jnp.bfloat16)   # (C, H*W), channels on sublanes

    # Border-only zeroing: the guard bands provide the conv's zero padding and
    # absorb out-of-range row reads; the interior is written exactly once.
    xu_ref[:, :G] = jnp.zeros((C, G), jnp.bfloat16)
    xu_ref[:, G + S:] = jnp.zeros((C, G), jnp.bfloat16)

    # Nearest-x2 upsample straight into the guard-banded slab: one tiny one-hot
    # matmul per source row emits both duplicated output rows as one
    # contiguous (C, 2*Wu) lane-block store.
    ecol2 = e_ref[...]                   # (W, 2*Wu) duplication one-hot
    for i in range(H):
        row = xb[:, i * W:(i + 1) * W]                               # (C, W)
        rowd2 = jnp.dot(row, ecol2,
                        preferred_element_type=jnp.float32).astype(jnp.bfloat16)
        xu_ref[:, G + 2 * i * Wu: G + (2 * i + 2) * Wu] = rowd2      # (C, 2*Wu)

    # im2col: 9 lane-offset slices of the slab stacked on the sublane axis.
    mask_l = m_ref[0:1, :]               # column validity for dw = -1
    mask_r = m_ref[1:2, :]               # column validity for dw = +1
    for k in range(9):
        kh, kw = k // 3, k % 3
        shift = (kh - 1) * Wu + (kw - 1)
        tap = xu_ref[:, G + shift: G + shift + S]                    # (C, S)
        if kw == 0:
            tap = tap * mask_l
        elif kw == 2:
            tap = tap * mask_r
        pat_ref[k * C:(k + 1) * C, :] = tap                          # lane-dense

    acc = jnp.dot(w_ref[...], pat_ref[...],
                  preferred_element_type=jnp.float32)                # (C, S)
    o_ref[0] = (acc + b_ref[...]).astype(o_ref.dtype)


# ----------------------------------------------------------------------------
# scale_factor == 0.5: ZeroPad2d((0,1,0,1)) fused with Conv2d(C, C, 3, stride=2)
# ----------------------------------------------------------------------------
def _downsample_conv_kernel(x_ref, w_ref, b_ref, m_ref, sel_ref, o_ref,
                            xg_ref, pat_ref, *, H, W, C, G):
    HW = H * W

    # Guard-banded input slab (guard zeros also realise ZeroPad2d's pad row).
    xg_ref[:, :HW] = x_ref[0].astype(jnp.bfloat16)
    xg_ref[:, HW:] = jnp.zeros((C, G), jnp.bfloat16)

    mask1 = m_ref[0:1, :]                # column validity for kw = 1
    mask2 = m_ref[1:2, :]                # column validity for kw = 2
    for k in range(9):
        kh, kw = k // 3, k % 3
        shift = kh * W + kw
        tap = xg_ref[:, shift: shift + HW]                           # (C, HW)
        if kw == 1:
            tap = tap * mask1
        elif kw == 2:
            tap = tap * mask2
        pat_ref[k * C:(k + 1) * C, :] = tap

    # stride-1 conv over all positions, then one-hot selection of the stride-2
    # output grid (no strided gathers, no parity reshapes).
    full = jnp.dot(w_ref[...], pat_ref[...],
                   preferred_element_type=jnp.float32)               # (C, HW)
    out = jnp.dot(full.astype(jnp.bfloat16), sel_ref[...],
                  preferred_element_type=jnp.float32)                # (C, Ho*Wo)
    o_ref[0] = (out + b_ref[...]).astype(o_ref.dtype)


# ----------------------------------------------------------------------------
# wrapper: NCHW in / NCHW out, PyTorch OIHW conv weights
# ----------------------------------------------------------------------------
def _resample_conv(x, weight, bias, scale_factor):
    N, C, H, W = x.shape
    assert weight.shape == (C, C, 3, 3) and bias.shape == (C,)

    # im2col weight, already transposed for dot(wT, pat):
    #   wT[co, (kh*3+kw)*C + ci] = weight[co, ci, kh, kw]
    wT = jnp.transpose(weight, (0, 2, 3, 1)).reshape(C, 9 * C).astype(jnp.bfloat16)
    b2 = bias.reshape(C, 1).astype(jnp.float32)
    x_flat = x.reshape(N, C, H * W)      # metadata-only reshape

    if scale_factor == 2.0:
        Ho, Wo = 2 * H, 2 * W            # Wo == Wu (upsampled width)
        S = Ho * Wo
        G = _round_up(Wo + 1, 128)
        xcol = jnp.arange(S, dtype=jnp.int32) % Wo
        masks = jnp.stack([xcol >= 1, xcol <= Wo - 2]).astype(jnp.bfloat16)
        m = jnp.arange(2 * Wo, dtype=jnp.int32)
        ecol2 = (jnp.arange(W, dtype=jnp.int32)[:, None]
                 == ((m % Wo) // 2)[None, :]).astype(jnp.bfloat16)   # (W, 2*Wu)
        kernel = functools.partial(_upsample_conv_kernel, H=H, W=W, C=C, G=G)
        extra_inputs = (masks, ecol2)
        extra_specs = [pl.BlockSpec((2, S), lambda n: (0, 0)),
                       pl.BlockSpec((W, 2 * Wo), lambda n: (0, 0))]
        scratch = [pltpu.VMEM((C, G + S + G), jnp.bfloat16),
                   pltpu.VMEM((9 * C, S), jnp.bfloat16)]
        out_sp = S
        flops = 2 * N * S * 9 * C * C + 2 * N * H * C * W * 2 * Wo
    else:  # scale_factor == 0.5
        assert H % 2 == 0 and W % 2 == 0, "downsample branch expects even H, W"
        Ho, Wo = H // 2, W // 2
        HW = H * W
        G = _round_up(2 * W + 2, 128)
        j = jnp.arange(HW, dtype=jnp.int32) % W
        masks = jnp.stack([j <= W - 2, j <= W - 3]).astype(jnp.bfloat16)
        o = jnp.arange(Ho * Wo, dtype=jnp.int32)
        src = 2 * (o // Wo) * W + 2 * (o % Wo)
        sel = (jnp.arange(HW, dtype=jnp.int32)[:, None]
               == src[None, :]).astype(jnp.bfloat16)                 # (HW, Ho*Wo)
        kernel = functools.partial(_downsample_conv_kernel, H=H, W=W, C=C, G=G)
        extra_inputs = (masks, sel)
        extra_specs = [pl.BlockSpec((2, HW), lambda n: (0, 0)),
                       pl.BlockSpec((HW, Ho * Wo), lambda n: (0, 0))]
        scratch = [pltpu.VMEM((C, HW + G), jnp.bfloat16),
                   pltpu.VMEM((9 * C, HW), jnp.bfloat16)]
        out_sp = Ho * Wo
        flops = 2 * N * HW * 9 * C * C + 2 * N * C * HW * Ho * Wo

    bytes_accessed = 4 * N * C * (H * W + out_sp) + 2 * 9 * C * C + 4 * C

    out = pl.pallas_call(
        kernel,
        out_shape=jax.ShapeDtypeStruct((N, C, out_sp), x.dtype),
        grid=(N,),
        in_specs=[
            pl.BlockSpec((1, C, H * W), lambda n: (n, 0, 0)),   # lane-dense load
            pl.BlockSpec((C, 9 * C), lambda n: (0, 0)),
            pl.BlockSpec((C, 1), lambda n: (0, 0)),
            *extra_specs,
        ],
        out_specs=pl.BlockSpec((1, C, out_sp), lambda n: (n, 0, 0)),
        scratch_shapes=scratch,
        compiler_params=pltpu.CompilerParams(
            dimension_semantics=("parallel",),
            vmem_limit_bytes=32 * 1024 * 1024),
        cost_estimate=pl.CostEstimate(flops=int(flops), transcendentals=0,
                                      bytes_accessed=int(bytes_accessed)),
    )(x_flat, wT, b2, *extra_inputs)
    return out.reshape(N, C, Ho, Wo)     # metadata-only reshape


def resample_forward(x, weight=None, bias=None, *, scale_factor):
    """Forward pass of the PyTorch `Resample` module (NCHW in / NCHW out)."""
    if scale_factor == 2.0 or scale_factor == 0.5:
        return _resample_conv(x, weight, bias, scale_factor)
    return x                              # nn.Identity()


# ----------------------------------------------------------------------------
# pure-JAX reference (for correctness check)
# ----------------------------------------------------------------------------
def _ref_resample(x, weight, bias, scale_factor):
    if scale_factor == 2.0:
        u = jnp.repeat(jnp.repeat(x, 2, axis=2), 2, axis=3)
        y = lax.conv_general_dilated(u, weight, (1, 1), [(1, 1), (1, 1)],
                                     dimension_numbers=("NCHW", "OIHW", "NCHW"))
        return y + bias.reshape(1, -1, 1, 1)
    if scale_factor == 0.5:
        xz = jnp.pad(x, ((0, 0), (0, 0), (0, 1), (0, 1)))
        y = lax.conv_general_dilated(xz, weight, (2, 2), [(0, 0), (0, 0)],
                                     dimension_numbers=("NCHW", "OIHW", "NCHW"))
        return y + bias.reshape(1, -1, 1, 1)
    return x


if __name__ == "__main__":
    N, C, H, W = 2, 32, 16, 16

    key = jax.random.PRNGKey(0)
    k1, k2, k3, k4, k5 = jax.random.split(key, 5)
    x = jax.random.normal(k1, (N, C, H, W), jnp.float32)
    w_up = 0.05 * jax.random.normal(k2, (C, C, 3, 3), jnp.float32)
    b_up = 0.05 * jax.random.normal(k3, (C,), jnp.float32)
    w_dn = 0.05 * jax.random.normal(k4, (C, C, 3, 3), jnp.float32)
    b_dn = 0.05 * jax.random.normal(k5, (C,), jnp.float32)

    out_up = resample_forward(x, w_up, b_up, scale_factor=2.0)
    out_dn = resample_forward(x, w_dn, b_dn, scale_factor=0.5)
    out_id = resample_forward(x, scale_factor=1.0)
    jax.block_until_ready((out_up, out_dn, out_id))

    assert out_up.shape == (N, C, 2 * H, 2 * W), out_up.shape
    assert out_dn.shape == (N, C, H // 2, W // 2), out_dn.shape
    assert out_id.shape == x.shape

    ref_up = _ref_resample(x, w_up, b_up, 2.0)
    ref_dn = _ref_resample(x, w_dn, b_dn, 0.5)
    err_up = float(jnp.max(jnp.abs(out_up - ref_up)))
    err_dn = float(jnp.max(jnp.abs(out_dn - ref_dn)))
    err_id = float(jnp.max(jnp.abs(out_id - x)))
    # bf16 MXU operands with f32 accumulation -> ~1e-2-scale rounding on O(1)
    # outputs; tolerance chosen accordingly (f32 path would pass at ~1e-5).
    assert err_up < 3e-2, err_up
    assert err_dn < 3e-2, err_dn
    assert err_id == 0.0, err_id

    print("KERNEL_OK")
</pallas_src>

<mosaic_0001>
module attributes {stable_mosaic.version = 11 : i64} {
  func.func @_upsample_conv_kernel(%arg0: i32, %arg1: memref<1x32x256xf32, #tpu.memory_space<vmem>>, %arg2: memref<32x288xbf16, #tpu.memory_space<vmem>>, %arg3: memref<32x1xf32, #tpu.memory_space<vmem>>, %arg4: memref<2x1024xbf16, #tpu.memory_space<vmem>>, %arg5: memref<16x64xbf16, #tpu.memory_space<vmem>>, %arg6: memref<1x32x1024xf32, #tpu.memory_space<vmem>>, %arg7: memref<32x1280xbf16, #tpu.memory_space<vmem>>, %arg8: memref<288x1024xbf16, #tpu.memory_space<vmem>>) attributes {dimension_semantics = [#tpu.dimension_semantics<parallel>], iteration_bounds = array<i64: 2>, scalar_prefetch = 0 : i64, scratch_operands = 2 : i64, tpu.core_type = #tpu.core_type<tc>, window_params = [{transform_indices = @transform_0, window_bounds = array<i64: 1, 32, 256>}, {pipeline_mode = #tpu.pipeline_mode<synchronous>, transform_indices = @transform_1, window_bounds = array<i64: 32, 288>}, {pipeline_mode = #tpu.pipeline_mode<synchronous>, transform_indices = @transform_2, window_bounds = array<i64: 32, 1>}, {pipeline_mode = #tpu.pipeline_mode<synchronous>, transform_indices = @transform_3, window_bounds = array<i64: 2, 1024>}, {pipeline_mode = #tpu.pipeline_mode<synchronous>, transform_indices = @transform_4, window_bounds = array<i64: 16, 64>}, {transform_indices = @transform_5, window_bounds = array<i64: 1, 32, 1024>}]} {
    %c0 = arith.constant 0 : index
    %c0_0 = arith.constant 0 : index
    %c0_1 = arith.constant 0 : index
    %0 = vector.load %arg1[%c0, %c0_0, %c0_1] : memref<1x32x256xf32, #tpu.memory_space<vmem>>, vector<1x32x256xf32>
    %1 = vector.shape_cast %0 : vector<1x32x256xf32> to vector<32x256xf32>
    %2 = arith.truncf %1 : vector<32x256xf32> to vector<32x256xbf16>
    %cst = arith.constant 0.000000e+00 : bf16
    %3 = vector.broadcast %cst : bf16 to vector<32x128xbf16>
    %c0_2 = arith.constant 0 : index
    %c0_3 = arith.constant 0 : index
    %4 = vector.load %arg7[%c0_2, %c0_3] : memref<32x1280xbf16, #tpu.memory_space<vmem>>, vector<32x128xbf16>
    tpu.vector_store %arg7[%c0_2, %c0_3], %3 {strides = array<i32>} : memref<32x1280xbf16, #tpu.memory_space<vmem>>, vector<32x128xbf16>,
    %cst_4 = arith.constant 0.000000e+00 : bf16
    %5 = vector.broadcast %cst_4 : bf16 to vector<32x128xbf16>
    %c0_5 = arith.constant 0 : index
    %c1152 = arith.constant 1152 : index
    %6 = vector.load %arg7[%c0_5, %c1152] : memref<32x1280xbf16, #tpu.memory_space<vmem>>, vector<32x128xbf16>
    tpu.vector_store %arg7[%c0_5, %c1152], %5 {strides = array<i32>} : memref<32x1280xbf16, #tpu.memory_space<vmem>>, vector<32x128xbf16>,
    %c0_6 = arith.constant 0 : index
    %c0_7 = arith.constant 0 : index
    %7 = vector.load %arg5[%c0_6, %c0_7] : memref<16x64xbf16, #tpu.memory_space<vmem>>, vector<16x64xbf16>
    %8 = vector.extract_strided_slice %2 {offsets = [0, 0], sizes = [32, 16], strides = [1, 1]} : vector<32x256xbf16> to vector<32x16xbf16>
    %cst_8 = arith.constant dense<0.000000e+00> : vector<32x64xf32>
    %9 = tpu.matmul %8, %7, %cst_8 {dimension_numbers = #tpu.dot_dimension_numbers<[1], [0], [0], [1], [0, 0, 1, 1], [], []>} : vector<32x16xbf16>, vector<16x64xbf16>, vector<32x64xf32> -> vector<32x64xf32>
    %10 = arith.truncf %9 : vector<32x64xf32> to vector<32x64xbf16>
    %c0_9 = arith.constant 0 : index
    %c128 = arith.constant 128 : index
    %11 = vector.load %arg7[%c0_9, %c128] : memref<32x1280xbf16, #tpu.memory_space<vmem>>, vector<32x64xbf16>
    tpu.vector_store %arg7[%c0_9, %c128], %10 {strides = array<i32>} : memref<32x1280xbf16, #tpu.memory_space<vmem>>, vector<32x64xbf16>,
    %12 = vector.extract_strided_slice %2 {offsets = [0, 16], sizes = [32, 16], strides = [1, 1]} : vector<32x256xbf16> to vector<32x16xbf16>
    %cst_10 = arith.constant dense<0.000000e+00> : vector<32x64xf32>
    %13 = tpu.matmul %12, %7, %cst_10 {dimension_numbers = #tpu.dot_dimension_numbers<[1], [0], [0], [1], [0, 0, 1, 1], [], []>} : vector<32x16xbf16>, vector<16x64xbf16>, vector<32x64xf32> -> vector<32x64xf32>
    %14 = arith.truncf %13 : vector<32x64xf32> to vector<32x64xbf16>
    %c0_11 = arith.constant 0 : index
    %c192 = arith.constant 192 : index
    %15 = vector.load %arg7[%c0_11, %c192] : memref<32x1280xbf16, #tpu.memory_space<vmem>>, vector<32x64xbf16>
    tpu.vector_store %arg7[%c0_11, %c192], %14 {strides = array<i32>} : memref<32x1280xbf16, #tpu.memory_space<vmem>>, vector<32x64xbf16>,
    %16 = vector.extract_strided_slice %2 {offsets = [0, 32], sizes = [32, 16], strides = [1, 1]} : vector<32x256xbf16> to vector<32x16xbf16>
    %cst_12 = arith.constant dense<0.000000e+00> : vector<32x64xf32>
    %17 = tpu.matmul %16, %7, %cst_12 {dimension_numbers = #tpu.dot_dimension_numbers<[1], [0], [0], [1], [0, 0, 1, 1], [], []>} : vector<32x16xbf16>, vector<16x64xbf16>, vector<32x64xf32> -> vector<32x64xf32>
    %18 = arith.truncf %17 : vector<32x64xf32> to vector<32x64xbf16>
    %c0_13 = arith.constant 0 : index
    %c256 = arith.constant 256 : index
    %19 = vector.load %arg7[%c0_13, %c256] : memref<32x1280xbf16, #tpu.memory_space<vmem>>, vector<32x64xbf16>
    tpu.vector_store %arg7[%c0_13, %c256], %18 {strides = array<i32>} : memref<32x1280xbf16, #tpu.memory_space<vmem>>, vector<32x64xbf16>,
    %20 = vector.extract_strided_slice %2 {offsets = [0, 48], sizes = [32, 16], strides = [1, 1]} : vector<32x256xbf16> to vector<32x16xbf16>
    %cst_14 = arith.constant dense<0.000000e+00> : vector<32x64xf32>
    %21 = tpu.matmul %20, %7, %cst_14 {dimension_numbers = #tpu.dot_dimension_numbers<[1], [0], [0], [1], [0, 0, 1, 1], [], []>} : vector<32x16xbf16>, vector<16x64xbf16>, vector<32x64xf32> -> vector<32x64xf32>
    %22 = arith.truncf %21 : vector<32x64xf32> to vector<32x64xbf16>
    %c0_15 = arith.constant 0 : index
    %c320 = arith.constant 320 : index
    %23 = vector.load %arg7[%c0_15, %c320] : memref<32x1280xbf16, #tpu.memory_space<vmem>>, vector<32x64xbf16>
    tpu.vector_store %arg7[%c0_15, %c320], %22 {strides = array<i32>} : memref<32x1280xbf16, #tpu.memory_space<vmem>>, vector<32x64xbf16>,
    %24 = vector.extract_strided_slice %2 {offsets = [0, 64], sizes = [32, 16], strides = [1, 1]} : vector<32x256xbf16> to vector<32x16xbf16>
    %cst_16 = arith.constant dense<0.000000e+00> : vector<32x64xf32>
    %25 = tpu.matmul %24, %7, %cst_16 {dimension_numbers = #tpu.dot_dimension_numbers<[1], [0], [0], [1], [0, 0, 1, 1], [], []>} : vector<32x16xbf16>, vector<16x64xbf16>, vector<32x64xf32> -> vector<32x64xf32>
    %26 = arith.truncf %25 : vector<32x64xf32> to vector<32x64xbf16>
    %c0_17 = arith.constant 0 : index
    %c384 = arith.constant 384 : index
    %27 = vector.load %arg7[%c0_17, %c384] : memref<32x1280xbf16, #tpu.memory_space<vmem>>, vector<32x64xbf16>
    tpu.vector_store %arg7[%c0_17, %c384], %26 {strides = array<i32>} : memref<32x1280xbf16, #tpu.memory_space<vmem>>, vector<32x64xbf16>,
    %28 = vector.extract_strided_slice %2 {offsets = [0, 80], sizes = [32, 16], strides = [1, 1]} : vector<32x256xbf16> to vector<32x16xbf16>
    %cst_18 = arith.constant dense<0.000000e+00> : vector<32x64xf32>
    %29 = tpu.matmul %28, %7, %cst_18 {dimension_numbers = #tpu.dot_dimension_numbers<[1], [0], [0], [1], [0, 0, 1, 1], [], []>} : vector<32x16xbf16>, vector<16x64xbf16>, vector<32x64xf32> -> vector<32x64xf32>
    %30 = arith.truncf %29 : vector<32x64xf32> to vector<32x64xbf16>
    %c0_19 = arith.constant 0 : index
    %c448 = arith.constant 448 : index
    %31 = vector.load %arg7[%c0_19, %c448] : memref<32x1280xbf16, #tpu.memory_space<vmem>>, vector<32x64xbf16>
    tpu.vector_store %arg7[%c0_19, %c448], %30 {strides = array<i32>} : memref<32x1280xbf16, #tpu.memory_space<vmem>>, vector<32x64xbf16>,
    %32 = vector.extract_strided_slice %2 {offsets = [0, 96], sizes = [32, 16], strides = [1, 1]} : vector<32x256xbf16> to vector<32x16xbf16>
    %cst_20 = arith.constant dense<0.000000e+00> : vector<32x64xf32>
    %33 = tpu.matmul %32, %7, %cst_20 {dimension_numbers = #tpu.dot_dimension_numbers<[1], [0], [0], [1], [0, 0, 1, 1], [], []>} : vector<32x16xbf16>, vector<16x64xbf16>, vector<32x64xf32> -> vector<32x64xf32>
    %34 = arith.truncf %33 : vector<32x64xf32> to vector<32x64xbf16>
    %c0_21 = arith.constant 0 : index
    %c512 = arith.constant 512 : index
    %35 = vector.load %arg7[%c0_21, %c512] : memref<32x1280xbf16, #tpu.memory_space<vmem>>, vector<32x64xbf16>
    tpu.vector_store %arg7[%c0_21, %c512], %34 {strides = array<i32>} : memref<32x1280xbf16, #tpu.memory_space<vmem>>, vector<32x64xbf16>,
    %36 = vector.extract_strided_slice %2 {offsets = [0, 112], sizes = [32, 16], strides = [1, 1]} : vector<32x256xbf16> to vector<32x16xbf16>
    %cst_22 = arith.constant dense<0.000000e+00> : vector<32x64xf32>
    %37 = tpu.matmul %36, %7, %cst_22 {dimension_numbers = #tpu.dot_dimension_numbers<[1], [0], [0], [1], [0, 0, 1, 1], [], []>} : vector<32x16xbf16>, vector<16x64xbf16>, vector<32x64xf32> -> vector<32x64xf32>
    %38 = arith.truncf %37 : vector<32x64xf32> to vector<32x64xbf16>
    %c0_23 = arith.constant 0 : index
    %c576 = arith.constant 576 : index
    %39 = vector.load %arg7[%c0_23, %c576] : memref<32x1280xbf16, #tpu.memory_space<vmem>>, vector<32x64xbf16>
    tpu.vector_store %arg7[%c0_23, %c576], %38 {strides = array<i32>} : memref<32x1280xbf16, #tpu.memory_space<vmem>>, vector<32x64xbf16>,
    %40 = vector.extract_strided_slice %2 {offsets = [0, 128], sizes = [32, 16], strides = [1, 1]} : vector<32x256xbf16> to vector<32x16xbf16>
    %cst_24 = arith.constant dense<0.000000e+00> : vector<32x64xf32>
    %41 = tpu.matmul %40, %7, %cst_24 {dimension_numbers = #tpu.dot_dimension_numbers<[1], [0], [0], [1], [0, 0, 1, 1], [], []>} : vector<32x16xbf16>, vector<16x64xbf16>, vector<32x64xf32> -> vector<32x64xf32>
    %42 = arith.truncf %41 : vector<32x64xf32> to vector<32x64xbf16>
    %c0_25 = arith.constant 0 : index
    %c640 = arith.constant 640 : index
    %43 = vector.load %arg7[%c0_25, %c640] : memref<32x1280xbf16, #tpu.memory_space<vmem>>, vector<32x64xbf16>
    tpu.vector_store %arg7[%c0_25, %c640], %42 {strides = array<i32>} : memref<32x1280xbf16, #tpu.memory_space<vmem>>, vector<32x64xbf16>,
    %44 = vector.extract_strided_slice %2 {offsets = [0, 144], sizes = [32, 16], strides = [1, 1]} : vector<32x256xbf16> to vector<32x16xbf16>
    %cst_26 = arith.constant dense<0.000000e+00> : vector<32x64xf32>
    %45 = tpu.matmul %44, %7, %cst_26 {dimension_numbers = #tpu.dot_dimension_numbers<[1], [0], [0], [1], [0, 0, 1, 1], [], []>} : vector<32x16xbf16>, vector<16x64xbf16>, vector<32x64xf32> -> vector<32x64xf32>
    %46 = arith.truncf %45 : vector<32x64xf32> to vector<32x64xbf16>
    %c0_27 = arith.constant 0 : index
    %c704 = arith.constant 704 : index
    %47 = vector.load %arg7[%c0_27, %c704] : memref<32x1280xbf16, #tpu.memory_space<vmem>>, vector<32x64xbf16>
    tpu.vector_store %arg7[%c0_27, %c704], %46 {strides = array<i32>} : memref<32x1280xbf16, #tpu.memory_space<vmem>>, vector<32x64xbf16>,
    %48 = vector.extract_strided_slice %2 {offsets = [0, 160], sizes = [32, 16], strides = [1, 1]} : vector<32x256xbf16> to vector<32x16xbf16>
    %cst_28 = arith.constant dense<0.000000e+00> : vector<32x64xf32>
    %49 = tpu.matmul %48, %7, %cst_28 {dimension_numbers = #tpu.dot_dimension_numbers<[1], [0], [0], [1], [0, 0, 1, 1], [], []>} : vector<32x16xbf16>, vector<16x64xbf16>, vector<32x64xf32> -> vector<32x64xf32>
    %50 = arith.truncf %49 : vector<32x64xf32> to vector<32x64xbf16>
    %c0_29 = arith.constant 0 : index
    %c768 = arith.constant 768 : index
    %51 = vector.load %arg7[%c0_29, %c768] : memref<32x1280xbf16, #tpu.memory_space<vmem>>, vector<32x64xbf16>
    tpu.vector_store %arg7[%c0_29, %c768], %50 {strides = array<i32>} : memref<32x1280xbf16, #tpu.memory_space<vmem>>, vector<32x64xbf16>,
    %52 = vector.extract_strided_slice %2 {offsets = [0, 176], sizes = [32, 16], strides = [1, 1]} : vector<32x256xbf16> to vector<32x16xbf16>
    %cst_30 = arith.constant dense<0.000000e+00> : vector<32x64xf32>
    %53 = tpu.matmul %52, %7, %cst_30 {dimension_numbers = #tpu.dot_dimension_numbers<[1], [0], [0], [1], [0, 0, 1, 1], [], []>} : vector<32x16xbf16>, vector<16x64xbf16>, vector<32x64xf32> -> vector<32x64xf32>
    %54 = arith.truncf %53 : vector<32x64xf32> to vector<32x64xbf16>
    %c0_31 = arith.constant 0 : index
    %c832 = arith.constant 832 : index
    %55 = vector.load %arg7[%c0_31, %c832] : memref<32x1280xbf16, #tpu.memory_space<vmem>>, vector<32x64xbf16>
    tpu.vector_store %arg7[%c0_31, %c832], %54 {strides = array<i32>} : memref<32x1280xbf16, #tpu.memory_space<vmem>>, vector<32x64xbf16>,
    %56 = vector.extract_strided_slice %2 {offsets = [0, 192], sizes = [32, 16], strides = [1, 1]} : vector<32x256xbf16> to vector<32x16xbf16>
    %cst_32 = arith.constant dense<0.000000e+00> : vector<32x64xf32>
    %57 = tpu.matmul %56, %7, %cst_32 {dimension_numbers = #tpu.dot_dimension_numbers<[1], [0], [0], [1], [0, 0, 1, 1], [], []>} : vector<32x16xbf16>, vector<16x64xbf16>, vector<32x64xf32> -> vector<32x64xf32>
    %58 = arith.truncf %57 : vector<32x64xf32> to vector<32x64xbf16>
    %c0_33 = arith.constant 0 : index
    %c896 = arith.constant 896 : index
    %59 = vector.load %arg7[%c0_33, %c896] : memref<32x1280xbf16, #tpu.memory_space<vmem>>, vector<32x64xbf16>
    tpu.vector_store %arg7[%c0_33, %c896], %58 {strides = array<i32>} : memref<32x1280xbf16, #tpu.memory_space<vmem>>, vector<32x64xbf16>,
    %60 = vector.extract_strided_slice %2 {offsets = [0, 208], sizes = [32, 16], strides = [1, 1]} : vector<32x256xbf16> to vector<32x16xbf16>
    %cst_34 = arith.constant dense<0.000000e+00> : vector<32x64xf32>
    %61 = tpu.matmul %60, %7, %cst_34 {dimension_numbers = #tpu.dot_dimension_numbers<[1], [0], [0], [1], [0, 0, 1, 1], [], []>} : vector<32x16xbf16>, vector<16x64xbf16>, vector<32x64xf32> -> vector<32x64xf32>
    %62 = arith.truncf %61 : vector<32x64xf32> to vector<32x64xbf16>
    %c0_35 = arith.constant 0 : index
    %c960 = arith.constant 960 : index
    %63 = vector.load %arg7[%c0_35, %c960] : memref<32x1280xbf16, #tpu.memory_space<vmem>>, vector<32x64xbf16>
    tpu.vector_store %arg7[%c0_35, %c960], %62 {strides = array<i32>} : memref<32x1280xbf16, #tpu.memory_space<vmem>>, vector<32x64xbf16>,
    %64 = vector.extract_strided_slice %2 {offsets = [0, 224], sizes = [32, 16], strides = [1, 1]} : vector<32x256xbf16> to vector<32x16xbf16>
    %cst_36 = arith.constant dense<0.000000e+00> : vector<32x64xf32>
    %65 = tpu.matmul %64, %7, %cst_36 {dimension_numbers = #tpu.dot_dimension_numbers<[1], [0], [0], [1], [0, 0, 1, 1], [], []>} : vector<32x16xbf16>, vector<16x64xbf16>, vector<32x64xf32> -> vector<32x64xf32>
    %66 = arith.truncf %65 : vector<32x64xf32> to vector<32x64xbf16>
    %c0_37 = arith.constant 0 : index
    %c1024 = arith.constant 1024 : index
    %67 = vector.load %arg7[%c0_37, %c1024] : memref<32x1280xbf16, #tpu.memory_space<vmem>>, vector<32x64xbf16>
    tpu.vector_store %arg7[%c0_37, %c1024], %66 {strides = array<i32>} : memref<32x1280xbf16, #tpu.memory_space<vmem>>, vector<32x64xbf16>,
    %68 = vector.extract_strided_slice %2 {offsets = [0, 240], sizes = [32, 16], strides = [1, 1]} : vector<32x256xbf16> to vector<32x16xbf16>
    %cst_38 = arith.constant dense<0.000000e+00> : vector<32x64xf32>
    %69 = tpu.matmul %68, %7, %cst_38 {dimension_numbers = #tpu.dot_dimension_numbers<[1], [0], [0], [1], [0, 0, 1, 1], [], []>} : vector<32x16xbf16>, vector<16x64xbf16>, vector<32x64xf32> -> vector<32x64xf32>
    %70 = arith.truncf %69 : vector<32x64xf32> to vector<32x64xbf16>
    %c0_39 = arith.constant 0 : index
    %c1088 = arith.constant 1088 : index
    %71 = vector.load %arg7[%c0_39, %c1088] : memref<32x1280xbf16, #tpu.memory_space<vmem>>, vector<32x64xbf16>
    tpu.vector_store %arg7[%c0_39, %c1088], %70 {strides = array<i32>} : memref<32x1280xbf16, #tpu.memory_space<vmem>>, vector<32x64xbf16>,
    %c0_40 = arith.constant 0 : index
    %c0_41 = arith.constant 0 : index
    %72 = vector.load %arg4[%c0_40, %c0_41] : memref<2x1024xbf16, #tpu.memory_space<vmem>>, vector<1x1024xbf16>
    %c1 = arith.constant 1 : index
    %c0_42 = arith.constant 0 : index
    %73 = vector.load %arg4[%c1, %c0_42] : memref<2x1024xbf16, #tpu.memory_space<vmem>>, vector<1x1024xbf16>
    %c0_43 = arith.constant 0 : index
    %c95 = arith.constant 95 : index
    %74 = vector.load %arg7[%c0_43, %c95] : memref<32x1280xbf16, #tpu.memory_space<vmem>>, vector<32x1024xbf16>
    %75 = vector.broadcast %72 : vector<1x1024xbf16> to vector<32x1024xbf16>
    %76 = arith.mulf %74, %75 : vector<32x1024xbf16>
    %c0_44 = arith.constant 0 : index
    %c0_45 = arith.constant 0 : index
    %77 = vector.load %arg8[%c0_44, %c0_45] : memref<288x1024xbf16, #tpu.memory_space<vmem>>, vector<32x1024xbf16>
    tpu.vector_store %arg8[%c0_44, %c0_45], %76 {strides = array<i32>} : memref<288x1024xbf16, #tpu.memory_space<vmem>>, vector<32x1024xbf16>,
    %c0_46 = arith.constant 0 : index
    %c96 = arith.constant 96 : index
    %78 = vector.load %arg7[%c0_46, %c96] : memref<32x1280xbf16, #tpu.memory_space<vmem>>, vector<32x1024xbf16>
    %c32 = arith.constant 32 : index
    %c0_47 = arith.constant 0 : index
    %79 = vector.load %arg8[%c32, %c0_47] : memref<288x1024xbf16, #tpu.memory_space<vmem>>, vector<32x1024xbf16>
    tpu.vector_store %arg8[%c32, %c0_47], %78 {strides = array<i32>} : memref<288x1024xbf16, #tpu.memory_space<vmem>>, vector<32x1024xbf16>,
    %c0_48 = arith.constant 0 : index
    %c97 = arith.constant 97 : index
    %80 = vector.load %arg7[%c0_48, %c97] : memref<32x1280xbf16, #tpu.memory_space<vmem>>, vector<32x1024xbf16>
    %81 = vector.broadcast %73 : vector<1x1024xbf16> to vector<32x1024xbf16>
    %82 = arith.mulf %80, %81 : vector<32x1024xbf16>
    %c64 = arith.constant 64 : index
    %c0_49 = arith.constant 0 : index
    %83 = vector.load %arg8[%c64, %c0_49] : memref<288x1024xbf16, #tpu.memory_space<vmem>>, vector<32x1024xbf16>
    tpu.vector_store %arg8[%c64, %c0_49], %82 {strides = array<i32>} : memref<288x1024xbf16, #tpu.memory_space<vmem>>, vector<32x1024xbf16>,
    %c0_50 = arith.constant 0 : index
    %c127 = arith.constant 127 : index
    %84 = vector.load %arg7[%c0_50, %c127] : memref<32x1280xbf16, #tpu.memory_space<vmem>>, vector<32x1024xbf16>
    %85 = vector.broadcast %72 : vector<1x1024xbf16> to vector<32x1024xbf16>
    %86 = arith.mulf %84, %85 : vector<32x1024xbf16>
    %c96_51 = arith.constant 96 : index
    %c0_52 = arith.constant 0 : index
    %87 = vector.load %arg8[%c96_51, %c0_52] : memref<288x1024xbf16, #tpu.memory_space<vmem>>, vector<32x1024xbf16>
    tpu.vector_store %arg8[%c96_51, %c0_52], %86 {strides = array<i32>} : memref<288x1024xbf16, #tpu.memory_space<vmem>>, vector<32x1024xbf16>,
    %c0_53 = arith.constant 0 : index
    %c128_54 = arith.constant 128 : index
    %88 = vector.load %arg7[%c0_53, %c128_54] : memref<32x1280xbf16, #tpu.memory_space<vmem>>, vector<32x1024xbf16>
    %c128_55 = arith.constant 128 : index
    %c0_56 = arith.constant 0 : index
    %89 = vector.load %arg8[%c128_55, %c0_56] : memref<288x1024xbf16, #tpu.memory_space<vmem>>, vector<32x1024xbf16>
    tpu.vector_store %arg8[%c128_55, %c0_56], %88 {strides = array<i32>} : memref<288x1024xbf16, #tpu.memory_space<vmem>>, vector<32x1024xbf16>,
    %c0_57 = arith.constant 0 : index
    %c129 = arith.constant 129 : index
    %90 = vector.load %arg7[%c0_57, %c129] : memref<32x1280xbf16, #tpu.memory_space<vmem>>, vector<32x1024xbf16>
    %91 = vector.broadcast %73 : vector<1x1024xbf16> to vector<32x1024xbf16>
    %92 = arith.mulf %90, %91 : vector<32x1024xbf16>
    %c160 = arith.constant 160 : index
    %c0_58 = arith.constant 0 : index
    %93 = vector.load %arg8[%c160, %c0_58] : memref<288x1024xbf16, #tpu.memory_space<vmem>>, vector<32x1024xbf16>
    tpu.vector_store %arg8[%c160, %c0_58], %92 {strides = array<i32>} : memref<288x1024xbf16, #tpu.memory_space<vmem>>, vector<32x1024xbf16>,
    %c0_59 = arith.constant 0 : index
    %c159 = arith.constant 159 : index
    %94 = vector.load %arg7[%c0_59, %c159] : memref<32x1280xbf16, #tpu.memory_space<vmem>>, vector<32x1024xbf16>
    %95 = vector.broadcast %72 : vector<1x1024xbf16> to vector<32x1024xbf16>
    %96 = arith.mulf %94, %95 : vector<32x1024xbf16>
    %c192_60 = arith.constant 192 : index
    %c0_61 = arith.constant 0 : index
    %97 = vector.load %arg8[%c192_60, %c0_61] : memref<288x1024xbf16, #tpu.memory_space<vmem>>, vector<32x1024xbf16>
    tpu.vector_store %arg8[%c192_60, %c0_61], %96 {strides = array<i32>} : memref<288x1024xbf16, #tpu.memory_space<vmem>>, vector<32x1024xbf16>,
    %c0_62 = arith.constant 0 : index
    %c160_63 = arith.constant 160 : index
    %98 = vector.load %arg7[%c0_62, %c160_63] : memref<32x1280xbf16, #tpu.memory_space<vmem>>, vector<32x1024xbf16>
    %c224 = arith.constant 224 : index
    %c0_64 = arith.constant 0 : index
    %99 = vector.load %arg8[%c224, %c0_64] : memref<288x1024xbf16, #tpu.memory_space<vmem>>, vector<32x1024xbf16>
    tpu.vector_store %arg8[%c224, %c0_64], %98 {strides = array<i32>} : memref<288x1024xbf16, #tpu.memory_space<vmem>>, vector<32x1024xbf16>,
    %c0_65 = arith.constant 0 : index
    %c161 = arith.constant 161 : index
    %100 = vector.load %arg7[%c0_65, %c161] : memref<32x1280xbf16, #tpu.memory_space<vmem>>, vector<32x1024xbf16>
    %101 = vector.broadcast %73 : vector<1x1024xbf16> to vector<32x1024xbf16>
    %102 = arith.mulf %100, %101 : vector<32x1024xbf16>
    %c256_66 = arith.constant 256 : index
    %c0_67 = arith.constant 0 : index
    %103 = vector.load %arg8[%c256_66, %c0_67] : memref<288x1024xbf16, #tpu.memory_space<vmem>>, vector<32x1024xbf16>
    tpu.vector_store %arg8[%c256_66, %c0_67], %102 {strides = array<i32>} : memref<288x1024xbf16, #tpu.memory_space<vmem>>, vector<32x1024xbf16>,
    %c0_68 = arith.constant 0 : index
    %c0_69 = arith.constant 0 : index
    %104 = vector.load %arg2[%c0_68, %c0_69] : memref<32x288xbf16, #tpu.memory_space<vmem>>, vector<32x288xbf16>
    %c0_70 = arith.constant 0 : index
    %c0_71 = arith.constant 0 : index
    %105 = vector.load %arg8[%c0_70, %c0_71] : memref<288x1024xbf16, #tpu.memory_space<vmem>>, vector<288x1024xbf16>
    %cst_72 = arith.constant dense<0.000000e+00> : vector<32x1024xf32>
    %106 = tpu.matmul %104, %105, %cst_72 {dimension_numbers = #tpu.dot_dimension_numbers<[1], [0], [0], [1], [0, 0, 1, 1], [], []>} : vector<32x288xbf16>, vector<288x1024xbf16>, vector<32x1024xf32> -> vector<32x1024xf32>
    %c0_73 = arith.constant 0 : index
    %c0_74 = arith.constant 0 : index
    %107 = vector.load %arg3[%c0_73, %c0_74] : memref<32x1xf32, #tpu.memory_space<vmem>>, vector<32x1xf32>
    %108 = vector.broadcast %107 : vector<32x1xf32> to vector<32x1024xf32>
    %109 = arith.addf %106, %108 : vector<32x1024xf32>
    %c0_75 = arith.constant 0 : index
    %c0_76 = arith.constant 0 : index
    %c0_77 = arith.constant 0 : index
    %110 = vector.load %arg6[%c0_75, %c0_76, %c0_77] : memref<1x32x1024xf32, #tpu.memory_space<vmem>>, vector<1x32x1024xf32>
    %111 = vector.shape_cast %110 : vector<1x32x1024xf32> to vector<32x1024xf32>
    %112 = vector.shape_cast %109 : vector<32x1024xf32> to vector<1x32x1024xf32>
    tpu.vector_store %arg6[%c0_75, %c0_76, %c0_77], %112 {strides = array<i32>} : memref<1x32x1024xf32, #tpu.memory_space<vmem>>, vector<1x32x1024xf32>,
    return
  }
  func.func @transform_0(%arg0: i32) -> (i32, i32, i32) {
    %c0_i32 = arith.constant 0 : i32
    %c0_i32_0 = arith.constant 0 : i32
    %c0_i32_1 = arith.constant 0 : i32
    return %arg0, %c0_i32, %c0_i32_0 : i32, i32, i32
  }
  func.func @transform_1(%arg0: i32) -> (i32, i32) {
    %c0_i32 = arith.constant 0 : i32
    %c0_i32_0 = arith.constant 0 : i32
    %c0_i32_1 = arith.constant 0 : i32
    return %c0_i32, %c0_i32_0 : i32, i32
  }
  func.func @transform_2(%arg0: i32) -> (i32, i32) {
    %c0_i32 = arith.constant 0 : i32
    %c0_i32_0 = arith.constant 0 : i32
    %c0_i32_1 = arith.constant 0 : i32
    return %c0_i32, %c0_i32_0 : i32, i32
  }
  func.func @transform_3(%arg0: i32) -> (i32, i32) {
    %c0_i32 = arith.constant 0 : i32
    %c0_i32_0 = arith.constant 0 : i32
    %c0_i32_1 = arith.constant 0 : i32
    return %c0_i32, %c0_i32_0 : i32, i32
  }
  func.func @transform_4(%arg0: i32) -> (i32, i32) {
    %c0_i32 = arith.constant 0 : i32
    %c0_i32_0 = arith.constant 0 : i32
    %c0_i32_1 = arith.constant 0 : i32
    return %c0_i32, %c0_i32_0 : i32, i32
  }
  func.func @transform_5(%arg0: i32) -> (i32, i32, i32) {
    %c0_i32 = arith.constant 0 : i32
    %c0_i32_0 = arith.constant 0 : i32
    %c0_i32_1 = arith.constant 0 : i32
    return %arg0, %c0_i32, %c0_i32_0 : i32, i32, i32
  }
}

</mosaic_0001>

<llo_original>
// kernel: tpu_custom_call.1
$region0: #{tpu_custom_call.1}
  #allocation0 [shape = 'u32[]', space=smem, size = 0x4, offset = 0x4, fixed_abs, tag = 'smem constant byte address 0x4 - core index']
  #allocation1 [shape = 'u32[144,128]{1,0:T(1,128)}', space=vmem, size = 0x12000, scoped, tag = 'internal scratch']
  #allocation2 [shape = 'bf16[32,1280]{1,0:T(16,128)(2,1)}', space=vmem, size = 0x14000, scoped, tag = 'scratch operand']
  #allocation3 [shape = 'bf16[288,1024]{1,0:T(16,128)(2,1)}', space=vmem, size = 0x90000, scoped, tag = 'scratch operand']
  %s0 = inlined_call_operand.hbm [shape: f32[2,32,256], index: 0, kind: input, shape index: {}]
  %s1 = inlined_call_operand.hbm [shape: bf16[32,288], index: 1, kind: input, shape index: {}]
  %s2 = inlined_call_operand.vmem [shape: f32[32,1], index: 2, kind: input, shape index: {}]
  %s3 = inlined_call_operand.vmem [shape: bf16[2,1024], index: 3, kind: input, shape index: {}]
  %s4 = inlined_call_operand.vmem [shape: bf16[16,64], index: 4, kind: input, shape index: {}]
  %s5 = inlined_call_operand.hbm [shape: f32[2,32,1024], index: 5, kind: output, shape index: {}]
  %s6 = sld [smem:[#allocation0]]
  $region61: #{tpu_custom_call.1} parent=0
    _
  %s8 = ssub.s32 1, %s6
  %s9 = scalar_select 0, %s8, %s6
  $region1: #{tpu_custom_call.1} parent=0
    #allocation4 [shape = 'u8[65536]{0}', space=vmem, size = 0x10000, scoped, tag = 'input window, operand 0']
    #allocation5 [shape = 's32[2]{0}', space=sflag, size = 0x8, scoped, tag = 'scoped memory for tpu_custom_call.1']
    #allocation6 [shape = 's32[2]{0}', space=sflag, size = 0x8, scoped, tag = 'scoped memory for tpu_custom_call.1']
    #allocation7 [shape = 'u8[24576]{0}', space=vmem, size = 0x6000, scoped, tag = 'input window, operand 1, single buffered']
    #allocation8 [shape = 's32[1]{0}', space=sflag, size = 0x4, scoped, tag = 'scoped memory for tpu_custom_call.1']
    #allocation9 [shape = 'u8[262144]{0}', space=vmem, size = 0x40000, scoped, tag = 'output window, operand 0']
    %10 = vsyncpa [#allocation5], 0
    %s11 = scalar_lea.sflag [#allocation5], 1
    %12 = vsyncpa %s11, 0
    %13 = vsyncpa [#allocation8], 0
    %14 = vsyncpa [#allocation6], 0
    %s15 = scalar_lea.sflag [#allocation6], 1
    %16 = vsyncpa %s15, 0
    loop: start=0, step=1, limit=4
    $region2: #{tpu_custom_call.1} parent=1 // loop_pre_header
      _
    $region3: #{tpu_custom_call.1} parent=1 // loop_header
      %s18 = sphi 0, %s22
      %p19 = scmp.ge.s32.totalorder %s18, 4
      %s28 = sphi 0, %s30
      %s31 = sphi 0, %s28
      %s32 = sphi 0, %s31
      %s48 = sphi 0, %s32
      %s52 = sphi 0, %s52
      %s54 = sphi 0, %s52
      %s55 = sphi 0, %s54
      %s69 = sphi 0, %s55
      %s73 = sphi 0, %s73
      %s75 = sphi 0, %s73
      %s76 = sphi 0, %s75
      %s90 = sphi 0, %s76
      %s94 = sphi 0, %s94
      %s96 = sphi 0, %s94
      %s97 = sphi 0, %s96
      %s111 = sphi 0, %s97
      %s115 = sphi 0, %s115
      %s117 = sphi 0, %s115
      %s118 = sphi 0, %s117
      %s132 = sphi 0, %s118
      %s138 = sphi 0, %s140
      %s141 = sphi 0, %s138
      %s142 = sphi 0, %s141
      %s158 = sphi 0, %s142
    $region4: #{tpu_custom_call.1} parent=1 // loop_header_branch
      %21 = sbr.rel (%p19) target = $region8
    $region5: #{tpu_custom_call.1} parent=1 // loop_body
      %s23 = ssub.s32 %s18, 1
      %s24 = ssub.s32 %s18, 2
      %s25 = sadd.s32 %s18, 1
      %s26 = ssub.s32 %s18, %s25
      %p27 = scmp.eq.s32.totalorder %s26, 0
      %s29 = sadd.s32 %s28, 1
      %s30 = scalar_select %p27, %s28, %s29
      %p33 = pneg %p27
      %p34 = scmp.eq.s32.totalorder %s18, 1
      %p35 = por %p33, %p34
      %p36 = scmp.ne.s32.totalorder %s28, %s31
      %p37 = scmp.eq.s32.totalorder %s18, 0
      %p38 = por %p36, %p37
      %p39 = scmp.ne.s32.totalorder %s28, %s31
      %p40 = scmp.eq.s32.totalorder %s23, 1
      %p41 = por %p39, %p40
      %p42 = scmp.ne.s32.totalorder %s31, %s32
      %p43 = scmp.eq.s32.totalorder %s23, 0
      %p44 = por %p42, %p43
      %p45 = scmp.ne.s32.totalorder %s31, %s32
      %p46 = scmp.eq.s32.totalorder %s24, 1
      %p47 = por %p45, %p46
      %p49 = scmp.ne.s32.totalorder %s32, %s48
      %p50 = scmp.eq.s32.totalorder %s24, 0
      %p51 = por %p49, %p50
      %s53 = sadd.s32 %s52, 1
      %p56 = scmp.eq.s32.totalorder %s18, 1
      %p57 = scmp.ne.s32.totalorder %s52, %s54
      %p58 = scmp.eq.s32.totalorder %s18, 0
      %p59 = por %p57, %p58
      %p60 = scmp.ne.s32.totalorder %s52, %s54
      %p61 = scmp.eq.s32.totalorder %s23, 1
      %p62 = por %p60, %p61
      %p63 = scmp.ne.s32.totalorder %s54, %s55
      %p64 = scmp.eq.s32.totalorder %s23, 0
      %p65 = por %p63, %p64
      %p66 = scmp.ne.s32.totalorder %s54, %s55
      %p67 = scmp.eq.s32.totalorder %s24, 1
      %p68 = por %p66, %p67
      %p70 = scmp.ne.s32.totalorder %s55, %s69
      %p71 = scmp.eq.s32.totalorder %s24, 0
      %p72 = por %p70, %p71
      %s74 = sadd.s32 %s73, 1
      %p77 = scmp.eq.s32.totalorder %s18, 1
      %p78 = scmp.ne.s32.totalorder %s73, %s75
      %p79 = scmp.eq.s32.totalorder %s18, 0
      %p80 = por %p78, %p79
      %p81 = scmp.ne.s32.totalorder %s73, %s75
      %p82 = scmp.eq.s32.totalorder %s23, 1
      %p83 = por %p81, %p82
      %p84 = scmp.ne.s32.totalorder %s75, %s76
      %p85 = scmp.eq.s32.totalorder %s23, 0
      %p86 = por %p84, %p85
      %p87 = scmp.ne.s32.totalorder %s75, %s76
      %p88 = scmp.eq.s32.totalorder %s24, 1
      %p89 = por %p87, %p88
      %p91 = scmp.ne.s32.totalorder %s76, %s90
      %p92 = scmp.eq.s32.totalorder %s24, 0
      %p93 = por %p91, %p92
      %s95 = sadd.s32 %s94, 1
      %p98 = scmp.eq.s32.totalorder %s18, 1
      %p99 = scmp.ne.s32.totalorder %s94, %s96
      %p100 = scmp.eq.s32.totalorder %s18, 0
      %p101 = por %p99, %p100
      %p102 = scmp.ne.s32.totalorder %s94, %s96
      %p103 = scmp.eq.s32.totalorder %s23, 1
      %p104 = por %p102, %p103
      %p105 = scmp.ne.s32.totalorder %s96, %s97
      %p106 = scmp.eq.s32.totalorder %s23, 0
      %p107 = por %p105, %p106
      %p108 = scmp.ne.s32.totalorder %s96, %s97
      %p109 = scmp.eq.s32.totalorder %s24, 1
      %p110 = por %p108, %p109
      %p112 = scmp.ne.s32.totalorder %s97, %s111
      %p113 = scmp.eq.s32.totalorder %s24, 0
      %p114 = por %p112, %p113
      %s116 = sadd.s32 %s115, 1
      %p119 = scmp.eq.s32.totalorder %s18, 1
      %p120 = scmp.ne.s32.totalorder %s115, %s117
      %p121 = scmp.eq.s32.totalorder %s18, 0
      %p122 = por %p120, %p121
      %p123 = scmp.ne.s32.totalorder %s115, %s117
      %p124 = scmp.eq.s32.totalorder %s23, 1
      %p125 = por %p123, %p124
      %p126 = scmp.ne.s32.totalorder %s117, %s118
      %p127 = scmp.eq.s32.totalorder %s23, 0
      %p128 = por %p126, %p127
      %p129 = scmp.ne.s32.totalorder %s117, %s118
      %p130 = scmp.eq.s32.totalorder %s24, 1
      %p131 = por %p129, %p130
      %p133 = scmp.ne.s32.totalorder %s118, %s132
      %p134 = scmp.eq.s32.totalorder %s24, 0
      %p135 = por %p133, %p134
      %s136 = ssub.s32 %s18, %s25
      %p137 = scmp.eq.s32.totalorder %s136, 0
      %s139 = sadd.s32 %s138, 1
      %s140 = scalar_select %p137, %s138, %s139
      %p143 = pneg %p137
      %p144 = scmp.eq.s32.totalorder %s18, 1
      %p145 = por %p143, %p144
      %p146 = scmp.ne.s32.totalorder %s138, %s141
      %p147 = scmp.eq.s32.totalorder %s18, 0
      %p148 = por %p146, %p147
      %p149 = scmp.ne.s32.totalorder %s138, %s141
      %p150 = scmp.eq.s32.totalorder %s23, 1
      %p151 = por %p149, %p150
      %p152 = scmp.ne.s32.totalorder %s141, %s142
      %p153 = scmp.eq.s32.totalorder %s23, 0
      %p154 = por %p152, %p153
      %p155 = scmp.ne.s32.totalorder %s141, %s142
      %p156 = scmp.eq.s32.totalorder %s24, 1
      %p157 = por %p155, %p156
      %p159 = scmp.ne.s32.totalorder %s142, %s158
      %p160 = scmp.eq.s32.totalorder %s24, 0
      %p161 = por %p159, %p160
      %p162 = scmp.le.s32.totalorder 1, %s18
      %p163 = scmp.lt.s32.totalorder %s18, 3
      %p164 = pnand %p162, %p163
      %p165 = pneg %p164
      // Predicated region
      $region9: #{tpu_custom_call.1} parent=5 // pred_check
        _
      $region10: #{tpu_custom_call.1} parent=5 // pred_check_branch
        %167 = sbr.rel (%p164) target = $region12
      $region11: #{tpu_custom_call.1} parent=5 // pred_region
        %s168 = ssub.s32 %s18, 1
        // Predicated region
        $region13: #{tpu_custom_call.1} parent=11 // pred_check
          %p169 = pneg %p65
        $region14: #{tpu_custom_call.1} parent=11 // pred_check_branch
          %171 = sbr.rel (%p169) target = $region16
        $region15: #{tpu_custom_call.1} parent=11 // pred_region
          %s173 = ssub.s32 768, 768
          %174 = vsyncadd [#allocation8], %s173
          %s175 = sshll.u32 [#allocation7], 4
          %s176 = int_to_ptr.vmem [resolvable:$true] %s175
          %181 = dma.hbm_to_vmem [thread:$0]  %s1, 768, %s176, [#allocation8], 192, 192, 12
        $region16: #{tpu_custom_call.1} parent=11 // pred_fallthru
          _
        // Predicated region
        $region17: #{tpu_custom_call.1} parent=11 // pred_check
          %p182 = pneg %p86
        $region18: #{tpu_custom_call.1} parent=11 // pred_check_branch
          %184 = sbr.rel (%p182) target = $region20
        $region19: #{tpu_custom_call.1} parent=11 // pred_region
          _
        $region20: #{tpu_custom_call.1} parent=11 // pred_fallthru
          _
        // Predicated region
        $region21: #{tpu_custom_call.1} parent=11 // pred_check
          %p185 = pneg %p107
        $region22: #{tpu_custom_call.1} parent=11 // pred_check_branch
          %187 = sbr.rel (%p185) target = $region24
        $region23: #{tpu_custom_call.1} parent=11 // pred_region
          _
        $region24: #{tpu_custom_call.1} parent=11 // pred_fallthru
          _
        // Predicated region
        $region25: #{tpu_custom_call.1} parent=11 // pred_check
          %p188 = pneg %p128
        $region26: #{tpu_custom_call.1} parent=11 // pred_check_branch
          %190 = sbr.rel (%p188) target = $region28
        $region27: #{tpu_custom_call.1} parent=11 // pred_region
          _
        $region28: #{tpu_custom_call.1} parent=11 // pred_fallthru
          _
      $region12: #{tpu_custom_call.1} parent=5 // pred_fallthru
        _
      %p191 = scmp.lt.s32.totalorder %s18, 2
      // Predicated region
      $region29: #{tpu_custom_call.1} parent=5 // pred_check
        %p192 = pneg %p191
      $region30: #{tpu_custom_call.1} parent=5 // pred_check_branch
        %194 = sbr.rel (%p192) target = $region32
      $region31: #{tpu_custom_call.1} parent=5 // pred_region
        // Predicated region
        $region33: #{tpu_custom_call.1} parent=31 // pred_check
          %p195 = pneg %p38
        $region34: #{tpu_custom_call.1} parent=31 // pred_check_branch
          %197 = sbr.rel (%p195) target = $region36
        $region35: #{tpu_custom_call.1} parent=31 // pred_region
          %s198 = sand.u32 %s28, 1
          %s199 = scalar_lea.sflag [#allocation5], %s198
          %s200 = sand.u32 %s28, 1
          %s201 = smul.addr %s200, 64
          %s202 = scalar_lea.vmem [#allocation4], %s201
          %s204 = ssub.s32 1024, 1024
          %205 = vsyncadd %s199, %s204
          %s206 = smul.addr %s18, 8
          %s207 = smul.addr %s206, 128
          %s208 = scalar_lea.hbm %s0, %s207
          %s209 = sshll.u32 %s202, 4
          %s210 = int_to_ptr.vmem [resolvable:$true] %s209
          %215 = dma.hbm_to_vmem [thread:$0]  %s208, 1024, %s210, %s199, 256, 256, 16
        $region36: #{tpu_custom_call.1} parent=31 // pred_fallthru
          _
      $region32: #{tpu_custom_call.1} parent=5 // pred_fallthru
        _
      %p216 = scmp.le.s32.totalorder 1, %s18
      %p217 = scmp.lt.s32.totalorder %s18, 3
      %p218 = pnand %p216, %p217
      %p219 = pneg %p218
      // Predicated region
      $region37: #{tpu_custom_call.1} parent=5 // pred_check
        _
      $region38: #{tpu_custom_call.1} parent=5 // pred_check_branch
        %221 = sbr.rel (%p218) target = $region40
      $region39: #{tpu_custom_call.1} parent=5 // pred_region
        %s222 = ssub.s32 %s18, 1
        %s223 = sand.u32 %s31, 1
        %s224 = scalar_lea.sflag [#allocation5], %s223
        %s225 = sand.u32 %s31, 1
        %s226 = smul.addr %s225, 64
        %s227 = scalar_lea.vmem [#allocation4], %s226
        // Predicated region
        $region41: #{tpu_custom_call.1} parent=39 // pred_check
          %p228 = pneg %p44
        $region42: #{tpu_custom_call.1} parent=39 // pred_check_branch
          %230 = sbr.rel (%p228) target = $region44
        $region43: #{tpu_custom_call.1} parent=39 // pred_region
          %231 = dma.done %s224, 1024
        $region44: #{tpu_custom_call.1} parent=39 // pred_fallthru
          _
        // Predicated region
        $region45: #{tpu_custom_call.1} parent=39 // pred_check
          %p232 = pneg %p65
        $region46: #{tpu_custom_call.1} parent=39 // pred_check_branch
          %234 = sbr.rel (%p232) target = $region48
        $region47: #{tpu_custom_call.1} parent=39 // pred_region
          %235 = dma.done [#allocation8], 768
        $region48: #{tpu_custom_call.1} parent=39 // pred_fallthru
          _
        %s236 = sand.u32 %s31, 1
        %s237 = scalar_lea.sflag [#allocation5], %s236
        %s238 = sand.u32 %s31, 1
        %s239 = smul.addr %s238, 64
        %s240 = scalar_lea.vmem [#allocation4], %s239
        %p241 = pneg %p44
        %p242 = pneg %p41
        %p243 = pneg %p65
        %p244 = pneg %p62
        %p245 = pneg %p86
        %p246 = pneg %p83
        %p247 = pneg %p107
        %p248 = pneg %p104
        %p249 = pneg %p128
        %p250 = pneg %p125
        %p251 = pneg %p154
        %p252 = pneg %p151
        %s253 = sand.u32 %s141, 1
        %s254 = scalar_lea.sflag [#allocation6], %s253
        %s255 = sand.u32 %s141, 1
        %s256 = smul.addr %s255, 256
        %s257 = scalar_lea.vmem [#allocation9], %s256
        %v259 = vld [vmem:[%s227] sm:$0xff]
        %v260 = vld [vmem:[%s227 + $0x8] sm:$0xff]
        %v261 = vld [vmem:[%s227 + $0x10] sm:$0xff]
        %v262 = vld [vmem:[%s227 + $0x18] sm:$0xff]
        %v263 = vld [vmem:[%s227 + $0x20] sm:$0xff]
        %v264 = vld [vmem:[%s227 + $0x28] sm:$0xff]
        %v265 = vld [vmem:[%s227 + $0x30] sm:$0xff]
        %v266 = vld [vmem:[%s227 + $0x38] sm:$0xff]
        %v267 = vpack.c.bf16 %v261, %v259
        %v268 = vpack.c.bf16 %v262, %v260
        %v269 = vpack.c.bf16 %v265, %v263
        %v270 = vpack.c.bf16 %v266, %v264
        %271 = vst [vmem:[#allocation2] sm:$0xff] 0
        %272 = vst [vmem:[#allocation2 + $0x50] sm:$0xff] 0
        %273 = vst [vmem:[#allocation2 + $0x48] sm:$0xff] 0
        %274 = vst [vmem:[#allocation2 + $0x98] sm:$0xff] 0
        %v275 = vld [vmem:[%s4] sm:$0xf]
        %v276 = vld [vmem:[%s4 + $0x4] sm:$0xf]
        %v279 = vunpack.c.l.b16 %v275
        %v280 = vunpack.c.l.b16 %v276
        %v281 = vpack.c.b16 %v280, %v279
        %vm283 = vcmask 130048
        %v285 = vsel %vm283, %v267, 0
        %v288 = vsel %vm283, %v269, 0
        %290 = vmatprep.subr.bf16.mxu0 0
        %291 = vmatpush1.bf16.msra.mxu0 %v281
        %292 = vmatprep.subr.bf16.mxu0 0
        %293 = vmatpush1.bf16.msra.mxu0 0
        %294 = vmatprep.subr.bf16.mxu0 0
        %295 = vmatpush1.bf16.msra.mxu0 0
        %296 = vmatprep.subr.bf16.mxu0 0
        %297 = vmatpush1.bf16.msra.mxu0 0
        %298 = vmatprep.subr.bf16.mxu0 0
        %299 = vmatpush1.bf16.msra.mxu0 0
        %300 = vmatprep.subr.bf16.mxu0 0
        %301 = vmatpush1.bf16.msra.mxu0 0
        %302 = vmatprep.subr.bf16.mxu0 0
        %303 = vmatpush1.bf16.msra.mxu0 0
        %304 = vmatprep.subr.bf16.mxu0 0
        %305 = vmatpush1.bf16.msra.mxu0 0
        %306 = vmatprep.subr.bf16.mxu0 0
        %307 = vmatpush1.bf16.msra.mxu0 0
        %308 = vmatprep.subr.bf16.mxu0 0
        %309 = vmatpush1.bf16.msra.mxu0 0
        %310 = vmatprep.subr.bf16.mxu0 0
        %311 = vmatpush1.bf16.msra.mxu0 0
        %312 = vmatprep.subr.bf16.mxu0 0
        %313 = vmatpush1.bf16.msra.mxu0 0
        %314 = vmatprep.subr.bf16.mxu0 0
        %315 = vmatpush1.bf16.msra.mxu0 0
        %316 = vmatprep.subr.bf16.mxu0 0
        %317 = vmatpush1.bf16.msra.mxu0 0
        %318 = vmatprep.subr.bf16.mxu0 0
        %319 = vmatpush1.bf16.msra.mxu0 0
        %320 = vmatprep.subr.bf16.mxu0 0
        %321 = vmatpush1.bf16.msra.mxu0 0
        %322 = vmatprep.mubr.bf16.mxu0 0
        %323 = vmatmul.mubr.bf16.gmra.mrb[0].mxu0 %v285
        %v324 = vpop.f32.mrb[0].mxu0
        %v325 = vadd.f32 0.0, %v324
        %v326 = vpop.f32.mrb[0].mxu0
        %v327 = vpop.f32.mrb[0].mxu0
        %v328 = vadd.f32 0.0, %v327
        %v329 = vpop.f32.mrb[0].mxu0
        %330 = vmatprep.mubr.bf16.mxu0 0
        %331 = vmatmul.mubr.bf16.gmra.mrb[0].mxu0 %v288
        %v332 = vpop.f32.mrb[0].mxu0
        %v333 = vadd.f32 0.0, %v332
        %v334 = vpop.f32.mrb[0].mxu0
        %v335 = vpop.f32.mrb[0].mxu0
        %v336 = vadd.f32 0.0, %v335
        %v337 = vpop.f32.mrb[0].mxu0
        %338 = vdwg.mxu0
        %v339 = vpack.c.bf16 %v328, %v325
        %v340 = vpack.c.bf16 %v336, %v333
        %vm341 = vcmask 523264
        %342 = vst.msk [vmem:[#allocation2 + $0x8] sm:$0xff] %vm341, %v339
        %343 = vst.msk [vmem:[#allocation2 + $0x58] sm:$0xff] %vm341, %v340
        %346 = vrot.lane.b32.xlu0 %v267, 112
        %v347 = vpop.permute.xlu0 %346
        %348 = vrot.lane.b32.xlu0 %v269, 112
        %v349 = vpop.permute.xlu0 %348
        %v351 = vsel %vm283, %v347, 0
        %v354 = vsel %vm283, %v349, 0
        %356 = vmatprep.subr.bf16.mxu0 0
        %357 = vmatpush1.bf16.msra.mxu0 %v281
        %358 = vmatprep.subr.bf16.mxu0 0
        %359 = vmatpush1.bf16.msra.mxu0 0
        %360 = vmatprep.subr.bf16.mxu0 0
        %361 = vmatpush1.bf16.msra.mxu0 0
        %362 = vmatprep.subr.bf16.mxu0 0
        %363 = vmatpush1.bf16.msra.mxu0 0
        %364 = vmatprep.subr.bf16.mxu0 0
        %365 = vmatpush1.bf16.msra.mxu0 0
        %366 = vmatprep.subr.bf16.mxu0 0
        %367 = vmatpush1.bf16.msra.mxu0 0
        %368 = vmatprep.subr.bf16.mxu0 0
        %369 = vmatpush1.bf16.msra.mxu0 0
        %370 = vmatprep.subr.bf16.mxu0 0
        %371 = vmatpush1.bf16.msra.mxu0 0
        %372 = vmatprep.subr.bf16.mxu0 0
        %373 = vmatpush1.bf16.msra.mxu0 0
        %374 = vmatprep.subr.bf16.mxu0 0
        %375 = vmatpush1.bf16.msra.mxu0 0
        %376 = vmatprep.subr.bf16.mxu0 0
        %377 = vmatpush1.bf16.msra.mxu0 0
        %378 = vmatprep.subr.bf16.mxu0 0
        %379 = vmatpush1.bf16.msra.mxu0 0
        %380 = vmatprep.subr.bf16.mxu0 0
        %381 = vmatpush1.bf16.msra.mxu0 0
        %382 = vmatprep.subr.bf16.mxu0 0
        %383 = vmatpush1.bf16.msra.mxu0 0
        %384 = vmatprep.subr.bf16.mxu0 0
        %385 = vmatpush1.bf16.msra.mxu0 0
        %386 = vmatprep.subr.bf16.mxu0 0
        %387 = vmatpush1.bf16.msra.mxu0 0
        %388 = vmatprep.mubr.bf16.mxu0 0
        %389 = vmatmul.mubr.bf16.gmra.mrb[0].mxu0 %v351
        %v390 = vpop.f32.mrb[0].mxu0
        %v391 = vadd.f32 0.0, %v390
        %v392 = vpop.f32.mrb[0].mxu0
        %v393 = vpop.f32.mrb[0].mxu0
        %v394 = vadd.f32 0.0, %v393
        %v395 = vpop.f32.mrb[0].mxu0
        %396 = vmatprep.mubr.bf16.mxu0 0
        %397 = vmatmul.mubr.bf16.gmra.mrb[0].mxu0 %v354
        %v398 = vpop.f32.mrb[0].mxu0
        %v399 = vadd.f32 0.0, %v398
        %v400 = vpop.f32.mrb[0].mxu0
        %v401 = vpop.f32.mrb[0].mxu0
        %v402 = vadd.f32 0.0, %v401
        %v403 = vpop.f32.mrb[0].mxu0
        %404 = vdwg.mxu0
        %v405 = vpack.c.bf16 %v394, %v391
        %v406 = vpack.c.bf16 %v402, %v399
        %409 = vrot.lane.b32.xlu0 %v405, 64
        %v410 = vpop.permute.xlu0 %409
        %411 = vrot.lane.b32.xlu0 %v406, 64
        %v412 = vpop.permute.xlu0 %411
        %vm415 = vcmask 1048064
        %416 = vst.msk [vmem:[#allocation2 + $0x8] sm:$0xff] %vm415, %v410
        %417 = vst.msk [vmem:[#allocation2 + $0x58] sm:$0xff] %vm415, %v412
        %418 = vrot.lane.b32.xlu0 %v267, 96
        %v419 = vpop.permute.xlu0 %418
        %420 = vrot.lane.b32.xlu0 %v269, 96
        %v421 = vpop.permute.xlu0 %420
        %v423 = vsel %vm283, %v419, 0
        %v426 = vsel %vm283, %v421, 0
        %428 = vmatprep.subr.bf16.mxu0 0
        %429 = vmatpush1.bf16.msra.mxu0 %v281
        %430 = vmatprep.subr.bf16.mxu0 0
        %431 = vmatpush1.bf16.msra.mxu0 0
        %432 = vmatprep.subr.bf16.mxu0 0
        %433 = vmatpush1.bf16.msra.mxu0 0
        %434 = vmatprep.subr.bf16.mxu0 0
        %435 = vmatpush1.bf16.msra.mxu0 0
        %436 = vmatprep.subr.bf16.mxu0 0
        %437 = vmatpush1.bf16.msra.mxu0 0
        %438 = vmatprep.subr.bf16.mxu0 0
        %439 = vmatpush1.bf16.msra.mxu0 0
        %440 = vmatprep.subr.bf16.mxu0 0
        %441 = vmatpush1.bf16.msra.mxu0 0
        %442 = vmatprep.subr.bf16.mxu0 0
        %443 = vmatpush1.bf16.msra.mxu0 0
        %444 = vmatprep.subr.bf16.mxu0 0
        %445 = vmatpush1.bf16.msra.mxu0 0
        %446 = vmatprep.subr.bf16.mxu0 0
        %447 = vmatpush1.bf16.msra.mxu0 0
        %448 = vmatprep.subr.bf16.mxu0 0
        %449 = vmatpush1.bf16.msra.mxu0 0
        %450 = vmatprep.subr.bf16.mxu0 0
        %451 = vmatpush1.bf16.msra.mxu0 0
        %452 = vmatprep.subr.bf16.mxu0 0
        %453 = vmatpush1.bf16.msra.mxu0 0
        %454 = vmatprep.subr.bf16.mxu0 0
        %455 = vmatpush1.bf16.msra.mxu0 0
        %456 = vmatprep.subr.bf16.mxu0 0
        %457 = vmatpush1.bf16.msra.mxu0 0
        %458 = vmatprep.subr.bf16.mxu0 0
        %459 = vmatpush1.bf16.msra.mxu0 0
        %460 = vmatprep.mubr.bf16.mxu0 0
        %461 = vmatmul.mubr.bf16.gmra.mrb[0].mxu0 %v423
        %v462 = vpop.f32.mrb[0].mxu0
        %v463 = vadd.f32 0.0, %v462
        %v464 = vpop.f32.mrb[0].mxu0
        %v465 = vpop.f32.mrb[0].mxu0
        %v466 = vadd.f32 0.0, %v465
        %v467 = vpop.f32.mrb[0].mxu0
        %468 = vmatprep.mubr.bf16.mxu0 0
        %469 = vmatmul.mubr.bf16.gmra.mrb[0].mxu0 %v426
        %v470 = vpop.f32.mrb[0].mxu0
        %v471 = vadd.f32 0.0, %v470
        %v472 = vpop.f32.mrb[0].mxu0
        %v473 = vpop.f32.mrb[0].mxu0
        %v474 = vadd.f32 0.0, %v473
        %v475 = vpop.f32.mrb[0].mxu0
        %476 = vdwg.mxu0
        %v477 = vpack.c.bf16 %v466, %v463
        %v478 = vpack.c.bf16 %v474, %v471
        %479 = vst.msk [vmem:[#allocation2 + $0x10] sm:$0xff] %vm341, %v477
        %480 = vst.msk [vmem:[#allocation2 + $0x60] sm:$0xff] %vm341, %v478
        %481 = vrot.lane.b32.xlu0 %v267, 80
        %v482 = vpop.permute.xlu0 %481
        %483 = vrot.lane.b32.xlu0 %v269, 80
        %v484 = vpop.permute.xlu0 %483
        %v486 = vsel %vm283, %v482, 0
        %v489 = vsel %vm283, %v484, 0
        %491 = vmatprep.subr.bf16.mxu0 0
        %492 = vmatpush1.bf16.msra.mxu0 %v281
        %493 = vmatprep.subr.bf16.mxu0 0
        %494 = vmatpush1.bf16.msra.mxu0 0
        %495 = vmatprep.subr.bf16.mxu0 0
        %496 = vmatpush1.bf16.msra.mxu0 0
        %497 = vmatprep.subr.bf16.mxu0 0
        %498 = vmatpush1.bf16.msra.mxu0 0
        %499 = vmatprep.subr.bf16.mxu0 0
        %500 = vmatpush1.bf16.msra.mxu0 0
        %501 = vmatprep.subr.bf16.mxu0 0
        %502 = vmatpush1.bf16.msra.mxu0 0
        %503 = vmatprep.subr.bf16.mxu0 0
        %504 = vmatpush1.bf16.msra.mxu0 0
        %505 = vmatprep.subr.bf16.mxu0 0
        %506 = vmatpush1.bf16.msra.mxu0 0
        %507 = vmatprep.subr.bf16.mxu0 0
        %508 = vmatpush1.bf16.msra.mxu0 0
        %509 = vmatprep.subr.bf16.mxu0 0
        %510 = vmatpush1.bf16.msra.mxu0 0
        %511 = vmatprep.subr.bf16.mxu0 0
        %512 = vmatpush1.bf16.msra.mxu0 0
        %513 = vmatprep.subr.bf16.mxu0 0
        %514 = vmatpush1.bf16.msra.mxu0 0
        %515 = vmatprep.subr.bf16.mxu0 0
        %516 = vmatpush1.bf16.msra.mxu0 0
        %517 = vmatprep.subr.bf16.mxu0 0
        %518 = vmatpush1.bf16.msra.mxu0 0
        %519 = vmatprep.subr.bf16.mxu0 0
        %520 = vmatpush1.bf16.msra.mxu0 0
        %521 = vmatprep.subr.bf16.mxu0 0
        %522 = vmatpush1.bf16.msra.mxu0 0
        %523 = vmatprep.mubr.bf16.mxu0 0
        %524 = vmatmul.mubr.bf16.gmra.mrb[0].mxu0 %v486
        %v525 = vpop.f32.mrb[0].mxu0
        %v526 = vadd.f32 0.0, %v525
        %v527 = vpop.f32.mrb[0].mxu0
        %v528 = vpop.f32.mrb[0].mxu0
        %v529 = vadd.f32 0.0, %v528
        %v530 = vpop.f32.mrb[0].mxu0
        %531 = vmatprep.mubr.bf16.mxu0 0
        %532 = vmatmul.mubr.bf16.gmra.mrb[0].mxu0 %v489
        %v533 = vpop.f32.mrb[0].mxu0
        %v534 = vadd.f32 0.0, %v533
        %v535 = vpop.f32.mrb[0].mxu0
        %v536 = vpop.f32.mrb[0].mxu0
        %v537 = vadd.f32 0.0, %v536
        %v538 = vpop.f32.mrb[0].mxu0
        %539 = vdwg.mxu0
        %v540 = vpack.c.bf16 %v529, %v526
        %v541 = vpack.c.bf16 %v537, %v534
        %544 = vrot.lane.b32.xlu0 %v540, 64
        %v545 = vpop.permute.xlu0 %544
        %546 = vrot.lane.b32.xlu0 %v541, 64
        %v547 = vpop.permute.xlu0 %546
        %550 = vst.msk [vmem:[#allocation2 + $0x10] sm:$0xff] %vm415, %v545
        %551 = vst.msk [vmem:[#allocation2 + $0x60] sm:$0xff] %vm415, %v547
        %552 = vrot.lane.b32.xlu0 %v267, 64
        %v553 = vpop.permute.xlu0 %552
        %554 = vrot.lane.b32.xlu0 %v269, 64
        %v555 = vpop.permute.xlu0 %554
        %v557 = vsel %vm283, %v553, 0
        %v560 = vsel %vm283, %v555, 0
        %562 = vmatprep.subr.bf16.mxu0 0
        %563 = vmatpush1.bf16.msra.mxu0 %v281
        %564 = vmatprep.subr.bf16.mxu0 0
        %565 = vmatpush1.bf16.msra.mxu0 0
        %566 = vmatprep.subr.bf16.mxu0 0
        %567 = vmatpush1.bf16.msra.mxu0 0
        %568 = vmatprep.subr.bf16.mxu0 0
        %569 = vmatpush1.bf16.msra.mxu0 0
        %570 = vmatprep.subr.bf16.mxu0 0
        %571 = vmatpush1.bf16.msra.mxu0 0
        %572 = vmatprep.subr.bf16.mxu0 0
        %573 = vmatpush1.bf16.msra.mxu0 0
        %574 = vmatprep.subr.bf16.mxu0 0
        %575 = vmatpush1.bf16.msra.mxu0 0
        %576 = vmatprep.subr.bf16.mxu0 0
        %577 = vmatpush1.bf16.msra.mxu0 0
        %578 = vmatprep.subr.bf16.mxu0 0
        %579 = vmatpush1.bf16.msra.mxu0 0
        %580 = vmatprep.subr.bf16.mxu0 0
        %581 = vmatpush1.bf16.msra.mxu0 0
        %582 = vmatprep.subr.bf16.mxu0 0
        %583 = vmatpush1.bf16.msra.mxu0 0
        %584 = vmatprep.subr.bf16.mxu0 0
        %585 = vmatpush1.bf16.msra.mxu0 0
        %586 = vmatprep.subr.bf16.mxu0 0
        %587 = vmatpush1.bf16.msra.mxu0 0
        %588 = vmatprep.subr.bf16.mxu0 0
        %589 = vmatpush1.bf16.msra.mxu0 0
        %590 = vmatprep.subr.bf16.mxu0 0
        %591 = vmatpush1.bf16.msra.mxu0 0
        %592 = vmatprep.subr.bf16.mxu0 0
        %593 = vmatpush1.bf16.msra.mxu0 0
        %594 = vmatprep.mubr.bf16.mxu0 0
        %595 = vmatmul.mubr.bf16.gmra.mrb[0].mxu0 %v557
        %v596 = vpop.f32.mrb[0].mxu0
        %v597 = vadd.f32 0.0, %v596
        %v598 = vpop.f32.mrb[0].mxu0
        %v599 = vpop.f32.mrb[0].mxu0
        %v600 = vadd.f32 0.0, %v599
        %v601 = vpop.f32.mrb[0].mxu0
        %602 = vmatprep.mubr.bf16.mxu0 0
        %603 = vmatmul.mubr.bf16.gmra.mrb[0].mxu0 %v560
        %v604 = vpop.f32.mrb[0].mxu0
        %v605 = vadd.f32 0.0, %v604
        %v606 = vpop.f32.mrb[0].mxu0
        %v607 = vpop.f32.mrb[0].mxu0
        %v608 = vadd.f32 0.0, %v607
        %v609 = vpop.f32.mrb[0].mxu0
        %610 = vdwg.mxu0
        %v611 = vpack.c.bf16 %v600, %v597
        %v612 = vpack.c.bf16 %v608, %v605
        %613 = vst.msk [vmem:[#allocation2 + $0x18] sm:$0xff] %vm341, %v611
        %614 = vst.msk [vmem:[#allocation2 + $0x68] sm:$0xff] %vm341, %v612
        %615 = vrot.lane.b32.xlu0 %v267, 48
        %v616 = vpop.permute.xlu0 %615
        %617 = vrot.lane.b32.xlu0 %v269, 48
        %v618 = vpop.permute.xlu0 %617
        %v620 = vsel %vm283, %v616, 0
        %v623 = vsel %vm283, %v618, 0
        %625 = vmatprep.subr.bf16.mxu0 0
        %626 = vmatpush1.bf16.msra.mxu0 %v281
        %627 = vmatprep.subr.bf16.mxu0 0
        %628 = vmatpush1.bf16.msra.mxu0 0
        %629 = vmatprep.subr.bf16.mxu0 0
        %630 = vmatpush1.bf16.msra.mxu0 0
        %631 = vmatprep.subr.bf16.mxu0 0
        %632 = vmatpush1.bf16.msra.mxu0 0
        %633 = vmatprep.subr.bf16.mxu0 0
        %634 = vmatpush1.bf16.msra.mxu0 0
        %635 = vmatprep.subr.bf16.mxu0 0
        %636 = vmatpush1.bf16.msra.mxu0 0
        %637 = vmatprep.subr.bf16.mxu0 0
        %638 = vmatpush1.bf16.msra.mxu0 0
        %639 = vmatprep.subr.bf16.mxu0 0
        %640 = vmatpush1.bf16.msra.mxu0 0
        %641 = vmatprep.subr.bf16.mxu0 0
        %642 = vmatpush1.bf16.msra.mxu0 0
        %643 = vmatprep.subr.bf16.mxu0 0
        %644 = vmatpush1.bf16.msra.mxu0 0
        %645 = vmatprep.subr.bf16.mxu0 0
        %646 = vmatpush1.bf16.msra.mxu0 0
        %647 = vmatprep.subr.bf16.mxu0 0
        %648 = vmatpush1.bf16.msra.mxu0 0
        %649 = vmatprep.subr.bf16.mxu0 0
        %650 = vmatpush1.bf16.msra.mxu0 0
        %651 = vmatprep.subr.bf16.mxu0 0
        %652 = vmatpush1.bf16.msra.mxu0 0
        %653 = vmatprep.subr.bf16.mxu0 0
        %654 = vmatpush1.bf16.msra.mxu0 0
        %655 = vmatprep.subr.bf16.mxu0 0
        %656 = vmatpush1.bf16.msra.mxu0 0
        %657 = vmatprep.mubr.bf16.mxu0 0
        %658 = vmatmul.mubr.bf16.gmra.mrb[0].mxu0 %v620
        %v659 = vpop.f32.mrb[0].mxu0
        %v660 = vadd.f32 0.0, %v659
        %v661 = vpop.f32.mrb[0].mxu0
        %v662 = vpop.f32.mrb[0].mxu0
        %v663 = vadd.f32 0.0, %v662
        %v664 = vpop.f32.mrb[0].mxu0
        %665 = vmatprep.mubr.bf16.mxu0 0
        %666 = vmatmul.mubr.bf16.gmra.mrb[0].mxu0 %v623
        %v667 = vpop.f32.mrb[0].mxu0
        %v668 = vadd.f32 0.0, %v667
        %v669 = vpop.f32.mrb[0].mxu0
        %v670 = vpop.f32.mrb[0].mxu0
        %v671 = vadd.f32 0.0, %v670
        %v672 = vpop.f32.mrb[0].mxu0
        %673 = vdwg.mxu0
        %v674 = vpack.c.bf16 %v663, %v660
        %v675 = vpack.c.bf16 %v671, %v668
        %678 = vrot.lane.b32.xlu0 %v674, 64
        %v679 = vpop.permute.xlu0 %678
        %680 = vrot.lane.b32.xlu0 %v675, 64
        %v681 = vpop.permute.xlu0 %680
        %684 = vst.msk [vmem:[#allocation2 + $0x18] sm:$0xff] %vm415, %v679
        %685 = vst.msk [vmem:[#allocation2 + $0x68] sm:$0xff] %vm415, %v681
        %686 = vrot.lane.b32.xlu0 %v267, 32
        %v687 = vpop.permute.xlu0 %686
        %688 = vrot.lane.b32.xlu0 %v269, 32
        %v689 = vpop.permute.xlu0 %688
        %v691 = vsel %vm283, %v687, 0
        %v694 = vsel %vm283, %v689, 0
        %696 = vmatprep.subr.bf16.mxu0 0
        %697 = vmatpush1.bf16.msra.mxu0 %v281
        %698 = vmatprep.subr.bf16.mxu0 0
        %699 = vmatpush1.bf16.msra.mxu0 0
        %700 = vmatprep.subr.bf16.mxu0 0
        %701 = vmatpush1.bf16.msra.mxu0 0
        %702 = vmatprep.subr.bf16.mxu0 0
        %703 = vmatpush1.bf16.msra.mxu0 0
        %704 = vmatprep.subr.bf16.mxu0 0
        %705 = vmatpush1.bf16.msra.mxu0 0
        %706 = vmatprep.subr.bf16.mxu0 0
        %707 = vmatpush1.bf16.msra.mxu0 0
        %708 = vmatprep.subr.bf16.mxu0 0
        %709 = vmatpush1.bf16.msra.mxu0 0
        %710 = vmatprep.subr.bf16.mxu0 0
        %711 = vmatpush1.bf16.msra.mxu0 0
        %712 = vmatprep.subr.bf16.mxu0 0
        %713 = vmatpush1.bf16.msra.mxu0 0
        %714 = vmatprep.subr.bf16.mxu0 0
        %715 = vmatpush1.bf16.msra.mxu0 0
        %716 = vmatprep.subr.bf16.mxu0 0
        %717 = vmatpush1.bf16.msra.mxu0 0
        %718 = vmatprep.subr.bf16.mxu0 0
        %719 = vmatpush1.bf16.msra.mxu0 0
        %720 = vmatprep.subr.bf16.mxu0 0
        %721 = vmatpush1.bf16.msra.mxu0 0
        %722 = vmatprep.subr.bf16.mxu0 0
        %723 = vmatpush1.bf16.msra.mxu0 0
        %724 = vmatprep.subr.bf16.mxu0 0
        %725 = vmatpush1.bf16.msra.mxu0 0
        %726 = vmatprep.subr.bf16.mxu0 0
        %727 = vmatpush1.bf16.msra.mxu0 0
        %728 = vmatprep.mubr.bf16.mxu0 0
        %729 = vmatmul.mubr.bf16.gmra.mrb[0].mxu0 %v691
        %v730 = vpop.f32.mrb[0].mxu0
        %v731 = vadd.f32 0.0, %v730
        %v732 = vpop.f32.mrb[0].mxu0
        %v733 = vpop.f32.mrb[0].mxu0
        %v734 = vadd.f32 0.0, %v733
        %v735 = vpop.f32.mrb[0].mxu0
        %736 = vmatprep.mubr.bf16.mxu0 0
        %737 = vmatmul.mubr.bf16.gmra.mrb[0].mxu0 %v694
        %v738 = vpop.f32.mrb[0].mxu0
        %v739 = vadd.f32 0.0, %v738
        %v740 = vpop.f32.mrb[0].mxu0
        %v741 = vpop.f32.mrb[0].mxu0
        %v742 = vadd.f32 0.0, %v741
        %v743 = vpop.f32.mrb[0].mxu0
        %744 = vdwg.mxu0
        %v745 = vpack.c.bf16 %v734, %v731
        %v746 = vpack.c.bf16 %v742, %v739
        %747 = vst.msk [vmem:[#allocation2 + $0x20] sm:$0xff] %vm341, %v745
        %748 = vst.msk [vmem:[#allocation2 + $0x70] sm:$0xff] %vm341, %v746
        %749 = vrot.lane.b32.xlu0 %v267, 16
        %v750 = vpop.permute.xlu0 %749
        %751 = vrot.lane.b32.xlu0 %v269, 16
        %v752 = vpop.permute.xlu0 %751
        %v754 = vsel %vm283, %v750, 0
        %v757 = vsel %vm283, %v752, 0
        %759 = vmatprep.subr.bf16.mxu0 0
        %760 = vmatpush1.bf16.msra.mxu0 %v281
        %761 = vmatprep.subr.bf16.mxu0 0
        %762 = vmatpush1.bf16.msra.mxu0 0
        %763 = vmatprep.subr.bf16.mxu0 0
        %764 = vmatpush1.bf16.msra.mxu0 0
        %765 = vmatprep.subr.bf16.mxu0 0
        %766 = vmatpush1.bf16.msra.mxu0 0
        %767 = vmatprep.subr.bf16.mxu0 0
        %768 = vmatpush1.bf16.msra.mxu0 0
        %769 = vmatprep.subr.bf16.mxu0 0
        %770 = vmatpush1.bf16.msra.mxu0 0
        %771 = vmatprep.subr.bf16.mxu0 0
        %772 = vmatpush1.bf16.msra.mxu0 0
        %773 = vmatprep.subr.bf16.mxu0 0
        %774 = vmatpush1.bf16.msra.mxu0 0
        %775 = vmatprep.subr.bf16.mxu0 0
        %776 = vmatpush1.bf16.msra.mxu0 0
        %777 = vmatprep.subr.bf16.mxu0 0
        %778 = vmatpush1.bf16.msra.mxu0 0
        %779 = vmatprep.subr.bf16.mxu0 0
        %780 = vmatpush1.bf16.msra.mxu0 0
        %781 = vmatprep.subr.bf16.mxu0 0
        %782 = vmatpush1.bf16.msra.mxu0 0
        %783 = vmatprep.subr.bf16.mxu0 0
        %784 = vmatpush1.bf16.msra.mxu0 0
        %785 = vmatprep.subr.bf16.mxu0 0
        %786 = vmatpush1.bf16.msra.mxu0 0
        %787 = vmatprep.subr.bf16.mxu0 0
        %788 = vmatpush1.bf16.msra.mxu0 0
        %789 = vmatprep.subr.bf16.mxu0 0
        %790 = vmatpush1.bf16.msra.mxu0 0
        %791 = vmatprep.mubr.bf16.mxu0 0
        %792 = vmatmul.mubr.bf16.gmra.mrb[0].mxu0 %v754
        %v793 = vpop.f32.mrb[0].mxu0
        %v794 = vadd.f32 0.0, %v793
        %v795 = vpop.f32.mrb[0].mxu0
        %v796 = vpop.f32.mrb[0].mxu0
        %v797 = vadd.f32 0.0, %v796
        %v798 = vpop.f32.mrb[0].mxu0
        %799 = vmatprep.mubr.bf16.mxu0 0
        %800 = vmatmul.mubr.bf16.gmra.mrb[0].mxu0 %v757
        %v801 = vpop.f32.mrb[0].mxu0
        %v802 = vadd.f32 0.0, %v801
        %v803 = vpop.f32.mrb[0].mxu0
        %v804 = vpop.f32.mrb[0].mxu0
        %v805 = vadd.f32 0.0, %v804
        %v806 = vpop.f32.mrb[0].mxu0
        %807 = vdwg.mxu0
        %v808 = vpack.c.bf16 %v797, %v794
        %v809 = vpack.c.bf16 %v805, %v802
        %812 = vrot.lane.b32.xlu0 %v808, 64
        %v813 = vpop.permute.xlu0 %812
        %814 = vrot.lane.b32.xlu0 %v809, 64
        %v815 = vpop.permute.xlu0 %814
        %818 = vst.msk [vmem:[#allocation2 + $0x20] sm:$0xff] %vm415, %v813
        %819 = vst.msk [vmem:[#allocation2 + $0x70] sm:$0xff] %vm415, %v815
        %v821 = vsel %vm283, %v268, 0
        %v824 = vsel %vm283, %v270, 0
        %826 = vmatprep.subr.bf16.mxu0 0
        %827 = vmatpush1.bf16.msra.mxu0 %v281
        %828 = vmatprep.subr.bf16.mxu0 0
        %829 = vmatpush1.bf16.msra.mxu0 0
        %830 = vmatprep.subr.bf16.mxu0 0
        %831 = vmatpush1.bf16.msra.mxu0 0
        %832 = vmatprep.subr.bf16.mxu0 0
        %833 = vmatpush1.bf16.msra.mxu0 0
        %834 = vmatprep.subr.bf16.mxu0 0
        %835 = vmatpush1.bf16.msra.mxu0 0
        %836 = vmatprep.subr.bf16.mxu0 0
        %837 = vmatpush1.bf16.msra.mxu0 0
        %838 = vmatprep.subr.bf16.mxu0 0
        %839 = vmatpush1.bf16.msra.mxu0 0
        %840 = vmatprep.subr.bf16.mxu0 0
        %841 = vmatpush1.bf16.msra.mxu0 0
        %842 = vmatprep.subr.bf16.mxu0 0
        %843 = vmatpush1.bf16.msra.mxu0 0
        %844 = vmatprep.subr.bf16.mxu0 0
        %845 = vmatpush1.bf16.msra.mxu0 0
        %846 = vmatprep.subr.bf16.mxu0 0
        %847 = vmatpush1.bf16.msra.mxu0 0
        %848 = vmatprep.subr.bf16.mxu0 0
        %849 = vmatpush1.bf16.msra.mxu0 0
        %850 = vmatprep.subr.bf16.mxu0 0
        %851 = vmatpush1.bf16.msra.mxu0 0
        %852 = vmatprep.subr.bf16.mxu0 0
        %853 = vmatpush1.bf16.msra.mxu0 0
        %854 = vmatprep.subr.bf16.mxu0 0
        %855 = vmatpush1.bf16.msra.mxu0 0
        %856 = vmatprep.subr.bf16.mxu0 0
        %857 = vmatpush1.bf16.msra.mxu0 0
        %858 = vmatprep.mubr.bf16.mxu0 0
        %859 = vmatmul.mubr.bf16.gmra.mrb[0].mxu0 %v821
        %v860 = vpop.f32.mrb[0].mxu0
        %v861 = vadd.f32 0.0, %v860
        %v862 = vpop.f32.mrb[0].mxu0
        %v863 = vpop.f32.mrb[0].mxu0
        %v864 = vadd.f32 0.0, %v863
        %v865 = vpop.f32.mrb[0].mxu0
        %866 = vmatprep.mubr.bf16.mxu0 0
        %867 = vmatmul.mubr.bf16.gmra.mrb[0].mxu0 %v824
        %v868 = vpop.f32.mrb[0].mxu0
        %v869 = vadd.f32 0.0, %v868
        %v870 = vpop.f32.mrb[0].mxu0
        %v871 = vpop.f32.mrb[0].mxu0
        %v872 = vadd.f32 0.0, %v871
        %v873 = vpop.f32.mrb[0].mxu0
        %874 = vdwg.mxu0
        %v875 = vpack.c.bf16 %v864, %v861
        %v876 = vpack.c.bf16 %v872, %v869
        %877 = vst.msk [vmem:[#allocation2 + $0x28] sm:$0xff] %vm341, %v875
        %878 = vst.msk [vmem:[#allocation2 + $0x78] sm:$0xff] %vm341, %v876
        %881 = vrot.lane.b32.xlu0 %v268, 112
        %v882 = vpop.permute.xlu0 %881
        %883 = vrot.lane.b32.xlu0 %v270, 112
        %v884 = vpop.permute.xlu0 %883
        %v886 = vsel %vm283, %v882, 0
        %v889 = vsel %vm283, %v884, 0
        %891 = vmatprep.subr.bf16.mxu0 0
        %892 = vmatpush1.bf16.msra.mxu0 %v281
        %893 = vmatprep.subr.bf16.mxu0 0
        %894 = vmatpush1.bf16.msra.mxu0 0
        %895 = vmatprep.subr.bf16.mxu0 0
        %896 = vmatpush1.bf16.msra.mxu0 0
        %897 = vmatprep.subr.bf16.mxu0 0
        %898 = vmatpush1.bf16.msra.mxu0 0
        %899 = vmatprep.subr.bf16.mxu0 0
        %900 = vmatpush1.bf16.msra.mxu0 0
        %901 = vmatprep.subr.bf16.mxu0 0
        %902 = vmatpush1.bf16.msra.mxu0 0
        %903 = vmatprep.subr.bf16.mxu0 0
        %904 = vmatpush1.bf16.msra.mxu0 0
        %905 = vmatprep.subr.bf16.mxu0 0
        %906 = vmatpush1.bf16.msra.mxu0 0
        %907 = vmatprep.subr.bf16.mxu0 0
        %908 = vmatpush1.bf16.msra.mxu0 0
        %909 = vmatprep.subr.bf16.mxu0 0
        %910 = vmatpush1.bf16.msra.mxu0 0
        %911 = vmatprep.subr.bf16.mxu0 0
        %912 = vmatpush1.bf16.msra.mxu0 0
        %913 = vmatprep.subr.bf16.mxu0 0
        %914 = vmatpush1.bf16.msra.mxu0 0
        %915 = vmatprep.subr.bf16.mxu0 0
        %916 = vmatpush1.bf16.msra.mxu0 0
        %917 = vmatprep.subr.bf16.mxu0 0
        %918 = vmatpush1.bf16.msra.mxu0 0
        %919 = vmatprep.subr.bf16.mxu0 0
        %920 = vmatpush1.bf16.msra.mxu0 0
        %921 = vmatprep.subr.bf16.mxu0 0
        %922 = vmatpush1.bf16.msra.mxu0 0
        %923 = vmatprep.mubr.bf16.mxu0 0
        %924 = vmatmul.mubr.bf16.gmra.mrb[0].mxu0 %v886
        %v925 = vpop.f32.mrb[0].mxu0
        %v926 = vadd.f32 0.0, %v925
        %v927 = vpop.f32.mrb[0].mxu0
        %v928 = vpop.f32.mrb[0].mxu0
        %v929 = vadd.f32 0.0, %v928
        %v930 = vpop.f32.mrb[0].mxu0
        %931 = vmatprep.mubr.bf16.mxu0 0
        %932 = vmatmul.mubr.bf16.gmra.mrb[0].mxu0 %v889
        %v933 = vpop.f32.mrb[0].mxu0
        %v934 = vadd.f32 0.0, %v933
        %v935 = vpop.f32.mrb[0].mxu0
        %v936 = vpop.f32.mrb[0].mxu0
        %v937 = vadd.f32 0.0, %v936
        %v938 = vpop.f32.mrb[0].mxu0
        %939 = vdwg.mxu0
        %v940 = vpack.c.bf16 %v929, %v926
        %v941 = vpack.c.bf16 %v937, %v934
        %944 = vrot.lane.b32.xlu0 %v940, 64
        %v945 = vpop.permute.xlu0 %944
        %946 = vrot.lane.b32.xlu0 %v941, 64
        %v947 = vpop.permute.xlu0 %946
        %950 = vst.msk [vmem:[#allocation2 + $0x28] sm:$0xff] %vm415, %v945
        %951 = vst.msk [vmem:[#allocation2 + $0x78] sm:$0xff] %vm415, %v947
        %952 = vrot.lane.b32.xlu0 %v268, 96
        %v953 = vpop.permute.xlu0 %952
        %954 = vrot.lane.b32.xlu0 %v270, 96
        %v955 = vpop.permute.xlu0 %954
        %v957 = vsel %vm283, %v953, 0
        %v960 = vsel %vm283, %v955, 0
        %962 = vmatprep.subr.bf16.mxu0 0
        %963 = vmatpush1.bf16.msra.mxu0 %v281
        %964 = vmatprep.subr.bf16.mxu0 0
        %965 = vmatpush1.bf16.msra.mxu0 0
        %966 = vmatprep.subr.bf16.mxu0 0
        %967 = vmatpush1.bf16.msra.mxu0 0
        %968 = vmatprep.subr.bf16.mxu0 0
        %969 = vmatpush1.bf16.msra.mxu0 0
        %970 = vmatprep.subr.bf16.mxu0 0
        %971 = vmatpush1.bf16.msra.mxu0 0
        %972 = vmatprep.subr.bf16.mxu0 0
        %973 = vmatpush1.bf16.msra.mxu0 0
        %974 = vmatprep.subr.bf16.mxu0 0
        %975 = vmatpush1.bf16.msra.mxu0 0
        %976 = vmatprep.subr.bf16.mxu0 0
        %977 = vmatpush1.bf16.msra.mxu0 0
        %978 = vmatprep.subr.bf16.mxu0 0
        %979 = vmatpush1.bf16.msra.mxu0 0
        %980 = vmatprep.subr.bf16.mxu0 0
        %981 = vmatpush1.bf16.msra.mxu0 0
        %982 = vmatprep.subr.bf16.mxu0 0
        %983 = vmatpush1.bf16.msra.mxu0 0
        %984 = vmatprep.subr.bf16.mxu0 0
        %985 = vmatpush1.bf16.msra.mxu0 0
        %986 = vmatprep.subr.bf16.mxu0 0
        %987 = vmatpush1.bf16.msra.mxu0 0
        %988 = vmatprep.subr.bf16.mxu0 0
        %989 = vmatpush1.bf16.msra.mxu0 0
        %990 = vmatprep.subr.bf16.mxu0 0
        %991 = vmatpush1.bf16.msra.mxu0 0
        %992 = vmatprep.subr.bf16.mxu0 0
        %993 = vmatpush1.bf16.msra.mxu0 0
        %994 = vmatprep.mubr.bf16.mxu0 0
        %995 = vmatmul.mubr.bf16.gmra.mrb[0].mxu0 %v957
        %v996 = vpop.f32.mrb[0].mxu0
        %v997 = vadd.f32 0.0, %v996
        %v998 = vpop.f32.mrb[0].mxu0
        %v999 = vpop.f32.mrb[0].mxu0
        %v1000 = vadd.f32 0.0, %v999
        %v1001 = vpop.f32.mrb[0].mxu0
        %1002 = vmatprep.mubr.bf16.mxu0 0
        %1003 = vmatmul.mubr.bf16.gmra.mrb[0].mxu0 %v960
        %v1004 = vpop.f32.mrb[0].mxu0
        %v1005 = vadd.f32 0.0, %v1004
        %v1006 = vpop.f32.mrb[0].mxu0
        %v1007 = vpop.f32.mrb[0].mxu0
        %v1008 = vadd.f32 0.0, %v1007
        %v1009 = vpop.f32.mrb[0].mxu0
        %1010 = vdwg.mxu0
        %v1011 = vpack.c.bf16 %v1000, %v997
        %v1012 = vpack.c.bf16 %v1008, %v1005
        %1013 = vst.msk [vmem:[#allocation2 + $0x30] sm:$0xff] %vm341, %v1011
        %1014 = vst.msk [vmem:[#allocation2 + $0x80] sm:$0xff] %vm341, %v1012
        %1015 = vrot.lane.b32.xlu0 %v268, 80
        %v1016 = vpop.permute.xlu0 %1015
        %1017 = vrot.lane.b32.xlu0 %v270, 80
        %v1018 = vpop.permute.xlu0 %1017
        %v1020 = vsel %vm283, %v1016, 0
        %v1023 = vsel %vm283, %v1018, 0
        %1025 = vmatprep.subr.bf16.mxu0 0
        %1026 = vmatpush1.bf16.msra.mxu0 %v281
        %1027 = vmatprep.subr.bf16.mxu0 0
        %1028 = vmatpush1.bf16.msra.mxu0 0
        %1029 = vmatprep.subr.bf16.mxu0 0
        %1030 = vmatpush1.bf16.msra.mxu0 0
        %1031 = vmatprep.subr.bf16.mxu0 0
        %1032 = vmatpush1.bf16.msra.mxu0 0
        %1033 = vmatprep.subr.bf16.mxu0 0
        %1034 = vmatpush1.bf16.msra.mxu0 0
        %1035 = vmatprep.subr.bf16.mxu0 0
        %1036 = vmatpush1.bf16.msra.mxu0 0
        %1037 = vmatprep.subr.bf16.mxu0 0
        %1038 = vmatpush1.bf16.msra.mxu0 0
        %1039 = vmatprep.subr.bf16.mxu0 0
        %1040 = vmatpush1.bf16.msra.mxu0 0
        %1041 = vmatprep.subr.bf16.mxu0 0
        %1042 = vmatpush1.bf16.msra.mxu0 0
        %1043 = vmatprep.subr.bf16.mxu0 0
        %1044 = vmatpush1.bf16.msra.mxu0 0
        %1045 = vmatprep.subr.bf16.mxu0 0
        %1046 = vmatpush1.bf16.msra.mxu0 0
        %1047 = vmatprep.subr.bf16.mxu0 0
        %1048 = vmatpush1.bf16.msra.mxu0 0
        %1049 = vmatprep.subr.bf16.mxu0 0
        %1050 = vmatpush1.bf16.msra.mxu0 0
        %1051 = vmatprep.subr.bf16.mxu0 0
        %1052 = vmatpush1.bf16.msra.mxu0 0
        %1053 = vmatprep.subr.bf16.mxu0 0
        %1054 = vmatpush1.bf16.msra.mxu0 0
        %1055 = vmatprep.subr.bf16.mxu0 0
        %1056 = vmatpush1.bf16.msra.mxu0 0
        %1057 = vmatprep.mubr.bf16.mxu0 0
        %1058 = vmatmul.mubr.bf16.gmra.mrb[0].mxu0 %v1020
        %v1059 = vpop.f32.mrb[0].mxu0
        %v1060 = vadd.f32 0.0, %v1059
        %v1061 = vpop.f32.mrb[0].mxu0
        %v1062 = vpop.f32.mrb[0].mxu0
        %v1063 = vadd.f32 0.0, %v1062
        %v1064 = vpop.f32.mrb[0].mxu0
        %1065 = vmatprep.mubr.bf16.mxu0 0
        %1066 = vmatmul.mubr.bf16.gmra.mrb[0].mxu0 %v1023
        %v1067 = vpop.f32.mrb[0].mxu0
        %v1068 = vadd.f32 0.0, %v1067
        %v1069 = vpop.f32.mrb[0].mxu0
        %v1070 = vpop.f32.mrb[0].mxu0
        %v1071 = vadd.f32 0.0, %v1070
        %v1072 = vpop.f32.mrb[0].mxu0
        %1073 = vdwg.mxu0
        %v1074 = vpack.c.bf16 %v1063, %v1060
        %v1075 = vpack.c.bf16 %v1071, %v1068
        %1078 = vrot.lane.b32.xlu0 %v1074, 64
        %v1079 = vpop.permute.xlu0 %1078
        %1080 = vrot.lane.b32.xlu0 %v1075, 64
        %v1081 = vpop.permute.xlu0 %1080
        %1084 = vst.msk [vmem:[#allocation2 + $0x30] sm:$0xff] %vm415, %v1079
        %1085 = vst.msk [vmem:[#allocation2 + $0x80] sm:$0xff] %vm415, %v1081
        %1086 = vrot.lane.b32.xlu0 %v268, 64
        %v1087 = vpop.permute.xlu0 %1086
        %1088 = vrot.lane.b32.xlu0 %v270, 64
        %v1089 = vpop.permute.xlu0 %1088
        %v1091 = vsel %vm283, %v1087, 0
        %v1094 = vsel %vm283, %v1089, 0
        %1096 = vmatprep.subr.bf16.mxu0 0
        %1097 = vmatpush1.bf16.msra.mxu0 %v281
        %1098 = vmatprep.subr.bf16.mxu0 0
        %1099 = vmatpush1.bf16.msra.mxu0 0
        %1100 = vmatprep.subr.bf16.mxu0 0
        %1101 = vmatpush1.bf16.msra.mxu0 0
        %1102 = vmatprep.subr.bf16.mxu0 0
        %1103 = vmatpush1.bf16.msra.mxu0 0
        %1104 = vmatprep.subr.bf16.mxu0 0
        %1105 = vmatpush1.bf16.msra.mxu0 0
        %1106 = vmatprep.subr.bf16.mxu0 0
        %1107 = vmatpush1.bf16.msra.mxu0 0
        %1108 = vmatprep.subr.bf16.mxu0 0
        %1109 = vmatpush1.bf16.msra.mxu0 0
        %1110 = vmatprep.subr.bf16.mxu0 0
        %1111 = vmatpush1.bf16.msra.mxu0 0
        %1112 = vmatprep.subr.bf16.mxu0 0
        %1113 = vmatpush1.bf16.msra.mxu0 0
        %1114 = vmatprep.subr.bf16.mxu0 0
        %1115 = vmatpush1.bf16.msra.mxu0 0
        %1116 = vmatprep.subr.bf16.mxu0 0
        %1117 = vmatpush1.bf16.msra.mxu0 0
        %1118 = vmatprep.subr.bf16.mxu0 0
        %1119 = vmatpush1.bf16.msra.mxu0 0
        %1120 = vmatprep.subr.bf16.mxu0 0
        %1121 = vmatpush1.bf16.msra.mxu0 0
        %1122 = vmatprep.subr.bf16.mxu0 0
        %1123 = vmatpush1.bf16.msra.mxu0 0
        %1124 = vmatprep.subr.bf16.mxu0 0
        %1125 = vmatpush1.bf16.msra.mxu0 0
        %1126 = vmatprep.subr.bf16.mxu0 0
        %1127 = vmatpush1.bf16.msra.mxu0 0
        %1128 = vmatprep.mubr.bf16.mxu0 0
        %1129 = vmatmul.mubr.bf16.gmra.mrb[0].mxu0 %v1091
        %v1130 = vpop.f32.mrb[0].mxu0
        %v1131 = vadd.f32 0.0, %v1130
        %v1132 = vpop.f32.mrb[0].mxu0
        %v1133 = vpop.f32.mrb[0].mxu0
        %v1134 = vadd.f32 0.0, %v1133
        %v1135 = vpop.f32.mrb[0].mxu0
        %1136 = vmatprep.mubr.bf16.mxu0 0
        %1137 = vmatmul.mubr.bf16.gmra.mrb[0].mxu0 %v1094
        %v1138 = vpop.f32.mrb[0].mxu0
        %v1139 = vadd.f32 0.0, %v1138
        %v1140 = vpop.f32.mrb[0].mxu0
        %v1141 = vpop.f32.mrb[0].mxu0
        %v1142 = vadd.f32 0.0, %v1141
        %v1143 = vpop.f32.mrb[0].mxu0
        %1144 = vdwg.mxu0
        %v1145 = vpack.c.bf16 %v1134, %v1131
        %v1146 = vpack.c.bf16 %v1142, %v1139
        %1147 = vst.msk [vmem:[#allocation2 + $0x38] sm:$0xff] %vm341, %v1145
        %1148 = vst.msk [vmem:[#allocation2 + $0x88] sm:$0xff] %vm341, %v1146
        %1149 = vrot.lane.b32.xlu0 %v268, 48
        %v1150 = vpop.permute.xlu0 %1149
        %1151 = vrot.lane.b32.xlu0 %v270, 48
        %v1152 = vpop.permute.xlu0 %1151
        %v1154 = vsel %vm283, %v1150, 0
        %v1157 = vsel %vm283, %v1152, 0
        %1159 = vmatprep.subr.bf16.mxu0 0
        %1160 = vmatpush1.bf16.msra.mxu0 %v281
        %1161 = vmatprep.subr.bf16.mxu0 0
        %1162 = vmatpush1.bf16.msra.mxu0 0
        %1163 = vmatprep.subr.bf16.mxu0 0
        %1164 = vmatpush1.bf16.msra.mxu0 0
        %1165 = vmatprep.subr.bf16.mxu0 0
        %1166 = vmatpush1.bf16.msra.mxu0 0
        %1167 = vmatprep.subr.bf16.mxu0 0
        %1168 = vmatpush1.bf16.msra.mxu0 0
        %1169 = vmatprep.subr.bf16.mxu0 0
        %1170 = vmatpush1.bf16.msra.mxu0 0
        %1171 = vmatprep.subr.bf16.mxu0 0
        %1172 = vmatpush1.bf16.msra.mxu0 0
        %1173 = vmatprep.subr.bf16.mxu0 0
        %1174 = vmatpush1.bf16.msra.mxu0 0
        %1175 = vmatprep.subr.bf16.mxu0 0
        %1176 = vmatpush1.bf16.msra.mxu0 0
        %1177 = vmatprep.subr.bf16.mxu0 0
        %1178 = vmatpush1.bf16.msra.mxu0 0
        %1179 = vmatprep.subr.bf16.mxu0 0
        %1180 = vmatpush1.bf16.msra.mxu0 0
        %1181 = vmatprep.subr.bf16.mxu0 0
        %1182 = vmatpush1.bf16.msra.mxu0 0
        %1183 = vmatprep.subr.bf16.mxu0 0
        %1184 = vmatpush1.bf16.msra.mxu0 0
        %1185 = vmatprep.subr.bf16.mxu0 0
        %1186 = vmatpush1.bf16.msra.mxu0 0
        %1187 = vmatprep.subr.bf16.mxu0 0
        %1188 = vmatpush1.bf16.msra.mxu0 0
        %1189 = vmatprep.subr.bf16.mxu0 0
        %1190 = vmatpush1.bf16.msra.mxu0 0
        %1191 = vmatprep.mubr.bf16.mxu0 0
        %1192 = vmatmul.mubr.bf16.gmra.mrb[0].mxu0 %v1154
        %v1193 = vpop.f32.mrb[0].mxu0
        %v1194 = vadd.f32 0.0, %v1193
        %v1195 = vpop.f32.mrb[0].mxu0
        %v1196 = vpop.f32.mrb[0].mxu0
        %v1197 = vadd.f32 0.0, %v1196
        %v1198 = vpop.f32.mrb[0].mxu0
        %1199 = vmatprep.mubr.bf16.mxu0 0
        %1200 = vmatmul.mubr.bf16.gmra.mrb[0].mxu0 %v1157
        %v1201 = vpop.f32.mrb[0].mxu0
        %v1202 = vadd.f32 0.0, %v1201
        %v1203 = vpop.f32.mrb[0].mxu0
        %v1204 = vpop.f32.mrb[0].mxu0
        %v1205 = vadd.f32 0.0, %v1204
        %v1206 = vpop.f32.mrb[0].mxu0
        %1207 = vdwg.mxu0
        %v1208 = vpack.c.bf16 %v1197, %v1194
        %v1209 = vpack.c.bf16 %v1205, %v1202
        %1212 = vrot.lane.b32.xlu0 %v1208, 64
        %v1213 = vpop.permute.xlu0 %1212
        %1214 = vrot.lane.b32.xlu0 %v1209, 64
        %v1215 = vpop.permute.xlu0 %1214
        %1218 = vst.msk [vmem:[#allocation2 + $0x38] sm:$0xff] %vm415, %v1213
        %1219 = vst.msk [vmem:[#allocation2 + $0x88] sm:$0xff] %vm415, %v1215
        %1220 = vrot.lane.b32.xlu0 %v268, 32
        %v1221 = vpop.permute.xlu0 %1220
        %1222 = vrot.lane.b32.xlu0 %v270, 32
        %v1223 = vpop.permute.xlu0 %1222
        %v1225 = vsel %vm283, %v1221, 0
        %v1228 = vsel %vm283, %v1223, 0
        %1230 = vmatprep.subr.bf16.mxu0 0
        %1231 = vmatpush1.bf16.msra.mxu0 %v281
        %1232 = vmatprep.subr.bf16.mxu0 0
        %1233 = vmatpush1.bf16.msra.mxu0 0
        %1234 = vmatprep.subr.bf16.mxu0 0
        %1235 = vmatpush1.bf16.msra.mxu0 0
        %1236 = vmatprep.subr.bf16.mxu0 0
        %1237 = vmatpush1.bf16.msra.mxu0 0
        %1238 = vmatprep.subr.bf16.mxu0 0
        %1239 = vmatpush1.bf16.msra.mxu0 0
        %1240 = vmatprep.subr.bf16.mxu0 0
        %1241 = vmatpush1.bf16.msra.mxu0 0
        %1242 = vmatprep.subr.bf16.mxu0 0
        %1243 = vmatpush1.bf16.msra.mxu0 0
        %1244 = vmatprep.subr.bf16.mxu0 0
        %1245 = vmatpush1.bf16.msra.mxu0 0
        %1246 = vmatprep.subr.bf16.mxu0 0
        %1247 = vmatpush1.bf16.msra.mxu0 0
        %1248 = vmatprep.subr.bf16.mxu0 0
        %1249 = vmatpush1.bf16.msra.mxu0 0
        %1250 = vmatprep.subr.bf16.mxu0 0
        %1251 = vmatpush1.bf16.msra.mxu0 0
        %1252 = vmatprep.subr.bf16.mxu0 0
        %1253 = vmatpush1.bf16.msra.mxu0 0
        %1254 = vmatprep.subr.bf16.mxu0 0
        %1255 = vmatpush1.bf16.msra.mxu0 0
        %1256 = vmatprep.subr.bf16.mxu0 0
        %1257 = vmatpush1.bf16.msra.mxu0 0
        %1258 = vmatprep.subr.bf16.mxu0 0
        %1259 = vmatpush1.bf16.msra.mxu0 0
        %1260 = vmatprep.subr.bf16.mxu0 0
        %1261 = vmatpush1.bf16.msra.mxu0 0
        %1262 = vmatprep.mubr.bf16.mxu0 0
        %1263 = vmatmul.mubr.bf16.gmra.mrb[0].mxu0 %v1225
        %v1264 = vpop.f32.mrb[0].mxu0
        %v1265 = vadd.f32 0.0, %v1264
        %v1266 = vpop.f32.mrb[0].mxu0
        %v1267 = vpop.f32.mrb[0].mxu0
        %v1268 = vadd.f32 0.0, %v1267
        %v1269 = vpop.f32.mrb[0].mxu0
        %1270 = vmatprep.mubr.bf16.mxu0 0
        %1271 = vmatmul.mubr.bf16.gmra.mrb[0].mxu0 %v1228
        %v1272 = vpop.f32.mrb[0].mxu0
        %v1273 = vadd.f32 0.0, %v1272
        %v1274 = vpop.f32.mrb[0].mxu0
        %v1275 = vpop.f32.mrb[0].mxu0
        %v1276 = vadd.f32 0.0, %v1275
        %v1277 = vpop.f32.mrb[0].mxu0
        %1278 = vdwg.mxu0
        %v1279 = vpack.c.bf16 %v1268, %v1265
        %v1280 = vpack.c.bf16 %v1276, %v1273
        %1281 = vst.msk [vmem:[#allocation2 + $0x40] sm:$0xff] %vm341, %v1279
        %1282 = vst.msk [vmem:[#allocation2 + $0x90] sm:$0xff] %vm341, %v1280
        %1283 = vrot.lane.b32.xlu0 %v268, 16
        %v1284 = vpop.permute.xlu0 %1283
        %1285 = vrot.lane.b32.xlu0 %v270, 16
        %v1286 = vpop.permute.xlu0 %1285
        %v1288 = vsel %vm283, %v1284, 0
        %v1291 = vsel %vm283, %v1286, 0
        %1293 = vmatprep.subr.bf16.mxu0 0
        %1294 = vmatpush1.bf16.msra.mxu0 %v281
        %1295 = vmatprep.subr.bf16.mxu0 0
        %1296 = vmatpush1.bf16.msra.mxu0 0
        %1297 = vmatprep.subr.bf16.mxu0 0
        %1298 = vmatpush1.bf16.msra.mxu0 0
        %1299 = vmatprep.subr.bf16.mxu0 0
        %1300 = vmatpush1.bf16.msra.mxu0 0
        %1301 = vmatprep.subr.bf16.mxu0 0
        %1302 = vmatpush1.bf16.msra.mxu0 0
        %1303 = vmatprep.subr.bf16.mxu0 0
        %1304 = vmatpush1.bf16.msra.mxu0 0
        %1305 = vmatprep.subr.bf16.mxu0 0
        %1306 = vmatpush1.bf16.msra.mxu0 0
        %1307 = vmatprep.subr.bf16.mxu0 0
        %1308 = vmatpush1.bf16.msra.mxu0 0
        %1309 = vmatprep.subr.bf16.mxu0 0
        %1310 = vmatpush1.bf16.msra.mxu0 0
        %1311 = vmatprep.subr.bf16.mxu0 0
        %1312 = vmatpush1.bf16.msra.mxu0 0
        %1313 = vmatprep.subr.bf16.mxu0 0
        %1314 = vmatpush1.bf16.msra.mxu0 0
        %1315 = vmatprep.subr.bf16.mxu0 0
        %1316 = vmatpush1.bf16.msra.mxu0 0
        %1317 = vmatprep.subr.bf16.mxu0 0
        %1318 = vmatpush1.bf16.msra.mxu0 0
        %1319 = vmatprep.subr.bf16.mxu0 0
        %1320 = vmatpush1.bf16.msra.mxu0 0
        %1321 = vmatprep.subr.bf16.mxu0 0
        %1322 = vmatpush1.bf16.msra.mxu0 0
        %1323 = vmatprep.subr.bf16.mxu0 0
        %1324 = vmatpush1.bf16.msra.mxu0 0
        %1325 = vmatprep.mubr.bf16.mxu0 0
        %1326 = vmatmul.mubr.bf16.gmra.mrb[0].mxu0 %v1288
        %v1327 = vpop.f32.mrb[0].mxu0
        %v1328 = vadd.f32 0.0, %v1327
        %v1329 = vpop.f32.mrb[0].mxu0
        %v1330 = vpop.f32.mrb[0].mxu0
        %v1331 = vadd.f32 0.0, %v1330
        %v1332 = vpop.f32.mrb[0].mxu0
        %1333 = vmatprep.mubr.bf16.mxu0 0
        %1334 = vmatmul.mubr.bf16.gmra.mrb[0].mxu0 %v1291
        %v1335 = vpop.f32.mrb[0].mxu0
        %v1336 = vadd.f32 0.0, %v1335
        %v1337 = vpop.f32.mrb[0].mxu0
        %v1338 = vpop.f32.mrb[0].mxu0
        %v1339 = vadd.f32 0.0, %v1338
        %v1340 = vpop.f32.mrb[0].mxu0
        %1341 = vdwg.mxu0
        %v1342 = vpack.c.bf16 %v1331, %v1328
        %v1343 = vpack.c.bf16 %v1339, %v1336
        %1346 = vrot.lane.b32.xlu0 %v1342, 64
        %v1347 = vpop.permute.xlu0 %1346
        %1348 = vrot.lane.b32.xlu0 %v1343, 64
        %v1349 = vpop.permute.xlu0 %1348
        %1352 = vst.msk [vmem:[#allocation2 + $0x40] sm:$0xff] %vm415, %v1347
        %1353 = vst.msk [vmem:[#allocation2 + $0x90] sm:$0xff] %vm415, %v1349
        %v1354 = vld [vmem:[%s3] sm:$0xff]
        %v1355 = vld [vmem:[#allocation2] sm:$0xff]
        %v1356 = vld [vmem:[#allocation2 + $0x8] sm:$0xff]
        %v1357 = vld [vmem:[#allocation2 + $0x10] sm:$0xff]
        %v1358 = vld [vmem:[#allocation2 + $0x18] sm:$0xff]
        %v1359 = vld [vmem:[#allocation2 + $0x20] sm:$0xff]
        %v1360 = vld [vmem:[#allocation2 + $0x28] sm:$0xff]
        %v1361 = vld [vmem:[#allocation2 + $0x30] sm:$0xff]
        %v1362 = vld [vmem:[#allocation2 + $0x38] sm:$0xff]
        %v1363 = vld [vmem:[#allocation2 + $0x40] sm:$0xff]
        %v1364 = vld [vmem:[#allocation2 + $0x50] sm:$0xff]
        %v1365 = vld [vmem:[#allocation2 + $0x58] sm:$0xff]
        %v1366 = vld [vmem:[#allocation2 + $0x60] sm:$0xff]
        %v1367 = vld [vmem:[#allocation2 + $0x68] sm:$0xff]
        %v1368 = vld [vmem:[#allocation2 + $0x70] sm:$0xff]
        %v1369 = vld [vmem:[#allocation2 + $0x78] sm:$0xff]
        %v1370 = vld [vmem:[#allocation2 + $0x80] sm:$0xff]
        %v1371 = vld [vmem:[#allocation2 + $0x88] sm:$0xff]
        %v1372 = vld [vmem:[#allocation2 + $0x90] sm:$0xff]
        %v1374 = vcombine.high %v1354, %v1354
        %v1376 = vunpack.c.l.s4 1966171168
        %v1377 = vunpack.c.0.s8 %v1376
        %v1378 = vlaneseq
        %v1379 = vshrl.u32 %v1378, 7
        %v1380 = vsub.s32 %v1377, %v1379
        %v1381 = vrot.slane %v1354, %v1380
        %v1383 = vunpack.c.l.s4 1966171168
        %v1384 = vunpack.c.0.s8 %v1383
        %v1385 = vlaneseq
        %v1386 = vshrl.u32 %v1385, 7
        %v1387 = vsub.s32 %v1384, %v1386
        %v1388 = vrot.slane %v1374, %v1387
        %v1389 = vcombine.high %v1381, %v1381
        %v1390 = vcombine.high %v1388, %v1388
        %v1392 = vunpack.c.l.s4 1966171168
        %v1393 = vunpack.c.0.s8 %v1392
        %v1394 = vlaneseq
        %v1395 = vshrl.u32 %v1394, 7
        %v1396 = vsub.s32 %v1393, %v1395
        %v1397 = vrot.slane %v1381, %v1396
        %v1399 = vunpack.c.l.s4 1966171168
        %v1400 = vunpack.c.0.s8 %v1399
        %v1401 = vlaneseq
        %v1402 = vshrl.u32 %v1401, 7
        %v1403 = vsub.s32 %v1400, %v1402
        %v1404 = vrot.slane %v1388, %v1403
        %v1406 = vunpack.c.l.s4 1966171168
        %v1407 = vunpack.c.0.s8 %v1406
        %v1408 = vlaneseq
        %v1409 = vshrl.u32 %v1408, 7
        %v1410 = vsub.s32 %v1407, %v1409
        %v1411 = vrot.slane %v1389, %v1410
        %v1413 = vunpack.c.l.s4 1966171168
        %v1414 = vunpack.c.0.s8 %v1413
        %v1415 = vlaneseq
        %v1416 = vshrl.u32 %v1415, 7
        %v1417 = vsub.s32 %v1414, %v1416
        %v1418 = vrot.slane %v1390, %v1417
        %v1419 = vcombine.high %v1397, %v1397
        %v1420 = vcombine.high %v1404, %v1404
        %v1421 = vcombine.high %v1411, %v1411
        %v1422 = vcombine.high %v1418, %v1418
        %v1424 = vpack.i.b16 %v1397, %v1397
        %v1426 = vlaneseq
        %v1427 = vshrl.u32 %v1426, 7
        %v1428 = vsub.s32 0, %v1427
        %v1429 = vrot.slane %v1424, %v1428
        %v1431 = vpack.i.b16 %v1411, %v1411
        %v1433 = vlaneseq
        %v1434 = vshrl.u32 %v1433, 7
        %v1435 = vsub.s32 0, %v1434
        %v1436 = vrot.slane %v1431, %v1435
        %v1438 = vpack.i.b16 %v1419, %v1419
        %v1440 = vlaneseq
        %v1441 = vshrl.u32 %v1440, 7
        %v1442 = vsub.s32 0, %v1441
        %v1443 = vrot.slane %v1438, %v1442
        %v1445 = vpack.i.b16 %v1421, %v1421
        %v1447 = vlaneseq
        %v1448 = vshrl.u32 %v1447, 7
        %v1449 = vsub.s32 0, %v1448
        %v1450 = vrot.slane %v1445, %v1449
        %v1452 = vpack.i.b16 %v1404, %v1404
        %v1454 = vlaneseq
        %v1455 = vshrl.u32 %v1454, 7
        %v1456 = vsub.s32 0, %v1455
        %v1457 = vrot.slane %v1452, %v1456
        %v1459 = vpack.i.b16 %v1418, %v1418
        %v1461 = vlaneseq
        %v1462 = vshrl.u32 %v1461, 7
        %v1463 = vsub.s32 0, %v1462
        %v1464 = vrot.slane %v1459, %v1463
        %v1466 = vpack.i.b16 %v1420, %v1420
        %v1468 = vlaneseq
        %v1469 = vshrl.u32 %v1468, 7
        %v1470 = vsub.s32 0, %v1469
        %v1471 = vrot.slane %v1466, %v1470
        %v1473 = vpack.i.b16 %v1422, %v1422
        %v1475 = vlaneseq
        %v1476 = vshrl.u32 %v1475, 7
        %v1477 = vsub.s32 0, %v1476
        %v1478 = vrot.slane %v1473, %v1477
        %1487 = vrot.lane.b32.xlu0 %v1429, 95
        %v1488 = vpop.permute.xlu0 %1487
        %1489 = vrot.lane.b32.xlu0 %v1436, 95
        %v1490 = vpop.permute.xlu0 %1489
        %1491 = vrot.lane.b32.xlu0 %v1443, 95
        %v1492 = vpop.permute.xlu0 %1491
        %1493 = vrot.lane.b32.xlu0 %v1450, 95
        %v1494 = vpop.permute.xlu0 %1493
        %1495 = vrot.lane.b32.xlu0 %v1457, 95
        %v1496 = vpop.permute.xlu0 %1495
        %1497 = vrot.lane.b32.xlu0 %v1464, 95
        %v1498 = vpop.permute.xlu0 %1497
        %1499 = vrot.lane.b32.xlu0 %v1471, 95
        %v1500 = vpop.permute.xlu0 %1499
        %1501 = vrot.lane.b32.xlu0 %v1478, 95
        %v1502 = vpop.permute.xlu0 %1501
        %vm1503 = vcmask 777216
        %v1504 = vsel %vm1503, %v1488, %v1490
        %v1505 = vsel %vm1503, %v1490, %v1492
        %v1506 = vsel %vm1503, %v1492, %v1494
        %v1507 = vsel %vm1503, %v1494, %v1496
        %v1508 = vsel %vm1503, %v1496, %v1498
        %v1509 = vsel %vm1503, %v1498, %v1500
        %v1510 = vsel %vm1503, %v1500, %v1502
        %v1520 = vmul.bf16 %v1355, %v1488
        %v1521 = vmul.bf16 %v1356, %v1504
        %v1522 = vmul.bf16 %v1357, %v1505
        %v1523 = vmul.bf16 %v1358, %v1506
        %v1524 = vmul.bf16 %v1359, %v1507
        %v1525 = vmul.bf16 %v1360, %v1508
        %v1526 = vmul.bf16 %v1361, %v1509
        %v1527 = vmul.bf16 %v1362, %v1510
        %v1528 = vmul.bf16 %v1363, %v1502
        %v1529 = vmul.bf16 %v1364, %v1488
        %v1530 = vmul.bf16 %v1365, %v1504
        %v1531 = vmul.bf16 %v1366, %v1505
        %v1532 = vmul.bf16 %v1367, %v1506
        %v1533 = vmul.bf16 %v1368, %v1507
        %v1534 = vmul.bf16 %v1369, %v1508
        %v1535 = vmul.bf16 %v1370, %v1509
        %v1536 = vmul.bf16 %v1371, %v1510
        %v1537 = vmul.bf16 %v1372, %v1502
        %1556 = vrot.lane.b32.xlu0 %v1520, 33
        %v1557 = vpop.permute.xlu0 %1556
        %1558 = vrot.lane.b32.xlu0 %v1521, 33
        %v1559 = vpop.permute.xlu0 %1558
        %1560 = vrot.lane.b32.xlu0 %v1522, 33
        %v1561 = vpop.permute.xlu0 %1560
        %1562 = vrot.lane.b32.xlu0 %v1523, 33
        %v1563 = vpop.permute.xlu0 %1562
        %1564 = vrot.lane.b32.xlu0 %v1524, 33
        %v1565 = vpop.permute.xlu0 %1564
        %1566 = vrot.lane.b32.xlu0 %v1525, 33
        %v1567 = vpop.permute.xlu0 %1566
        %1568 = vrot.lane.b32.xlu0 %v1526, 33
        %v1569 = vpop.permute.xlu0 %1568
        %1570 = vrot.lane.b32.xlu0 %v1527, 33
        %v1571 = vpop.permute.xlu0 %1570
        %1572 = vrot.lane.b32.xlu0 %v1528, 33
        %v1573 = vpop.permute.xlu0 %1572
        %1574 = vrot.lane.b32.xlu0 %v1529, 33
        %v1575 = vpop.permute.xlu0 %1574
        %1576 = vrot.lane.b32.xlu0 %v1530, 33
        %v1577 = vpop.permute.xlu0 %1576
        %1578 = vrot.lane.b32.xlu0 %v1531, 33
        %v1579 = vpop.permute.xlu0 %1578
        %1580 = vrot.lane.b32.xlu0 %v1532, 33
        %v1581 = vpop.permute.xlu0 %1580
        %1582 = vrot.lane.b32.xlu0 %v1533, 33
        %v1583 = vpop.permute.xlu0 %1582
        %1584 = vrot.lane.b32.xlu0 %v1534, 33
        %v1585 = vpop.permute.xlu0 %1584
        %1586 = vrot.lane.b32.xlu0 %v1535, 33
        %v1587 = vpop.permute.xlu0 %1586
        %1588 = vrot.lane.b32.xlu0 %v1536, 33
        %v1589 = vpop.permute.xlu0 %1588
        %1590 = vrot.lane.b32.xlu0 %v1537, 33
        %v1591 = vpop.permute.xlu0 %1590
        %vm1592 = vcmask 269312
        %v1593 = vsel %vm1592, %v1557, %v1559
        %v1594 = vsel %vm1592, %v1559, %v1561
        %v1595 = vsel %vm1592, %v1561, %v1563
        %v1596 = vsel %vm1592, %v1563, %v1565
        %v1597 = vsel %vm1592, %v1565, %v1567
        %v1598 = vsel %vm1592, %v1567, %v1569
        %v1599 = vsel %vm1592, %v1569, %v1571
        %v1600 = vsel %vm1592, %v1571, %v1573
        %v1601 = vsel %vm1592, %v1575, %v1577
        %v1602 = vsel %vm1592, %v1577, %v1579
        %v1603 = vsel %vm1592, %v1579, %v1581
        %v1604 = vsel %vm1592, %v1581, %v1583
        %v1605 = vsel %vm1592, %v1583, %v1585
        %v1606 = vsel %vm1592, %v1585, %v1587
        %v1607 = vsel %vm1592, %v1587, %v1589
        %v1608 = vsel %vm1592, %v1589, %v1591
        %1625 = vst [vmem:[#allocation3] sm:$0xff] %v1593
        %1626 = vst [vmem:[#allocation3 + $0x8] sm:$0xff] %v1594
        %1627 = vst [vmem:[#allocation3 + $0x10] sm:$0xff] %v1595
        %1628 = vst [vmem:[#allocation3 + $0x18] sm:$0xff] %v1596
        %1629 = vst [vmem:[#allocation3 + $0x20] sm:$0xff] %v1597
        %1630 = vst [vmem:[#allocation3 + $0x28] sm:$0xff] %v1598
        %1631 = vst [vmem:[#allocation3 + $0x30] sm:$0xff] %v1599
        %1632 = vst [vmem:[#allocation3 + $0x38] sm:$0xff] %v1600
        %1633 = vst [vmem:[#allocation3 + $0x40] sm:$0xff] %v1601
        %1634 = vst [vmem:[#allocation3 + $0x48] sm:$0xff] %v1602
        %1635 = vst [vmem:[#allocation3 + $0x50] sm:$0xff] %v1603
        %1636 = vst [vmem:[#allocation3 + $0x58] sm:$0xff] %v1604
        %1637 = vst [vmem:[#allocation3 + $0x60] sm:$0xff] %v1605
        %1638 = vst [vmem:[#allocation3 + $0x68] sm:$0xff] %v1606
        %1639 = vst [vmem:[#allocation3 + $0x70] sm:$0xff] %v1607
        %1640 = vst [vmem:[#allocation3 + $0x78] sm:$0xff] %v1608
        %v1641 = vld [vmem:[#allocation2] sm:$0xff]
        %v1642 = vld [vmem:[#allocation2 + $0x8] sm:$0xff]
        %v1643 = vld [vmem:[#allocation2 + $0x10] sm:$0xff]
        %v1644 = vld [vmem:[#allocation2 + $0x18] sm:$0xff]
        %v1645 = vld [vmem:[#allocation2 + $0x20] sm:$0xff]
        %v1646 = vld [vmem:[#allocation2 + $0x28] sm:$0xff]
        %v1647 = vld [vmem:[#allocation2 + $0x30] sm:$0xff]
        %v1648 = vld [vmem:[#allocation2 + $0x38] sm:$0xff]
        %v1649 = vld [vmem:[#allocation2 + $0x40] sm:$0xff]
        %v1650 = vld [vmem:[#allocation2 + $0x50] sm:$0xff]
        %v1651 = vld [vmem:[#allocation2 + $0x58] sm:$0xff]
        %v1652 = vld [vmem:[#allocation2 + $0x60] sm:$0xff]
        %v1653 = vld [vmem:[#allocation2 + $0x68] sm:$0xff]
        %v1654 = vld [vmem:[#allocation2 + $0x70] sm:$0xff]
        %v1655 = vld [vmem:[#allocation2 + $0x78] sm:$0xff]
        %v1656 = vld [vmem:[#allocation2 + $0x80] sm:$0xff]
        %v1657 = vld [vmem:[#allocation2 + $0x88] sm:$0xff]
        %v1658 = vld [vmem:[#allocation2 + $0x90] sm:$0xff]
        %1677 = vrot.lane.b32.xlu0 %v1641, 32
        %v1678 = vpop.permute.xlu0 %1677
        %1679 = vrot.lane.b32.xlu0 %v1642, 32
        %v1680 = vpop.permute.xlu0 %1679
        %1681 = vrot.lane.b32.xlu0 %v1643, 32
        %v1682 = vpop.permute.xlu0 %1681
        %1683 = vrot.lane.b32.xlu0 %v1644, 32
        %v1684 = vpop.permute.xlu0 %1683
        %1685 = vrot.lane.b32.xlu0 %v1645, 32
        %v1686 = vpop.permute.xlu0 %1685
        %1687 = vrot.lane.b32.xlu0 %v1646, 32
        %v1688 = vpop.permute.xlu0 %1687
        %1689 = vrot.lane.b32.xlu0 %v1647, 32
        %v1690 = vpop.permute.xlu0 %1689
        %1691 = vrot.lane.b32.xlu0 %v1648, 32
        %v1692 = vpop.permute.xlu0 %1691
        %1693 = vrot.lane.b32.xlu0 %v1649, 32
        %v1694 = vpop.permute.xlu0 %1693
        %1695 = vrot.lane.b32.xlu0 %v1650, 32
        %v1696 = vpop.permute.xlu0 %1695
        %1697 = vrot.lane.b32.xlu0 %v1651, 32
        %v1698 = vpop.permute.xlu0 %1697
        %1699 = vrot.lane.b32.xlu0 %v1652, 32
        %v1700 = vpop.permute.xlu0 %1699
        %1701 = vrot.lane.b32.xlu0 %v1653, 32
        %v1702 = vpop.permute.xlu0 %1701
        %1703 = vrot.lane.b32.xlu0 %v1654, 32
        %v1704 = vpop.permute.xlu0 %1703
        %1705 = vrot.lane.b32.xlu0 %v1655, 32
        %v1706 = vpop.permute.xlu0 %1705
        %1707 = vrot.lane.b32.xlu0 %v1656, 32
        %v1708 = vpop.permute.xlu0 %1707
        %1709 = vrot.lane.b32.xlu0 %v1657, 32
        %v1710 = vpop.permute.xlu0 %1709
        %1711 = vrot.lane.b32.xlu0 %v1658, 32
        %v1712 = vpop.permute.xlu0 %1711
        %vm1713 = vcmask 261120
        %v1714 = vsel %vm1713, %v1678, %v1680
        %v1715 = vsel %vm1713, %v1680, %v1682
        %v1716 = vsel %vm1713, %v1682, %v1684
        %v1717 = vsel %vm1713, %v1684, %v1686
        %v1718 = vsel %vm1713, %v1686, %v1688
        %v1719 = vsel %vm1713, %v1688, %v1690
        %v1720 = vsel %vm1713, %v1690, %v1692
        %v1721 = vsel %vm1713, %v1692, %v1694
        %v1722 = vsel %vm1713, %v1696, %v1698
        %v1723 = vsel %vm1713, %v1698, %v1700
        %v1724 = vsel %vm1713, %v1700, %v1702
        %v1725 = vsel %vm1713, %v1702, %v1704
        %v1726 = vsel %vm1713, %v1704, %v1706
        %v1727 = vsel %vm1713, %v1706, %v1708
        %v1728 = vsel %vm1713, %v1708, %v1710
        %v1729 = vsel %vm1713, %v1710, %v1712
        %1746 = vst [vmem:[#allocation3 + $0x80] sm:$0xff] %v1714
        %1747 = vst [vmem:[#allocation3 + $0x88] sm:$0xff] %v1715
        %1748 = vst [vmem:[#allocation3 + $0x90] sm:$0xff] %v1716
        %1749 = vst [vmem:[#allocation3 + $0x98] sm:$0xff] %v1717
        %1750 = vst [vmem:[#allocation3 + $0xa0] sm:$0xff] %v1718
        %1751 = vst [vmem:[#allocation3 + $0xa8] sm:$0xff] %v1719
        %1752 = vst [vmem:[#allocation3 + $0xb0] sm:$0xff] %v1720
        %1753 = vst [vmem:[#allocation3 + $0xb8] sm:$0xff] %v1721
        %1754 = vst [vmem:[#allocation3 + $0xc0] sm:$0xff] %v1722
        %1755 = vst [vmem:[#allocation3 + $0xc8] sm:$0xff] %v1723
        %1756 = vst [vmem:[#allocation3 + $0xd0] sm:$0xff] %v1724
        %1757 = vst [vmem:[#allocation3 + $0xd8] sm:$0xff] %v1725
        %1758 = vst [vmem:[#allocation3 + $0xe0] sm:$0xff] %v1726
        %1759 = vst [vmem:[#allocation3 + $0xe8] sm:$0xff] %v1727
        %1760 = vst [vmem:[#allocation3 + $0xf0] sm:$0xff] %v1728
        %1761 = vst [vmem:[#allocation3 + $0xf8] sm:$0xff] %v1729
        %v1762 = vld [vmem:[#allocation2] sm:$0xff]
        %v1763 = vld [vmem:[#allocation2 + $0x8] sm:$0xff]
        %v1764 = vld [vmem:[#allocation2 + $0x10] sm:$0xff]
        %v1765 = vld [vmem:[#allocation2 + $0x18] sm:$0xff]
        %v1766 = vld [vmem:[#allocation2 + $0x20] sm:$0xff]
        %v1767 = vld [vmem:[#allocation2 + $0x28] sm:$0xff]
        %v1768 = vld [vmem:[#allocation2 + $0x30] sm:$0xff]
        %v1769 = vld [vmem:[#allocation2 + $0x38] sm:$0xff]
        %v1770 = vld [vmem:[#allocation2 + $0x40] sm:$0xff]
        %v1771 = vld [vmem:[#allocation2 + $0x50] sm:$0xff]
        %v1772 = vld [vmem:[#allocation2 + $0x58] sm:$0xff]
        %v1773 = vld [vmem:[#allocation2 + $0x60] sm:$0xff]
        %v1774 = vld [vmem:[#allocation2 + $0x68] sm:$0xff]
        %v1775 = vld [vmem:[#allocation2 + $0x70] sm:$0xff]
        %v1776 = vld [vmem:[#allocation2 + $0x78] sm:$0xff]
        %v1777 = vld [vmem:[#allocation2 + $0x80] sm:$0xff]
        %v1778 = vld [vmem:[#allocation2 + $0x88] sm:$0xff]
        %v1779 = vld [vmem:[#allocation2 + $0x90] sm:$0xff]
        %v1780 = vshrl.u32 %v1397, 16
        %v1781 = vpack.i.b16 %v1780, %v1780
        %v1783 = vlaneseq
        %v1784 = vshrl.u32 %v1783, 7
        %v1785 = vsub.s32 0, %v1784
        %v1786 = vrot.slane %v1781, %v1785
        %v1787 = vshrl.u32 %v1411, 16
        %v1788 = vpack.i.b16 %v1787, %v1787
        %v1790 = vlaneseq
        %v1791 = vshrl.u32 %v1790, 7
        %v1792 = vsub.s32 0, %v1791
        %v1793 = vrot.slane %v1788, %v1792
        %v1794 = vshrl.u32 %v1419, 16
        %v1795 = vpack.i.b16 %v1794, %v1794
        %v1797 = vlaneseq
        %v1798 = vshrl.u32 %v1797, 7
        %v1799 = vsub.s32 0, %v1798
        %v1800 = vrot.slane %v1795, %v1799
        %v1801 = vshrl.u32 %v1421, 16
        %v1802 = vpack.i.b16 %v1801, %v1801
        %v1804 = vlaneseq
        %v1805 = vshrl.u32 %v1804, 7
        %v1806 = vsub.s32 0, %v1805
        %v1807 = vrot.slane %v1802, %v1806
        %v1808 = vshrl.u32 %v1404, 16
        %v1809 = vpack.i.b16 %v1808, %v1808
        %v1811 = vlaneseq
        %v1812 = vshrl.u32 %v1811, 7
        %v1813 = vsub.s32 0, %v1812
        %v1814 = vrot.slane %v1809, %v1813
        %v1815 = vshrl.u32 %v1418, 16
        %v1816 = vpack.i.b16 %v1815, %v1815
        %v1818 = vlaneseq
        %v1819 = vshrl.u32 %v1818, 7
        %v1820 = vsub.s32 0, %v1819
        %v1821 = vrot.slane %v1816, %v1820
        %v1822 = vshrl.u32 %v1420, 16
        %v1823 = vpack.i.b16 %v1822, %v1822
        %v1825 = vlaneseq
        %v1826 = vshrl.u32 %v1825, 7
        %v1827 = vsub.s32 0, %v1826
        %v1828 = vrot.slane %v1823, %v1827
        %v1829 = vshrl.u32 %v1422, 16
        %v1830 = vpack.i.b16 %v1829, %v1829
        %v1832 = vlaneseq
        %v1833 = vshrl.u32 %v1832, 7
        %v1834 = vsub.s32 0, %v1833
        %v1835 = vrot.slane %v1830, %v1834
        %1844 = vrot.lane.b32.xlu0 %v1786, 97
        %v1845 = vpop.permute.xlu0 %1844
        %1846 = vrot.lane.b32.xlu0 %v1793, 97
        %v1847 = vpop.permute.xlu0 %1846
        %1848 = vrot.lane.b32.xlu0 %v1800, 97
        %v1849 = vpop.permute.xlu0 %1848
        %1850 = vrot.lane.b32.xlu0 %v1807, 97
        %v1851 = vpop.permute.xlu0 %1850
        %1852 = vrot.lane.b32.xlu0 %v1814, 97
        %v1853 = vpop.permute.xlu0 %1852
        %1854 = vrot.lane.b32.xlu0 %v1821, 97
        %v1855 = vpop.permute.xlu0 %1854
        %1856 = vrot.lane.b32.xlu0 %v1828, 97
        %v1857 = vpop.permute.xlu0 %1856
        %1858 = vrot.lane.b32.xlu0 %v1835, 97
        %v1859 = vpop.permute.xlu0 %1858
        %vm1860 = vcmask 793600
        %v1861 = vsel %vm1860, %v1845, %v1847
        %v1862 = vsel %vm1860, %v1847, %v1849
        %v1863 = vsel %vm1860, %v1849, %v1851
        %v1864 = vsel %vm1860, %v1851, %v1853
        %v1865 = vsel %vm1860, %v1853, %v1855
        %v1866 = vsel %vm1860, %v1855, %v1857
        %v1867 = vsel %vm1860, %v1857, %v1859
        %v1877 = vmul.bf16 %v1762, %v1845
        %v1878 = vmul.bf16 %v1763, %v1861
        %v1879 = vmul.bf16 %v1764, %v1862
        %v1880 = vmul.bf16 %v1765, %v1863
        %v1881 = vmul.bf16 %v1766, %v1864
        %v1882 = vmul.bf16 %v1767, %v1865
        %v1883 = vmul.bf16 %v1768, %v1866
        %v1884 = vmul.bf16 %v1769, %v1867
        %v1885 = vmul.bf16 %v1770, %v1859
        %v1886 = vmul.bf16 %v1771, %v1845
        %v1887 = vmul.bf16 %v1772, %v1861
        %v1888 = vmul.bf16 %v1773, %v1862
        %v1889 = vmul.bf16 %v1774, %v1863
        %v1890 = vmul.bf16 %v1775, %v1864
        %v1891 = vmul.bf16 %v1776, %v1865
        %v1892 = vmul.bf16 %v1777, %v1866
        %v1893 = vmul.bf16 %v1778, %v1867
        %v1894 = vmul.bf16 %v1779, %v1859
        %1913 = vrot.lane.b32.xlu0 %v1877, 31
        %v1914 = vpop.permute.xlu0 %1913
        %1915 = vrot.lane.b32.xlu0 %v1878, 31
        %v1916 = vpop.permute.xlu0 %1915
        %1917 = vrot.lane.b32.xlu0 %v1879, 31
        %v1918 = vpop.permute.xlu0 %1917
        %1919 = vrot.lane.b32.xlu0 %v1880, 31
        %v1920 = vpop.permute.xlu0 %1919
        %1921 = vrot.lane.b32.xlu0 %v1881, 31
        %v1922 = vpop.permute.xlu0 %1921
        %1923 = vrot.lane.b32.xlu0 %v1882, 31
        %v1924 = vpop.permute.xlu0 %1923
        %1925 = vrot.lane.b32.xlu0 %v1883, 31
        %v1926 = vpop.permute.xlu0 %1925
        %1927 = vrot.lane.b32.xlu0 %v1884, 31
        %v1928 = vpop.permute.xlu0 %1927
        %1929 = vrot.lane.b32.xlu0 %v1885, 31
        %v1930 = vpop.permute.xlu0 %1929
        %1931 = vrot.lane.b32.xlu0 %v1886, 31
        %v1932 = vpop.permute.xlu0 %1931
        %1933 = vrot.lane.b32.xlu0 %v1887, 31
        %v1934 = vpop.permute.xlu0 %1933
        %1935 = vrot.lane.b32.xlu0 %v1888, 31
        %v1936 = vpop.permute.xlu0 %1935
        %1937 = vrot.lane.b32.xlu0 %v1889, 31
        %v1938 = vpop.permute.xlu0 %1937
        %1939 = vrot.lane.b32.xlu0 %v1890, 31
        %v1940 = vpop.permute.xlu0 %1939
        %1941 = vrot.lane.b32.xlu0 %v1891, 31
        %v1942 = vpop.permute.xlu0 %1941
        %1943 = vrot.lane.b32.xlu0 %v1892, 31
        %v1944 = vpop.permute.xlu0 %1943
        %1945 = vrot.lane.b32.xlu0 %v1893, 31
        %v1946 = vpop.permute.xlu0 %1945
        %1947 = vrot.lane.b32.xlu0 %v1894, 31
        %v1948 = vpop.permute.xlu0 %1947
        %vm1949 = vcmask 252928
        %v1950 = vsel %vm1949, %v1914, %v1916
        %v1951 = vsel %vm1949, %v1916, %v1918
        %v1952 = vsel %vm1949, %v1918, %v1920
        %v1953 = vsel %vm1949, %v1920, %v1922
        %v1954 = vsel %vm1949, %v1922, %v1924
        %v1955 = vsel %vm1949, %v1924, %v1926
        %v1956 = vsel %vm1949, %v1926, %v1928
        %v1957 = vsel %vm1949, %v1928, %v1930
        %v1958 = vsel %vm1949, %v1932, %v1934
        %v1959 = vsel %vm1949, %v1934, %v1936
        %v1960 = vsel %vm1949, %v1936, %v1938
        %v1961 = vsel %vm1949, %v1938, %v1940
        %v1962 = vsel %vm1949, %v1940, %v1942
        %v1963 = vsel %vm1949, %v1942, %v1944
        %v1964 = vsel %vm1949, %v1944, %v1946
        %v1965 = vsel %vm1949, %v1946, %v1948
        %1982 = vst [vmem:[#allocation3 + $0x100] sm:$0xff] %v1950
        %1983 = vst [vmem:[#allocation3 + $0x108] sm:$0xff] %v1951
        %1984 = vst [vmem:[#allocation3 + $0x110] sm:$0xff] %v1952
        %1985 = vst [vmem:[#allocation3 + $0x118] sm:$0xff] %v1953
        %1986 = vst [vmem:[#allocation3 + $0x120] sm:$0xff] %v1954
        %1987 = vst [vmem:[#allocation3 + $0x128] sm:$0xff] %v1955
        %1988 = vst [vmem:[#allocation3 + $0x130] sm:$0xff] %v1956
        %1989 = vst [vmem:[#allocation3 + $0x138] sm:$0xff] %v1957
        %1990 = vst [vmem:[#allocation3 + $0x140] sm:$0xff] %v1958
        %1991 = vst [vmem:[#allocation3 + $0x148] sm:$0xff] %v1959
        %1992 = vst [vmem:[#allocation3 + $0x150] sm:$0xff] %v1960
        %1993 = vst [vmem:[#allocation3 + $0x158] sm:$0xff] %v1961
        %1994 = vst [vmem:[#allocation3 + $0x160] sm:$0xff] %v1962
        %1995 = vst [vmem:[#allocation3 + $0x168] sm:$0xff] %v1963
        %1996 = vst [vmem:[#allocation3 + $0x170] sm:$0xff] %v1964
        %1997 = vst [vmem:[#allocation3 + $0x178] sm:$0xff] %v1965
        %v1998 = vld [vmem:[#allocation2] sm:$0xff]
        %v1999 = vld [vmem:[#allocation2 + $0x8] sm:$0xff]
        %v2000 = vld [vmem:[#allocation2 + $0x10] sm:$0xff]
        %v2001 = vld [vmem:[#allocation2 + $0x18] sm:$0xff]
        %v2002 = vld [vmem:[#allocation2 + $0x20] sm:$0xff]
        %v2003 = vld [vmem:[#allocation2 + $0x28] sm:$0xff]
        %v2004 = vld [vmem:[#allocation2 + $0x30] sm:$0xff]
        %v2005 = vld [vmem:[#allocation2 + $0x38] sm:$0xff]
        %v2006 = vld [vmem:[#allocation2 + $0x40] sm:$0xff]
        %v2007 = vld [vmem:[#allocation2 + $0x50] sm:$0xff]
        %v2008 = vld [vmem:[#allocation2 + $0x58] sm:$0xff]
        %v2009 = vld [vmem:[#allocation2 + $0x60] sm:$0xff]
        %v2010 = vld [vmem:[#allocation2 + $0x68] sm:$0xff]
        %v2011 = vld [vmem:[#allocation2 + $0x70] sm:$0xff]
        %v2012 = vld [vmem:[#allocation2 + $0x78] sm:$0xff]
        %v2013 = vld [vmem:[#allocation2 + $0x80] sm:$0xff]
        %v2014 = vld [vmem:[#allocation2 + $0x88] sm:$0xff]
        %v2015 = vld [vmem:[#allocation2 + $0x90] sm:$0xff]
        %2016 = vrot.lane.b32.xlu0 %v1429, 127
        %v2017 = vpop.permute.xlu0 %2016
        %2018 = vrot.lane.b32.xlu0 %v1436, 127
        %v2019 = vpop.permute.xlu0 %2018
        %2020 = vrot.lane.b32.xlu0 %v1443, 127
        %v2021 = vpop.permute.xlu0 %2020
        %2022 = vrot.lane.b32.xlu0 %v1450, 127
        %v2023 = vpop.permute.xlu0 %2022
        %2024 = vrot.lane.b32.xlu0 %v1457, 127
        %v2025 = vpop.permute.xlu0 %2024
        %2026 = vrot.lane.b32.xlu0 %v1464, 127
        %v2027 = vpop.permute.xlu0 %2026
        %2028 = vrot.lane.b32.xlu0 %v1471, 127
        %v2029 = vpop.permute.xlu0 %2028
        %2030 = vrot.lane.b32.xlu0 %v1478, 127
        %v2031 = vpop.permute.xlu0 %2030
        %vm2032 = vcmask 1039360
        %v2033 = vsel %vm2032, %v2017, %v2019
        %v2034 = vsel %vm2032, %v2019, %v2021
        %v2035 = vsel %vm2032, %v2021, %v2023
        %v2036 = vsel %vm2032, %v2023, %v2025
        %v2037 = vsel %vm2032, %v2025, %v2027
        %v2038 = vsel %vm2032, %v2027, %v2029
        %v2039 = vsel %vm2032, %v2029, %v2031
        %v2049 = vmul.bf16 %v1998, %v2017
        %v2050 = vmul.bf16 %v1999, %v2033
        %v2051 = vmul.bf16 %v2000, %v2034
        %v2052 = vmul.bf16 %v2001, %v2035
        %v2053 = vmul.bf16 %v2002, %v2036
        %v2054 = vmul.bf16 %v2003, %v2037
        %v2055 = vmul.bf16 %v2004, %v2038
        %v2056 = vmul.bf16 %v2005, %v2039
        %v2057 = vmul.bf16 %v2006, %v2031
        %v2058 = vmul.bf16 %v2007, %v2017
        %v2059 = vmul.bf16 %v2008, %v2033
        %v2060 = vmul.bf16 %v2009, %v2034
        %v2061 = vmul.bf16 %v2010, %v2035
        %v2062 = vmul.bf16 %v2011, %v2036
        %v2063 = vmul.bf16 %v2012, %v2037
        %v2064 = vmul.bf16 %v2013, %v2038
        %v2065 = vmul.bf16 %v2014, %v2039
        %v2066 = vmul.bf16 %v2015, %v2031
        %2085 = vrot.lane.b32.xlu0 %v2049, 1
        %v2086 = vpop.permute.xlu0 %2085
        %2087 = vrot.lane.b32.xlu0 %v2050, 1
        %v2088 = vpop.permute.xlu0 %2087
        %2089 = vrot.lane.b32.xlu0 %v2051, 1
        %v2090 = vpop.permute.xlu0 %2089
        %2091 = vrot.lane.b32.xlu0 %v2052, 1
        %v2092 = vpop.permute.xlu0 %2091
        %2093 = vrot.lane.b32.xlu0 %v2053, 1
        %v2094 = vpop.permute.xlu0 %2093
        %2095 = vrot.lane.b32.xlu0 %v2054, 1
        %v2096 = vpop.permute.xlu0 %2095
        %2097 = vrot.lane.b32.xlu0 %v2055, 1
        %v2098 = vpop.permute.xlu0 %2097
        %2099 = vrot.lane.b32.xlu0 %v2056, 1
        %v2100 = vpop.permute.xlu0 %2099
        %2101 = vrot.lane.b32.xlu0 %v2057, 1
        %v2102 = vpop.permute.xlu0 %2101
        %2103 = vrot.lane.b32.xlu0 %v2058, 1
        %v2104 = vpop.permute.xlu0 %2103
        %2105 = vrot.lane.b32.xlu0 %v2059, 1
        %v2106 = vpop.permute.xlu0 %2105
        %2107 = vrot.lane.b32.xlu0 %v2060, 1
        %v2108 = vpop.permute.xlu0 %2107
        %2109 = vrot.lane.b32.xlu0 %v2061, 1
        %v2110 = vpop.permute.xlu0 %2109
        %2111 = vrot.lane.b32.xlu0 %v2062, 1
        %v2112 = vpop.permute.xlu0 %2111
        %2113 = vrot.lane.b32.xlu0 %v2063, 1
        %v2114 = vpop.permute.xlu0 %2113
        %2115 = vrot.lane.b32.xlu0 %v2064, 1
        %v2116 = vpop.permute.xlu0 %2115
        %2117 = vrot.lane.b32.xlu0 %v2065, 1
        %v2118 = vpop.permute.xlu0 %2117
        %2119 = vrot.lane.b32.xlu0 %v2066, 1
        %v2120 = vpop.permute.xlu0 %2119
        %vm2121 = vcmask 7168
        %v2122 = vsel %vm2121, %v2086, %v2088
        %v2123 = vsel %vm2121, %v2088, %v2090
        %v2124 = vsel %vm2121, %v2090, %v2092
        %v2125 = vsel %vm2121, %v2092, %v2094
        %v2126 = vsel %vm2121, %v2094, %v2096
        %v2127 = vsel %vm2121, %v2096, %v2098
        %v2128 = vsel %vm2121, %v2098, %v2100
        %v2129 = vsel %vm2121, %v2100, %v2102
        %v2130 = vsel %vm2121, %v2104, %v2106
        %v2131 = vsel %vm2121, %v2106, %v2108
        %v2132 = vsel %vm2121, %v2108, %v2110
        %v2133 = vsel %vm2121, %v2110, %v2112
        %v2134 = vsel %vm2121, %v2112, %v2114
        %v2135 = vsel %vm2121, %v2114, %v2116
        %v2136 = vsel %vm2121, %v2116, %v2118
        %v2137 = vsel %vm2121, %v2118, %v2120
        %2154 = vst [vmem:[#allocation3 + $0x180] sm:$0xff] %v2122
        %2155 = vst [vmem:[#allocation3 + $0x188] sm:$0xff] %v2123
        %2156 = vst [vmem:[#allocation3 + $0x190] sm:$0xff] %v2124
        %2157 = vst [vmem:[#allocation3 + $0x198] sm:$0xff] %v2125
        %2158 = vst [vmem:[#allocation3 + $0x1a0] sm:$0xff] %v2126
        %2159 = vst [vmem:[#allocation3 + $0x1a8] sm:$0xff] %v2127
        %2160 = vst [vmem:[#allocation3 + $0x1b0] sm:$0xff] %v2128
        %2161 = vst [vmem:[#allocation3 + $0x1b8] sm:$0xff] %v2129
        %2162 = vst [vmem:[#allocation3 + $0x1c0] sm:$0xff] %v2130
        %2163 = vst [vmem:[#allocation3 + $0x1c8] sm:$0xff] %v2131
        %2164 = vst [vmem:[#allocation3 + $0x1d0] sm:$0xff] %v2132
        %2165 = vst [vmem:[#allocation3 + $0x1d8] sm:$0xff] %v2133
        %2166 = vst [vmem:[#allocation3 + $0x1e0] sm:$0xff] %v2134
        %2167 = vst [vmem:[#allocation3 + $0x1e8] sm:$0xff] %v2135
        %2168 = vst [vmem:[#allocation3 + $0x1f0] sm:$0xff] %v2136
        %2169 = vst [vmem:[#allocation3 + $0x1f8] sm:$0xff] %v2137
        %v2170 = vld [vmem:[#allocation2 + $0x8] sm:$0xff]
        %v2171 = vld [vmem:[#allocation2 + $0x10] sm:$0xff]
        %v2172 = vld [vmem:[#allocation2 + $0x18] sm:$0xff]
        %v2173 = vld [vmem:[#allocation2 + $0x20] sm:$0xff]
        %v2174 = vld [vmem:[#allocation2 + $0x28] sm:$0xff]
        %v2175 = vld [vmem:[#allocation2 + $0x30] sm:$0xff]
        %v2176 = vld [vmem:[#allocation2 + $0x38] sm:$0xff]
        %v2177 = vld [vmem:[#allocation2 + $0x40] sm:$0xff]
        %v2178 = vld [vmem:[#allocation2 + $0x58] sm:$0xff]
        %v2179 = vld [vmem:[#allocation2 + $0x60] sm:$0xff]
        %v2180 = vld [vmem:[#allocation2 + $0x68] sm:$0xff]
        %v2181 = vld [vmem:[#allocation2 + $0x70] sm:$0xff]
        %v2182 = vld [vmem:[#allocation2 + $0x78] sm:$0xff]
        %v2183 = vld [vmem:[#allocation2 + $0x80] sm:$0xff]
        %v2184 = vld [vmem:[#allocation2 + $0x88] sm:$0xff]
        %v2185 = vld [vmem:[#allocation2 + $0x90] sm:$0xff]
        %2186 = vst [vmem:[#allocation3 + $0x200] sm:$0xff] %v2170
        %2187 = vst [vmem:[#allocation3 + $0x208] sm:$0xff] %v2171
        %2188 = vst [vmem:[#allocation3 + $0x210] sm:$0xff] %v2172
        %2189 = vst [vmem:[#allocation3 + $0x218] sm:$0xff] %v2173
        %2190 = vst [vmem:[#allocation3 + $0x220] sm:$0xff] %v2174
        %2191 = vst [vmem:[#allocation3 + $0x228] sm:$0xff] %v2175
        %2192 = vst [vmem:[#allocation3 + $0x230] sm:$0xff] %v2176
        %2193 = vst [vmem:[#allocation3 + $0x238] sm:$0xff] %v2177
        %2194 = vst [vmem:[#allocation3 + $0x240] sm:$0xff] %v2178
        %2195 = vst [vmem:[#allocation3 + $0x248] sm:$0xff] %v2179
        %2196 = vst [vmem:[#allocation3 + $0x250] sm:$0xff] %v2180
        %2197 = vst [vmem:[#allocation3 + $0x258] sm:$0xff] %v2181
        %2198 = vst [vmem:[#allocation3 + $0x260] sm:$0xff] %v2182
        %2199 = vst [vmem:[#allocation3 + $0x268] sm:$0xff] %v2183
        %2200 = vst [vmem:[#allocation3 + $0x270] sm:$0xff] %v2184
        %2201 = vst [vmem:[#allocation3 + $0x278] sm:$0xff] %v2185
        %v2202 = vld [vmem:[#allocation2 + $0x8] sm:$0xff]
        %v2203 = vld [vmem:[#allocation2 + $0x10] sm:$0xff]
        %v2204 = vld [vmem:[#allocation2 + $0x18] sm:$0xff]
        %v2205 = vld [vmem:[#allocation2 + $0x20] sm:$0xff]
        %v2206 = vld [vmem:[#allocation2 + $0x28] sm:$0xff]
        %v2207 = vld [vmem:[#allocation2 + $0x30] sm:$0xff]
        %v2208 = vld [vmem:[#allocation2 + $0x38] sm:$0xff]
        %v2209 = vld [vmem:[#allocation2 + $0x40] sm:$0xff]
        %v2210 = vld [vmem:[#allocation2 + $0x48] sm:$0xff]
        %v2211 = vld [vmem:[#allocation2 + $0x58] sm:$0xff]
        %v2212 = vld [vmem:[#allocation2 + $0x60] sm:$0xff]
        %v2213 = vld [vmem:[#allocation2 + $0x68] sm:$0xff]
        %v2214 = vld [vmem:[#allocation2 + $0x70] sm:$0xff]
        %v2215 = vld [vmem:[#allocation2 + $0x78] sm:$0xff]
        %v2216 = vld [vmem:[#allocation2 + $0x80] sm:$0xff]
        %v2217 = vld [vmem:[#allocation2 + $0x88] sm:$0xff]
        %v2218 = vld [vmem:[#allocation2 + $0x90] sm:$0xff]
        %v2219 = vld [vmem:[#allocation2 + $0x98] sm:$0xff]
        %2220 = vrot.lane.b32.xlu0 %v1786, 1
        %v2221 = vpop.permute.xlu0 %2220
        %2222 = vrot.lane.b32.xlu0 %v1793, 1
        %v2223 = vpop.permute.xlu0 %2222
        %2224 = vrot.lane.b32.xlu0 %v1800, 1
        %v2225 = vpop.permute.xlu0 %2224
        %2226 = vrot.lane.b32.xlu0 %v1807, 1
        %v2227 = vpop.permute.xlu0 %2226
        %2228 = vrot.lane.b32.xlu0 %v1814, 1
        %v2229 = vpop.permute.xlu0 %2228
        %2230 = vrot.lane.b32.xlu0 %v1821, 1
        %v2231 = vpop.permute.xlu0 %2230
        %2232 = vrot.lane.b32.xlu0 %v1828, 1
        %v2233 = vpop.permute.xlu0 %2232
        %2234 = vrot.lane.b32.xlu0 %v1835, 1
        %v2235 = vpop.permute.xlu0 %2234
        %v2236 = vsel %vm2121, %v2221, %v2223
        %v2237 = vsel %vm2121, %v2223, %v2225
        %v2238 = vsel %vm2121, %v2225, %v2227
        %v2239 = vsel %vm2121, %v2227, %v2229
        %v2240 = vsel %vm2121, %v2229, %v2231
        %v2241 = vsel %vm2121, %v2231, %v2233
        %v2242 = vsel %vm2121, %v2233, %v2235
        %v2252 = vmul.bf16 %v2202, %v2221
        %v2253 = vmul.bf16 %v2203, %v2236
        %v2254 = vmul.bf16 %v2204, %v2237
        %v2255 = vmul.bf16 %v2205, %v2238
        %v2256 = vmul.bf16 %v2206, %v2239
        %v2257 = vmul.bf16 %v2207, %v2240
        %v2258 = vmul.bf16 %v2208, %v2241
        %v2259 = vmul.bf16 %v2209, %v2242
        %v2260 = vmul.bf16 %v2210, %v2235
        %v2261 = vmul.bf16 %v2211, %v2221
        %v2262 = vmul.bf16 %v2212, %v2236
        %v2263 = vmul.bf16 %v2213, %v2237
        %v2264 = vmul.bf16 %v2214, %v2238
        %v2265 = vmul.bf16 %v2215, %v2239
        %v2266 = vmul.bf16 %v2216, %v2240
        %v2267 = vmul.bf16 %v2217, %v2241
        %v2268 = vmul.bf16 %v2218, %v2242
        %v2269 = vmul.bf16 %v2219, %v2235
        %2288 = vrot.lane.b32.xlu0 %v2252, 127
        %v2289 = vpop.permute.xlu0 %2288
        %2290 = vrot.lane.b32.xlu0 %v2253, 127
        %v2291 = vpop.permute.xlu0 %2290
        %2292 = vrot.lane.b32.xlu0 %v2254, 127
        %v2293 = vpop.permute.xlu0 %2292
        %2294 = vrot.lane.b32.xlu0 %v2255, 127
        %v2295 = vpop.permute.xlu0 %2294
        %2296 = vrot.lane.b32.xlu0 %v2256, 127
        %v2297 = vpop.permute.xlu0 %2296
        %2298 = vrot.lane.b32.xlu0 %v2257, 127
        %v2299 = vpop.permute.xlu0 %2298
        %2300 = vrot.lane.b32.xlu0 %v2258, 127
        %v2301 = vpop.permute.xlu0 %2300
        %2302 = vrot.lane.b32.xlu0 %v2259, 127
        %v2303 = vpop.permute.xlu0 %2302
        %2304 = vrot.lane.b32.xlu0 %v2260, 127
        %v2305 = vpop.permute.xlu0 %2304
        %2306 = vrot.lane.b32.xlu0 %v2261, 127
        %v2307 = vpop.permute.xlu0 %2306
        %2308 = vrot.lane.b32.xlu0 %v2262, 127
        %v2309 = vpop.permute.xlu0 %2308
        %2310 = vrot.lane.b32.xlu0 %v2263, 127
        %v2311 = vpop.permute.xlu0 %2310
        %2312 = vrot.lane.b32.xlu0 %v2264, 127
        %v2313 = vpop.permute.xlu0 %2312
        %2314 = vrot.lane.b32.xlu0 %v2265, 127
        %v2315 = vpop.permute.xlu0 %2314
        %2316 = vrot.lane.b32.xlu0 %v2266, 127
        %v2317 = vpop.permute.xlu0 %2316
        %2318 = vrot.lane.b32.xlu0 %v2267, 127
        %v2319 = vpop.permute.xlu0 %2318
        %2320 = vrot.lane.b32.xlu0 %v2268, 127
        %v2321 = vpop.permute.xlu0 %2320
        %2322 = vrot.lane.b32.xlu0 %v2269, 127
        %v2323 = vpop.permute.xlu0 %2322
        %v2324 = vsel %vm2032, %v2289, %v2291
        %v2325 = vsel %vm2032, %v2291, %v2293
        %v2326 = vsel %vm2032, %v2293, %v2295
        %v2327 = vsel %vm2032, %v2295, %v2297
        %v2328 = vsel %vm2032, %v2297, %v2299
        %v2329 = vsel %vm2032, %v2299, %v2301
        %v2330 = vsel %vm2032, %v2301, %v2303
        %v2331 = vsel %vm2032, %v2303, %v2305
        %v2332 = vsel %vm2032, %v2307, %v2309
        %v2333 = vsel %vm2032, %v2309, %v2311
        %v2334 = vsel %vm2032, %v2311, %v2313
        %v2335 = vsel %vm2032, %v2313, %v2315
        %v2336 = vsel %vm2032, %v2315, %v2317
        %v2337 = vsel %vm2032, %v2317, %v2319
        %v2338 = vsel %vm2032, %v2319, %v2321
        %v2339 = vsel %vm2032, %v2321, %v2323
        %2356 = vst [vmem:[#allocation3 + $0x280] sm:$0xff] %v2324
        %2357 = vst [vmem:[#allocation3 + $0x288] sm:$0xff] %v2325
        %2358 = vst [vmem:[#allocation3 + $0x290] sm:$0xff] %v2326
        %2359 = vst [vmem:[#allocation3 + $0x298] sm:$0xff] %v2327
        %2360 = vst [vmem:[#allocation3 + $0x2a0] sm:$0xff] %v2328
        %2361 = vst [vmem:[#allocation3 + $0x2a8] sm:$0xff] %v2329
        %2362 = vst [vmem:[#allocation3 + $0x2b0] sm:$0xff] %v2330
        %2363 = vst [vmem:[#allocation3 + $0x2b8] sm:$0xff] %v2331
        %2364 = vst [vmem:[#allocation3 + $0x2c0] sm:$0xff] %v2332
        %2365 = vst [vmem:[#allocation3 + $0x2c8] sm:$0xff] %v2333
        %2366 = vst [vmem:[#allocation3 + $0x2d0] sm:$0xff] %v2334
        %2367 = vst [vmem:[#allocation3 + $0x2d8] sm:$0xff] %v2335
        %2368 = vst [vmem:[#allocation3 + $0x2e0] sm:$0xff] %v2336
        %2369 = vst [vmem:[#allocation3 + $0x2e8] sm:$0xff] %v2337
        %2370 = vst [vmem:[#allocation3 + $0x2f0] sm:$0xff] %v2338
        %2371 = vst [vmem:[#allocation3 + $0x2f8] sm:$0xff] %v2339
        %v2372 = vld [vmem:[#allocation2 + $0x8] sm:$0xff]
        %v2373 = vld [vmem:[#allocation2 + $0x10] sm:$0xff]
        %v2374 = vld [vmem:[#allocation2 + $0x18] sm:$0xff]
        %v2375 = vld [vmem:[#allocation2 + $0x20] sm:$0xff]
        %v2376 = vld [vmem:[#allocation2 + $0x28] sm:$0xff]
        %v2377 = vld [vmem:[#allocation2 + $0x30] sm:$0xff]
        %v2378 = vld [vmem:[#allocation2 + $0x38] sm:$0xff]
        %v2379 = vld [vmem:[#allocation2 + $0x40] sm:$0xff]
        %v2380 = vld [vmem:[#allocation2 + $0x48] sm:$0xff]
        %v2381 = vld [vmem:[#allocation2 + $0x58] sm:$0xff]
        %v2382 = vld [vmem:[#allocation2 + $0x60] sm:$0xff]
        %v2383 = vld [vmem:[#allocation2 + $0x68] sm:$0xff]
        %v2384 = vld [vmem:[#allocation2 + $0x70] sm:$0xff]
        %v2385 = vld [vmem:[#allocation2 + $0x78] sm:$0xff]
        %v2386 = vld [vmem:[#allocation2 + $0x80] sm:$0xff]
        %v2387 = vld [vmem:[#allocation2 + $0x88] sm:$0xff]
        %v2388 = vld [vmem:[#allocation2 + $0x90] sm:$0xff]
        %v2389 = vld [vmem:[#allocation2 + $0x98] sm:$0xff]
        %2390 = vrot.lane.b32.xlu0 %v1429, 31
        %v2391 = vpop.permute.xlu0 %2390
        %2392 = vrot.lane.b32.xlu0 %v1436, 31
        %v2393 = vpop.permute.xlu0 %2392
        %2394 = vrot.lane.b32.xlu0 %v1443, 31
        %v2395 = vpop.permute.xlu0 %2394
        %2396 = vrot.lane.b32.xlu0 %v1450, 31
        %v2397 = vpop.permute.xlu0 %2396
        %2398 = vrot.lane.b32.xlu0 %v1457, 31
        %v2399 = vpop.permute.xlu0 %2398
        %2400 = vrot.lane.b32.xlu0 %v1464, 31
        %v2401 = vpop.permute.xlu0 %2400
        %2402 = vrot.lane.b32.xlu0 %v1471, 31
        %v2403 = vpop.permute.xlu0 %2402
        %2404 = vrot.lane.b32.xlu0 %v1478, 31
        %v2405 = vpop.permute.xlu0 %2404
        %v2406 = vsel %vm1949, %v2391, %v2393
        %v2407 = vsel %vm1949, %v2393, %v2395
        %v2408 = vsel %vm1949, %v2395, %v2397
        %v2409 = vsel %vm1949, %v2397, %v2399
        %v2410 = vsel %vm1949, %v2399, %v2401
        %v2411 = vsel %vm1949, %v2401, %v2403
        %v2412 = vsel %vm1949, %v2403, %v2405
        %v2422 = vmul.bf16 %v2372, %v2391
        %v2423 = vmul.bf16 %v2373, %v2406
        %v2424 = vmul.bf16 %v2374, %v2407
        %v2425 = vmul.bf16 %v2375, %v2408
        %v2426 = vmul.bf16 %v2376, %v2409
        %v2427 = vmul.bf16 %v2377, %v2410
        %v2428 = vmul.bf16 %v2378, %v2411
        %v2429 = vmul.bf16 %v2379, %v2412
        %v2430 = vmul.bf16 %v2380, %v2405
        %v2431 = vmul.bf16 %v2381, %v2391
        %v2432 = vmul.bf16 %v2382, %v2406
        %v2433 = vmul.bf16 %v2383, %v2407
        %v2434 = vmul.bf16 %v2384, %v2408
        %v2435 = vmul.bf16 %v2385, %v2409
        %v2436 = vmul.bf16 %v2386, %v2410
        %v2437 = vmul.bf16 %v2387, %v2411
        %v2438 = vmul.bf16 %v2388, %v2412
        %v2439 = vmul.bf16 %v2389, %v2405
        %2458 = vrot.lane.b32.xlu0 %v2422, 97
        %v2459 = vpop.permute.xlu0 %2458
        %2460 = vrot.lane.b32.xlu0 %v2423, 97
        %v2461 = vpop.permute.xlu0 %2460
        %2462 = vrot.lane.b32.xlu0 %v2424, 97
        %v2463 = vpop.permute.xlu0 %2462
        %2464 = vrot.lane.b32.xlu0 %v2425, 97
        %v2465 = vpop.permute.xlu0 %2464
        %2466 = vrot.lane.b32.xlu0 %v2426, 97
        %v2467 = vpop.permute.xlu0 %2466
        %2468 = vrot.lane.b32.xlu0 %v2427, 97
        %v2469 = vpop.permute.xlu0 %2468
        %2470 = vrot.lane.b32.xlu0 %v2428, 97
        %v2471 = vpop.permute.xlu0 %2470
        %2472 = vrot.lane.b32.xlu0 %v2429, 97
        %v2473 = vpop.permute.xlu0 %2472
        %2474 = vrot.lane.b32.xlu0 %v2430, 97
        %v2475 = vpop.permute.xlu0 %2474
        %2476 = vrot.lane.b32.xlu0 %v2431, 97
        %v2477 = vpop.permute.xlu0 %2476
        %2478 = vrot.lane.b32.xlu0 %v2432, 97
        %v2479 = vpop.permute.xlu0 %2478
        %2480 = vrot.lane.b32.xlu0 %v2433, 97
        %v2481 = vpop.permute.xlu0 %2480
        %2482 = vrot.lane.b32.xlu0 %v2434, 97
        %v2483 = vpop.permute.xlu0 %2482
        %2484 = vrot.lane.b32.xlu0 %v2435, 97
        %v2485 = vpop.permute.xlu0 %2484
        %2486 = vrot.lane.b32.xlu0 %v2436, 97
        %v2487 = vpop.permute.xlu0 %2486
        %2488 = vrot.lane.b32.xlu0 %v2437, 97
        %v2489 = vpop.permute.xlu0 %2488
        %2490 = vrot.lane.b32.xlu0 %v2438, 97
        %v2491 = vpop.permute.xlu0 %2490
        %2492 = vrot.lane.b32.xlu0 %v2439, 97
        %v2493 = vpop.permute.xlu0 %2492
        %v2494 = vsel %vm1860, %v2459, %v2461
        %v2495 = vsel %vm1860, %v2461, %v2463
        %v2496 = vsel %vm1860, %v2463, %v2465
        %v2497 = vsel %vm1860, %v2465, %v2467
        %v2498 = vsel %vm1860, %v2467, %v2469
        %v2499 = vsel %vm1860, %v2469, %v2471
        %v2500 = vsel %vm1860, %v2471, %v2473
        %v2501 = vsel %vm1860, %v2473, %v2475
        %v2502 = vsel %vm1860, %v2477, %v2479
        %v2503 = vsel %vm1860, %v2479, %v2481
        %v2504 = vsel %vm1860, %v2481, %v2483
        %v2505 = vsel %vm1860, %v2483, %v2485
        %v2506 = vsel %vm1860, %v2485, %v2487
        %v2507 = vsel %vm1860, %v2487, %v2489
        %v2508 = vsel %vm1860, %v2489, %v2491
        %v2509 = vsel %vm1860, %v2491, %v2493
        %2526 = vst [vmem:[#allocation3 + $0x300] sm:$0xff] %v2494
        %2527 = vst [vmem:[#allocation3 + $0x308] sm:$0xff] %v2495
        %2528 = vst [vmem:[#allocation3 + $0x310] sm:$0xff] %v2496
        %2529 = vst [vmem:[#allocation3 + $0x318] sm:$0xff] %v2497
        %2530 = vst [vmem:[#allocation3 + $0x320] sm:$0xff] %v2498
        %2531 = vst [vmem:[#allocation3 + $0x328] sm:$0xff] %v2499
        %2532 = vst [vmem:[#allocation3 + $0x330] sm:$0xff] %v2500
        %2533 = vst [vmem:[#allocation3 + $0x338] sm:$0xff] %v2501
        %2534 = vst [vmem:[#allocation3 + $0x340] sm:$0xff] %v2502
        %2535 = vst [vmem:[#allocation3 + $0x348] sm:$0xff] %v2503
        %2536 = vst [vmem:[#allocation3 + $0x350] sm:$0xff] %v2504
        %2537 = vst [vmem:[#allocation3 + $0x358] sm:$0xff] %v2505
        %2538 = vst [vmem:[#allocation3 + $0x360] sm:$0xff] %v2506
        %2539 = vst [vmem:[#allocation3 + $0x368] sm:$0xff] %v2507
        %2540 = vst [vmem:[#allocation3 + $0x370] sm:$0xff] %v2508
        %2541 = vst [vmem:[#allocation3 + $0x378] sm:$0xff] %v2509
        %v2542 = vld [vmem:[#allocation2 + $0x8] sm:$0xff]
        %v2543 = vld [vmem:[#allocation2 + $0x10] sm:$0xff]
        %v2544 = vld [vmem:[#allocation2 + $0x18] sm:$0xff]
        %v2545 = vld [vmem:[#allocation2 + $0x20] sm:$0xff]
        %v2546 = vld [vmem:[#allocation2 + $0x28] sm:$0xff]
        %v2547 = vld [vmem:[#allocation2 + $0x30] sm:$0xff]
        %v2548 = vld [vmem:[#allocation2 + $0x38] sm:$0xff]
        %v2549 = vld [vmem:[#allocation2 + $0x40] sm:$0xff]
        %v2550 = vld [vmem:[#allocation2 + $0x48] sm:$0xff]
        %v2551 = vld [vmem:[#allocation2 + $0x58] sm:$0xff]
        %v2552 = vld [vmem:[#allocation2 + $0x60] sm:$0xff]
        %v2553 = vld [vmem:[#allocation2 + $0x68] sm:$0xff]
        %v2554 = vld [vmem:[#allocation2 + $0x70] sm:$0xff]
        %v2555 = vld [vmem:[#allocation2 + $0x78] sm:$0xff]
        %v2556 = vld [vmem:[#allocation2 + $0x80] sm:$0xff]
        %v2557 = vld [vmem:[#allocation2 + $0x88] sm:$0xff]
        %v2558 = vld [vmem:[#allocation2 + $0x90] sm:$0xff]
        %v2559 = vld [vmem:[#allocation2 + $0x98] sm:$0xff]
        %2578 = vrot.lane.b32.xlu0 %v2542, 96
        %v2579 = vpop.permute.xlu0 %2578
        %2580 = vrot.lane.b32.xlu0 %v2543, 96
        %v2581 = vpop.permute.xlu0 %2580
        %2582 = vrot.lane.b32.xlu0 %v2544, 96
        %v2583 = vpop.permute.xlu0 %2582
        %2584 = vrot.lane.b32.xlu0 %v2545, 96
        %v2585 = vpop.permute.xlu0 %2584
        %2586 = vrot.lane.b32.xlu0 %v2546, 96
        %v2587 = vpop.permute.xlu0 %2586
        %2588 = vrot.lane.b32.xlu0 %v2547, 96
        %v2589 = vpop.permute.xlu0 %2588
        %2590 = vrot.lane.b32.xlu0 %v2548, 96
        %v2591 = vpop.permute.xlu0 %2590
        %2592 = vrot.lane.b32.xlu0 %v2549, 96
        %v2593 = vpop.permute.xlu0 %2592
        %2594 = vrot.lane.b32.xlu0 %v2550, 96
        %v2595 = vpop.permute.xlu0 %2594
        %2596 = vrot.lane.b32.xlu0 %v2551, 96
        %v2597 = vpop.permute.xlu0 %2596
        %2598 = vrot.lane.b32.xlu0 %v2552, 96
        %v2599 = vpop.permute.xlu0 %2598
        %2600 = vrot.lane.b32.xlu0 %v2553, 96
        %v2601 = vpop.permute.xlu0 %2600
        %2602 = vrot.lane.b32.xlu0 %v2554, 96
        %v2603 = vpop.permute.xlu0 %2602
        %2604 = vrot.lane.b32.xlu0 %v2555, 96
        %v2605 = vpop.permute.xlu0 %2604
        %2606 = vrot.lane.b32.xlu0 %v2556, 96
        %v2607 = vpop.permute.xlu0 %2606
        %2608 = vrot.lane.b32.xlu0 %v2557, 96
        %v2609 = vpop.permute.xlu0 %2608
        %2610 = vrot.lane.b32.xlu0 %v2558, 96
        %v2611 = vpop.permute.xlu0 %2610
        %2612 = vrot.lane.b32.xlu0 %v2559, 96
        %v2613 = vpop.permute.xlu0 %2612
        %vm2614 = vcmask 785408
        %v2615 = vsel %vm2614, %v2579, %v2581
        %v2616 = vsel %vm2614, %v2581, %v2583
        %v2617 = vsel %vm2614, %v2583, %v2585
        %v2618 = vsel %vm2614, %v2585, %v2587
        %v2619 = vsel %vm2614, %v2587, %v2589
        %v2620 = vsel %vm2614, %v2589, %v2591
        %v2621 = vsel %vm2614, %v2591, %v2593
        %v2622 = vsel %vm2614, %v2593, %v2595
        %v2623 = vsel %vm2614, %v2597, %v2599
        %v2624 = vsel %vm2614, %v2599, %v2601
        %v2625 = vsel %vm2614, %v2601, %v2603
        %v2626 = vsel %vm2614, %v2603, %v2605
        %v2627 = vsel %vm2614, %v2605, %v2607
        %v2628 = vsel %vm2614, %v2607, %v2609
        %v2629 = vsel %vm2614, %v2609, %v2611
        %v2630 = vsel %vm2614, %v2611, %v2613
        %2647 = vst [vmem:[#allocation3 + $0x380] sm:$0xff] %v2615
        %2648 = vst [vmem:[#allocation3 + $0x388] sm:$0xff] %v2616
        %2649 = vst [vmem:[#allocation3 + $0x390] sm:$0xff] %v2617
        %2650 = vst [vmem:[#allocation3 + $0x398] sm:$0xff] %v2618
        %2651 = vst [vmem:[#allocation3 + $0x3a0] sm:$0xff] %v2619
        %2652 = vst [vmem:[#allocation3 + $0x3a8] sm:$0xff] %v2620
        %2653 = vst [vmem:[#allocation3 + $0x3b0] sm:$0xff] %v2621
        %2654 = vst [vmem:[#allocation3 + $0x3b8] sm:$0xff] %v2622
        %2655 = vst [vmem:[#allocation3 + $0x3c0] sm:$0xff] %v2623
        %2656 = vst [vmem:[#allocation3 + $0x3c8] sm:$0xff] %v2624
        %2657 = vst [vmem:[#allocation3 + $0x3d0] sm:$0xff] %v2625
        %2658 = vst [vmem:[#allocation3 + $0x3d8] sm:$0xff] %v2626
        %2659 = vst [vmem:[#allocation3 + $0x3e0] sm:$0xff] %v2627
        %2660 = vst [vmem:[#allocation3 + $0x3e8] sm:$0xff] %v2628
        %2661 = vst [vmem:[#allocation3 + $0x3f0] sm:$0xff] %v2629
        %2662 = vst [vmem:[#allocation3 + $0x3f8] sm:$0xff] %v2630
        %v2663 = vld [vmem:[#allocation2 + $0x8] sm:$0xff]
        %v2664 = vld [vmem:[#allocation2 + $0x10] sm:$0xff]
        %v2665 = vld [vmem:[#allocation2 + $0x18] sm:$0xff]
        %v2666 = vld [vmem:[#allocation2 + $0x20] sm:$0xff]
        %v2667 = vld [vmem:[#allocation2 + $0x28] sm:$0xff]
        %v2668 = vld [vmem:[#allocation2 + $0x30] sm:$0xff]
        %v2669 = vld [vmem:[#allocation2 + $0x38] sm:$0xff]
        %v2670 = vld [vmem:[#allocation2 + $0x40] sm:$0xff]
        %v2671 = vld [vmem:[#allocation2 + $0x48] sm:$0xff]
        %v2672 = vld [vmem:[#allocation2 + $0x58] sm:$0xff]
        %v2673 = vld [vmem:[#allocation2 + $0x60] sm:$0xff]
        %v2674 = vld [vmem:[#allocation2 + $0x68] sm:$0xff]
        %v2675 = vld [vmem:[#allocation2 + $0x70] sm:$0xff]
        %v2676 = vld [vmem:[#allocation2 + $0x78] sm:$0xff]
        %v2677 = vld [vmem:[#allocation2 + $0x80] sm:$0xff]
        %v2678 = vld [vmem:[#allocation2 + $0x88] sm:$0xff]
        %v2679 = vld [vmem:[#allocation2 + $0x90] sm:$0xff]
        %v2680 = vld [vmem:[#allocation2 + $0x98] sm:$0xff]
        %2681 = vrot.lane.b32.xlu0 %v1786, 33
        %v2682 = vpop.permute.xlu0 %2681
        %2683 = vrot.lane.b32.xlu0 %v1793, 33
        %v2684 = vpop.permute.xlu0 %2683
        %2685 = vrot.lane.b32.xlu0 %v1800, 33
        %v2686 = vpop.permute.xlu0 %2685
        %2687 = vrot.lane.b32.xlu0 %v1807, 33
        %v2688 = vpop.permute.xlu0 %2687
        %2689 = vrot.lane.b32.xlu0 %v1814, 33
        %v2690 = vpop.permute.xlu0 %2689
        %2691 = vrot.lane.b32.xlu0 %v1821, 33
        %v2692 = vpop.permute.xlu0 %2691
        %2693 = vrot.lane.b32.xlu0 %v1828, 33
        %v2694 = vpop.permute.xlu0 %2693
        %2695 = vrot.lane.b32.xlu0 %v1835, 33
        %v2696 = vpop.permute.xlu0 %2695
        %v2697 = vsel %vm1592, %v2682, %v2684
        %v2698 = vsel %vm1592, %v2684, %v2686
        %v2699 = vsel %vm1592, %v2686, %v2688
        %v2700 = vsel %vm1592, %v2688, %v2690
        %v2701 = vsel %vm1592, %v2690, %v2692
        %v2702 = vsel %vm1592, %v2692, %v2694
        %v2703 = vsel %vm1592, %v2694, %v2696
        %v2713 = vmul.bf16 %v2663, %v2682
        %v2714 = vmul.bf16 %v2664, %v2697
        %v2715 = vmul.bf16 %v2665, %v2698
        %v2716 = vmul.bf16 %v2666, %v2699
        %v2717 = vmul.bf16 %v2667, %v2700
        %v2718 = vmul.bf16 %v2668, %v2701
        %v2719 = vmul.bf16 %v2669, %v2702
        %v2720 = vmul.bf16 %v2670, %v2703
        %v2721 = vmul.bf16 %v2671, %v2696
        %v2722 = vmul.bf16 %v2672, %v2682
        %v2723 = vmul.bf16 %v2673, %v2697
        %v2724 = vmul.bf16 %v2674, %v2698
        %v2725 = vmul.bf16 %v2675, %v2699
        %v2726 = vmul.bf16 %v2676, %v2700
        %v2727 = vmul.bf16 %v2677, %v2701
        %v2728 = vmul.bf16 %v2678, %v2702
        %v2729 = vmul.bf16 %v2679, %v2703
        %v2730 = vmul.bf16 %v2680, %v2696
        %2749 = vrot.lane.b32.xlu0 %v2713, 95
        %v2750 = vpop.permute.xlu0 %2749
        %2751 = vrot.lane.b32.xlu0 %v2714, 95
        %v2752 = vpop.permute.xlu0 %2751
        %2753 = vrot.lane.b32.xlu0 %v2715, 95
        %v2754 = vpop.permute.xlu0 %2753
        %2755 = vrot.lane.b32.xlu0 %v2716, 95
        %v2756 = vpop.permute.xlu0 %2755
        %2757 = vrot.lane.b32.xlu0 %v2717, 95
        %v2758 = vpop.permute.xlu0 %2757
        %2759 = vrot.lane.b32.xlu0 %v2718, 95
        %v2760 = vpop.permute.xlu0 %2759
        %2761 = vrot.lane.b32.xlu0 %v2719, 95
        %v2762 = vpop.permute.xlu0 %2761
        %2763 = vrot.lane.b32.xlu0 %v2720, 95
        %v2764 = vpop.permute.xlu0 %2763
        %2765 = vrot.lane.b32.xlu0 %v2721, 95
        %v2766 = vpop.permute.xlu0 %2765
        %2767 = vrot.lane.b32.xlu0 %v2722, 95
        %v2768 = vpop.permute.xlu0 %2767
        %2769 = vrot.lane.b32.xlu0 %v2723, 95
        %v2770 = vpop.permute.xlu0 %2769
        %2771 = vrot.lane.b32.xlu0 %v2724, 95
        %v2772 = vpop.permute.xlu0 %2771
        %2773 = vrot.lane.b32.xlu0 %v2725, 95
        %v2774 = vpop.permute.xlu0 %2773
        %2775 = vrot.lane.b32.xlu0 %v2726, 95
        %v2776 = vpop.permute.xlu0 %2775
        %2777 = vrot.lane.b32.xlu0 %v2727, 95
        %v2778 = vpop.permute.xlu0 %2777
        %2779 = vrot.lane.b32.xlu0 %v2728, 95
        %v2780 = vpop.permute.xlu0 %2779
        %2781 = vrot.lane.b32.xlu0 %v2729, 95
        %v2782 = vpop.permute.xlu0 %2781
        %2783 = vrot.lane.b32.xlu0 %v2730, 95
        %v2784 = vpop.permute.xlu0 %2783
        %v2785 = vsel %vm1503, %v2750, %v2752
        %v2786 = vsel %vm1503, %v2752, %v2754
        %v2787 = vsel %vm1503, %v2754, %v2756
        %v2788 = vsel %vm1503, %v2756, %v2758
        %v2789 = vsel %vm1503, %v2758, %v2760
        %v2790 = vsel %vm1503, %v2760, %v2762
        %v2791 = vsel %vm1503, %v2762, %v2764
        %v2792 = vsel %vm1503, %v2764, %v2766
        %v2793 = vsel %vm1503, %v2768, %v2770
        %v2794 = vsel %vm1503, %v2770, %v2772
        %v2795 = vsel %vm1503, %v2772, %v2774
        %v2796 = vsel %vm1503, %v2774, %v2776
        %v2797 = vsel %vm1503, %v2776, %v2778
        %v2798 = vsel %vm1503, %v2778, %v2780
        %v2799 = vsel %vm1503, %v2780, %v2782
        %v2800 = vsel %vm1503, %v2782, %v2784
        %2817 = vst [vmem:[#allocation3 + $0x400] sm:$0xff] %v2785
        %2818 = vst [vmem:[#allocation3 + $0x408] sm:$0xff] %v2786
        %2819 = vst [vmem:[#allocation3 + $0x410] sm:$0xff] %v2787
        %2820 = vst [vmem:[#allocation3 + $0x418] sm:$0xff] %v2788
        %2821 = vst [vmem:[#allocation3 + $0x420] sm:$0xff] %v2789
        %2822 = vst [vmem:[#allocation3 + $0x428] sm:$0xff] %v2790
        %2823 = vst [vmem:[#allocation3 + $0x430] sm:$0xff] %v2791
        %2824 = vst [vmem:[#allocation3 + $0x438] sm:$0xff] %v2792
        %2825 = vst [vmem:[#allocation3 + $0x440] sm:$0xff] %v2793
        %2826 = vst [vmem:[#allocation3 + $0x448] sm:$0xff] %v2794
        %2827 = vst [vmem:[#allocation3 + $0x450] sm:$0xff] %v2795
        %2828 = vst [vmem:[#allocation3 + $0x458] sm:$0xff] %v2796
        %2829 = vst [vmem:[#allocation3 + $0x460] sm:$0xff] %v2797
        %2830 = vst [vmem:[#allocation3 + $0x468] sm:$0xff] %v2798
        %2831 = vst [vmem:[#allocation3 + $0x470] sm:$0xff] %v2799
        %2832 = vst [vmem:[#allocation3 + $0x478] sm:$0xff] %v2800
        %v2833 = vld [vmem:[#allocation7] sm:$0xff]
        %v2834 = vld [vmem:[#allocation7 + $0x8] sm:$0xf]
        %v2835 = vld [vmem:[#allocation7 + $0xc] sm:$0xff]
        %v2836 = vld [vmem:[#allocation7 + $0x14] sm:$0xf]
        %v2837 = vld [vmem:[#allocation7 + $0x18] sm:$0xff]
        %v2838 = vld [vmem:[#allocation7 + $0x20] sm:$0xf]
        %v2839 = vld [vmem:[#allocation7 + $0x24] sm:$0xff]
        %v2840 = vld [vmem:[#allocation7 + $0x2c] sm:$0xf]
        %v2841 = vld [vmem:[#allocation3] sm:$0xff]
        %v2842 = vld [vmem:[#allocation3 + $0x8] sm:$0xff]
        %v2843 = vld [vmem:[#allocation3 + $0x10] sm:$0xff]
        %v2844 = vld [vmem:[#allocation3 + $0x18] sm:$0xff]
        %v2845 = vld [vmem:[#allocation3 + $0x20] sm:$0xff]
        %v2846 = vld [vmem:[#allocation3 + $0x28] sm:$0xff]
        %v2847 = vld [vmem:[#allocation3 + $0x30] sm:$0xff]
        %v2848 = vld [vmem:[#allocation3 + $0x38] sm:$0xff]
        %v2849 = vld [vmem:[#allocation3 + $0x40] sm:$0xff]
        %v2850 = vld [vmem:[#allocation3 + $0x48] sm:$0xff]
        %v2851 = vld [vmem:[#allocation3 + $0x50] sm:$0xff]
        %v2852 = vld [vmem:[#allocation3 + $0x58] sm:$0xff]
        %v2853 = vld [vmem:[#allocation3 + $0x60] sm:$0xff]
        %v2854 = vld [vmem:[#allocation3 + $0x68] sm:$0xff]
        %v2855 = vld [vmem:[#allocation3 + $0x70] sm:$0xff]
        %v2856 = vld [vmem:[#allocation3 + $0x78] sm:$0xff]
        %v2857 = vld [vmem:[#allocation3 + $0x80] sm:$0xff]
        %v2858 = vld [vmem:[#allocation3 + $0x88] sm:$0xff]
        %v2859 = vld [vmem:[#allocation3 + $0x90] sm:$0xff]
        %v2860 = vld [vmem:[#allocation3 + $0x98] sm:$0xff]
        %v2861 = vld [vmem:[#allocation3 + $0xa0] sm:$0xff]
        %v2862 = vld [vmem:[#allocation3 + $0xa8] sm:$0xff]
        %v2863 = vld [vmem:[#allocation3 + $0xb0] sm:$0xff]
        %v2864 = vld [vmem:[#allocation3 + $0xb8] sm:$0xff]
        %v2865 = vld [vmem:[#allocation3 + $0xc0] sm:$0xff]
        %v2866 = vld [vmem:[#allocation3 + $0xc8] sm:$0xff]
        %v2867 = vld [vmem:[#allocation3 + $0xd0] sm:$0xff]
        %v2868 = vld [vmem:[#allocation3 + $0xd8] sm:$0xff]
        %v2869 = vld [vmem:[#allocation3 + $0xe0] sm:$0xff]
        %v2870 = vld [vmem:[#allocation3 + $0xe8] sm:$0xff]
        %v2871 = vld [vmem:[#allocation3 + $0xf0] sm:$0xff]
        %v2872 = vld [vmem:[#allocation3 + $0xf8] sm:$0xff]
        %v2873 = vld [vmem:[#allocation3 + $0x100] sm:$0xff]
        %v2874 = vld [vmem:[#allocation3 + $0x108] sm:$0xff]
        %v2875 = vld [vmem:[#allocation3 + $0x110] sm:$0xff]
        %v2876 = vld [vmem:[#allocation3 + $0x118] sm:$0xff]
        %v2877 = vld [vmem:[#allocation3 + $0x120] sm:$0xff]
        %v2878 = vld [vmem:[#allocation3 + $0x128] sm:$0xff]
        %v2879 = vld [vmem:[#allocation3 + $0x130] sm:$0xff]
        %v2880 = vld [vmem:[#allocation3 + $0x138] sm:$0xff]
        %v2881 = vld [vmem:[#allocation3 + $0x140] sm:$0xff]
        %v2882 = vld [vmem:[#allocation3 + $0x148] sm:$0xff]
        %v2883 = vld [vmem:[#allocation3 + $0x150] sm:$0xff]
        %v2884 = vld [vmem:[#allocation3 + $0x158] sm:$0xff]
        %v2885 = vld [vmem:[#allocation3 + $0x160] sm:$0xff]
        %v2886 = vld [vmem:[#allocation3 + $0x168] sm:$0xff]
        %v2887 = vld [vmem:[#allocation3 + $0x170] sm:$0xff]
        %v2888 = vld [vmem:[#allocation3 + $0x178] sm:$0xff]
        %v2889 = vld [vmem:[#allocation3 + $0x180] sm:$0xff]
        %v2890 = vld [vmem:[#allocation3 + $0x188] sm:$0xff]
        %v2891 = vld [vmem:[#allocation3 + $0x190] sm:$0xff]
        %v2892 = vld [vmem:[#allocation3 + $0x198] sm:$0xff]
        %v2893 = vld [vmem:[#allocation3 + $0x1a0] sm:$0xff]
        %v2894 = vld [vmem:[#allocation3 + $0x1a8] sm:$0xff]
        %v2895 = vld [vmem:[#allocation3 + $0x1b0] sm:$0xff]
        %v2896 = vld [vmem:[#allocation3 + $0x1b8] sm:$0xff]
        %v2897 = vld [vmem:[#allocation3 + $0x1c0] sm:$0xff]
        %v2898 = vld [vmem:[#allocation3 + $0x1c8] sm:$0xff]
        %v2899 = vld [vmem:[#allocation3 + $0x1d0] sm:$0xff]
        %v2900 = vld [vmem:[#allocation3 + $0x1d8] sm:$0xff]
        %v2901 = vld [vmem:[#allocation3 + $0x1e0] sm:$0xff]
        %v2902 = vld [vmem:[#allocation3 + $0x1e8] sm:$0xff]
        %v2903 = vld [vmem:[#allocation3 + $0x1f0] sm:$0xff]
        %v2904 = vld [vmem:[#allocation3 + $0x1f8] sm:$0xff]
        %v2905 = vld [vmem:[#allocation3 + $0x200] sm:$0xff]
        %v2906 = vld [vmem:[#allocation3 + $0x208] sm:$0xff]
        %v2907 = vld [vmem:[#allocation3 + $0x210] sm:$0xff]
        %v2908 = vld [vmem:[#allocation3 + $0x218] sm:$0xff]
        %v2909 = vld [vmem:[#allocation3 + $0x220] sm:$0xff]
        %v2910 = vld [vmem:[#allocation3 + $0x228] sm:$0xff]
        %v2911 = vld [vmem:[#allocation3 + $0x230] sm:$0xff]
        %v2912 = vld [vmem:[#allocation3 + $0x238] sm:$0xff]
        %v2913 = vld [vmem:[#allocation3 + $0x240] sm:$0xff]
        %v2914 = vld [vmem:[#allocation3 + $0x248] sm:$0xff]
        %v2915 = vld [vmem:[#allocation3 + $0x250] sm:$0xff]
        %v2916 = vld [vmem:[#allocation3 + $0x258] sm:$0xff]
        %v2917 = vld [vmem:[#allocation3 + $0x260] sm:$0xff]
        %v2918 = vld [vmem:[#allocation3 + $0x268] sm:$0xff]
        %v2919 = vld [vmem:[#allocation3 + $0x270] sm:$0xff]
        %v2920 = vld [vmem:[#allocation3 + $0x278] sm:$0xff]
        %v2921 = vld [vmem:[#allocation3 + $0x280] sm:$0xff]
        %v2922 = vld [vmem:[#allocation3 + $0x288] sm:$0xff]
        %v2923 = vld [vmem:[#allocation3 + $0x290] sm:$0xff]
        %v2924 = vld [vmem:[#allocation3 + $0x298] sm:$0xff]
        %v2925 = vld [vmem:[#allocation3 + $0x2a0] sm:$0xff]
        %v2926 = vld [vmem:[#allocation3 + $0x2a8] sm:$0xff]
        %v2927 = vld [vmem:[#allocation3 + $0x2b0] sm:$0xff]
        %v2928 = vld [vmem:[#allocation3 + $0x2b8] sm:$0xff]
        %v2929 = vld [vmem:[#allocation3 + $0x2c0] sm:$0xff]
        %v2930 = vld [vmem:[#allocation3 + $0x2c8] sm:$0xff]
        %v2931 = vld [vmem:[#allocation3 + $0x2d0] sm:$0xff]
        %v2932 = vld [vmem:[#allocation3 + $0x2d8] sm:$0xff]
        %v2933 = vld [vmem:[#allocation3 + $0x2e0] sm:$0xff]
        %v2934 = vld [vmem:[#allocation3 + $0x2e8] sm:$0xff]
        %v2935 = vld [vmem:[#allocation3 + $0x2f0] sm:$0xff]
        %v2936 = vld [vmem:[#allocation3 + $0x2f8] sm:$0xff]
        %v2937 = vld [vmem:[#allocation3 + $0x300] sm:$0xff]
        %v2938 = vld [vmem:[#allocation3 + $0x308] sm:$0xff]
        %v2939 = vld [vmem:[#allocation3 + $0x310] sm:$0xff]
        %v2940 = vld [vmem:[#allocation3 + $0x318] sm:$0xff]
        %v2941 = vld [vmem:[#allocation3 + $0x320] sm:$0xff]
        %v2942 = vld [vmem:[#allocation3 + $0x328] sm:$0xff]
        %v2943 = vld [vmem:[#allocation3 + $0x330] sm:$0xff]
        %v2944 = vld [vmem:[#allocation3 + $0x338] sm:$0xff]
        %v2945 = vld [vmem:[#allocation3 + $0x340] sm:$0xff]
        %v2946 = vld [vmem:[#allocation3 + $0x348] sm:$0xff]
        %v2947 = vld [vmem:[#allocation3 + $0x350] sm:$0xff]
        %v2948 = vld [vmem:[#allocation3 + $0x358] sm:$0xff]
        %v2949 = vld [vmem:[#allocation3 + $0x360] sm:$0xff]
        %v2950 = vld [vmem:[#allocation3 + $0x368] sm:$0xff]
        %v2951 = vld [vmem:[#allocation3 + $0x370] sm:$0xff]
        %v2952 = vld [vmem:[#allocation3 + $0x378] sm:$0xff]
        %v2953 = vld [vmem:[#allocation3 + $0x380] sm:$0xff]
        %v2954 = vld [vmem:[#allocation3 + $0x388] sm:$0xff]
        %v2955 = vld [vmem:[#allocation3 + $0x390] sm:$0xff]
        %v2956 = vld [vmem:[#allocation3 + $0x398] sm:$0xff]
        %v2957 = vld [vmem:[#allocation3 + $0x3a0] sm:$0xff]
        %v2958 = vld [vmem:[#allocation3 + $0x3a8] sm:$0xff]
        %v2959 = vld [vmem:[#allocation3 + $0x3b0] sm:$0xff]
        %v2960 = vld [vmem:[#allocation3 + $0x3b8] sm:$0xff]
        %v2961 = vld [vmem:[#allocation3 + $0x3c0] sm:$0xff]
        %v2962 = vld [vmem:[#allocation3 + $0x3c8] sm:$0xff]
        %v2963 = vld [vmem:[#allocation3 + $0x3d0] sm:$0xff]
        %v2964 = vld [vmem:[#allocation3 + $0x3d8] sm:$0xff]
        %v2965 = vld [vmem:[#allocation3 + $0x3e0] sm:$0xff]
        %v2966 = vld [vmem:[#allocation3 + $0x3e8] sm:$0xff]
        %v2967 = vld [vmem:[#allocation3 + $0x3f0] sm:$0xff]
        %v2968 = vld [vmem:[#allocation3 + $0x3f8] sm:$0xff]
        %v2969 = vld [vmem:[#allocation3 + $0x400] sm:$0xff]
        %v2970 = vld [vmem:[#allocation3 + $0x408] sm:$0xff]
        %v2971 = vld [vmem:[#allocation3 + $0x410] sm:$0xff]
        %v2972 = vld [vmem:[#allocation3 + $0x418] sm:$0xff]
        %v2973 = vld [vmem:[#allocation3 + $0x420] sm:$0xff]
        %v2974 = vld [vmem:[#allocation3 + $0x428] sm:$0xff]
        %v2975 = vld [vmem:[#allocation3 + $0x430] sm:$0xff]
        %v2976 = vld [vmem:[#allocation3 + $0x438] sm:$0xff]
        %v2977 = vld [vmem:[#allocation3 + $0x440] sm:$0xff]
        %v2978 = vld [vmem:[#allocation3 + $0x448] sm:$0xff]
        %v2979 = vld [vmem:[#allocation3 + $0x450] sm:$0xff]
        %v2980 = vld [vmem:[#allocation3 + $0x458] sm:$0xff]
        %v2981 = vld [vmem:[#allocation3 + $0x460] sm:$0xff]
        %v2982 = vld [vmem:[#allocation3 + $0x468] sm:$0xff]
        %v2983 = vld [vmem:[#allocation3 + $0x470] sm:$0xff]
        %v2984 = vld [vmem:[#allocation3 + $0x478] sm:$0xff]
        %v2985 = vld [vmem:[%s2] sm:$0xff]
        %v2986 = vld [vmem:[%s2 + $0x8] sm:$0xff]
        %v2987 = vld [vmem:[%s2 + $0x10] sm:$0xff]
        %v2988 = vld [vmem:[%s2 + $0x18] sm:$0xff]
        %2990 = vset.pattern.permute.xlu0 0
        %2991 = vperm.xlu0 %2990, %v2985
        %v2992 = vpop.permute.xlu0 %2991
        %2995 = vset.pattern.permute.xlu0 0
        %2996 = vperm.xlu0 %2995, %v2986
        %v2997 = vpop.permute.xlu0 %2996
        %3000 = vset.pattern.permute.xlu0 0
        %3001 = vperm.xlu0 %3000, %v2987
        %v3002 = vpop.permute.xlu0 %3001
        %3005 = vset.pattern.permute.xlu0 0
        %3006 = vperm.xlu0 %3005, %v2988
        %v3007 = vpop.permute.xlu0 %3006
        %v3017 = vunpack.c.l.b16 %v2833
        %v3018 = vunpack.c.h.b16 %v2833
        %v3019 = vunpack.c.l.b16 %v2834
        %v3020 = vunpack.c.l.b16 %v2835
        %v3021 = vunpack.c.h.b16 %v2835
        %v3022 = vunpack.c.l.b16 %v2836
        %v3023 = vunpack.c.l.b16 %v2837
        %v3024 = vunpack.c.h.b16 %v2837
        %v3025 = vunpack.c.l.b16 %v2838
        %v3026 = vunpack.c.l.b16 %v2839
        %v3027 = vunpack.c.h.b16 %v2839
        %v3028 = vunpack.c.l.b16 %v2840
        %v3029 = vpack.c.b16 %v3020, %v3017
        %v3030 = vpack.c.b16 %v3021, %v3018
        %v3031 = vpack.c.b16 %v3022, %v3019
        %v3032 = vpack.c.b16 %v3026, %v3023
        %v3033 = vpack.c.b16 %v3027, %v3024
        %v3034 = vpack.c.b16 %v3028, %v3025
        %vm3039 = vcmask 261120
        %v3041 = vsel %vm3039, %v3031, 0
        %v3044 = vsel %vm3039, %v3034, 0
        %3046 = vmatprep.subr.bf16.mxu0 %v2842
        %3047 = vmatpush1.bf16.msra.mxu0 %v2841
        %3048 = vmatprep.subr.bf16.mxu0 %v2850
        %3049 = vmatpush1.bf16.msra.mxu0 %v2849
        %3050 = vmatprep.subr.bf16.mxu0 %v2858
        %3051 = vmatpush1.bf16.msra.mxu0 %v2857
        %3052 = vmatprep.subr.bf16.mxu0 %v2866
        %3053 = vmatpush1.bf16.msra.mxu0 %v2865
        %3054 = vmatprep.subr.bf16.mxu0 %v2874
        %3055 = vmatpush1.bf16.msra.mxu0 %v2873
        %3056 = vmatprep.subr.bf16.mxu0 %v2882
        %3057 = vmatpush1.bf16.msra.mxu0 %v2881
        %3058 = vmatprep.subr.bf16.mxu0 %v2890
        %3059 = vmatpush1.bf16.msra.mxu0 %v2889
        %3060 = vmatprep.subr.bf16.mxu0 %v2898
        %3061 = vmatpush1.bf16.msra.mxu0 %v2897
        %3062 = vmatprep.subr.bf16.mxu0 %v2906
        %3063 = vmatpush1.bf16.msra.mxu0 %v2905
        %3064 = vmatprep.subr.bf16.mxu0 %v2914
        %3065 = vmatpush1.bf16.msra.mxu0 %v2913
        %3066 = vmatprep.subr.bf16.mxu0 %v2922
        %3067 = vmatpush1.bf16.msra.mxu0 %v2921
        %3068 = vmatprep.subr.bf16.mxu0 %v2930
        %3069 = vmatpush1.bf16.msra.mxu0 %v2929
        %3070 = vmatprep.subr.bf16.mxu0 %v2938
        %3071 = vmatpush1.bf16.msra.mxu0 %v2937
        %3072 = vmatprep.subr.bf16.mxu0 %v2946
        %3073 = vmatpush1.bf16.msra.mxu0 %v2945
        %3074 = vmatprep.subr.bf16.mxu0 %v2954
        %3075 = vmatpush1.bf16.msra.mxu0 %v2953
        %3076 = vmatprep.subr.bf16.mxu0 %v2962
        %3077 = vmatpush1.bf16.msra.mxu0 %v2961
        %3078 = vmatprep.mubr.bf16.mxu0 %v3030
        %3079 = vmatmul.mubr.bf16.gmra.mrb[0].mxu0 %v3029
        %v3080 = vpop.f32.mrb[0].mxu0
        %v3081 = vadd.f32 %v2992, %v3080
        %v3082 = vpop.f32.mrb[0].mxu0
        %v3083 = vadd.f32 %v2992, %v3082
        %v3084 = vpop.f32.mrb[0].mxu0
        %v3085 = vadd.f32 %v2997, %v3084
        %v3086 = vpop.f32.mrb[0].mxu0
        %v3087 = vadd.f32 %v2997, %v3086
        %3088 = vmatprep.mubr.bf16.mxu0 %v3033
        %3089 = vmatmul.mubr.bf16.gmra.mrb[0].mxu0 %v3032
        %v3090 = vpop.f32.mrb[0].mxu0
        %v3091 = vadd.f32 %v3002, %v3090
        %v3092 = vpop.f32.mrb[0].mxu0
        %v3093 = vadd.f32 %v3002, %v3092
        %v3094 = vpop.f32.mrb[0].mxu0
        %v3095 = vadd.f32 %v3007, %v3094
        %v3096 = vpop.f32.mrb[0].mxu0
        %v3097 = vadd.f32 %v3007, %v3096
        %3098 = vdwg.mxu0
        %3099 = vmatprep.subr.bf16.mxu0 %v2970
        %3100 = vmatpush1.bf16.msra.mxu0 %v2969
        %3101 = vmatprep.subr.bf16.mxu0 %v2978
        %3102 = vmatpush1.bf16.msra.mxu0 %v2977
        %3103 = vmatprep.subr.bf16.mxu0 0
        %3104 = vmatpush1.bf16.msra.mxu0 0
        %3105 = vmatprep.subr.bf16.mxu0 0
        %3106 = vmatpush1.bf16.msra.mxu0 0
        %3107 = vmatprep.subr.bf16.mxu0 0
        %3108 = vmatpush1.bf16.msra.mxu0 0
        %3109 = vmatprep.subr.bf16.mxu0 0
        %3110 = vmatpush1.bf16.msra.mxu0 0
        %3111 = vmatprep.subr.bf16.mxu0 0
        %3112 = vmatpush1.bf16.msra.mxu0 0
        %3113 = vmatprep.subr.bf16.mxu0 0
        %3114 = vmatpush1.bf16.msra.mxu0 0
        %3115 = vmatprep.subr.bf16.mxu0 0
        %3116 = vmatpush1.bf16.msra.mxu0 0
        %3117 = vmatprep.subr.bf16.mxu0 0
        %3118 = vmatpush1.bf16.msra.mxu0 0
        %3119 = vmatprep.subr.bf16.mxu0 0
        %3120 = vmatpush1.bf16.msra.mxu0 0
        %3121 = vmatprep.subr.bf16.mxu0 0
        %3122 = vmatpush1.bf16.msra.mxu0 0
        %3123 = vmatprep.subr.bf16.mxu0 0
        %3124 = vmatpush1.bf16.msra.mxu0 0
        %3125 = vmatprep.subr.bf16.mxu0 0
        %3126 = vmatpush1.bf16.msra.mxu0 0
        %3127 = vmatprep.subr.bf16.mxu0 0
        %3128 = vmatpush1.bf16.msra.mxu0 0
        %3129 = vmatprep.subr.bf16.mxu0 0
        %3130 = vmatpush1.bf16.msra.mxu0 0
        %3131 = vmatprep.mubr.bf16.mxu0 0
        %3132 = vmatmul.mubr.bf16.gmra.mrb[0].mxu0 %v3041
        %v3133 = vpop.f32.mrb[0].mxu0
        %v3134 = vadd.f32 %v3081, %v3133
        %v3135 = vpop.f32.mrb[0].mxu0
        %v3136 = vadd.f32 %v3083, %v3135
        %v3137 = vpop.f32.mrb[0].mxu0
        %v3138 = vadd.f32 %v3085, %v3137
        %v3139 = vpop.f32.mrb[0].mxu0
        %v3140 = vadd.f32 %v3087, %v3139
        %3141 = vmatprep.mubr.bf16.mxu0 0
        %3142 = vmatmul.mubr.bf16.gmra.mrb[0].mxu0 %v3044
        %v3143 = vpop.f32.mrb[0].mxu0
        %v3144 = vadd.f32 %v3091, %v3143
        %v3145 = vpop.f32.mrb[0].mxu0
        %v3146 = vadd.f32 %v3093, %v3145
        %v3147 = vpop.f32.mrb[0].mxu0
        %v3148 = vadd.f32 %v3095, %v3147
        %v3149 = vpop.f32.mrb[0].mxu0
        %v3150 = vadd.f32 %v3097, %v3149
        %3151 = vdwg.mxu0
        %3152 = vmatprep.subr.bf16.mxu0 %v2844
        %3153 = vmatpush1.bf16.msra.mxu0 %v2843
        %3154 = vmatprep.subr.bf16.mxu0 %v2852
        %3155 = vmatpush1.bf16.msra.mxu0 %v2851
        %3156 = vmatprep.subr.bf16.mxu0 %v2860
        %3157 = vmatpush1.bf16.msra.mxu0 %v2859
        %3158 = vmatprep.subr.bf16.mxu0 %v2868
        %3159 = vmatpush1.bf16.msra.mxu0 %v2867
        %3160 = vmatprep.subr.bf16.mxu0 %v2876
        %3161 = vmatpush1.bf16.msra.mxu0 %v2875
        %3162 = vmatprep.subr.bf16.mxu0 %v2884
        %3163 = vmatpush1.bf16.msra.mxu0 %v2883
        %3164 = vmatprep.subr.bf16.mxu0 %v2892
        %3165 = vmatpush1.bf16.msra.mxu0 %v2891
        %3166 = vmatprep.subr.bf16.mxu0 %v2900
        %3167 = vmatpush1.bf16.msra.mxu0 %v2899
        %3168 = vmatprep.subr.bf16.mxu0 %v2908
        %3169 = vmatpush1.bf16.msra.mxu0 %v2907
        %3170 = vmatprep.subr.bf16.mxu0 %v2916
        %3171 = vmatpush1.bf16.msra.mxu0 %v2915
        %3172 = vmatprep.subr.bf16.mxu0 %v2924
        %3173 = vmatpush1.bf16.msra.mxu0 %v2923
        %3174 = vmatprep.subr.bf16.mxu0 %v2932
        %3175 = vmatpush1.bf16.msra.mxu0 %v2931
        %3176 = vmatprep.subr.bf16.mxu0 %v2940
        %3177 = vmatpush1.bf16.msra.mxu0 %v2939
        %3178 = vmatprep.subr.bf16.mxu0 %v2948
        %3179 = vmatpush1.bf16.msra.mxu0 %v2947
        %3180 = vmatprep.subr.bf16.mxu0 %v2956
        %3181 = vmatpush1.bf16.msra.mxu0 %v2955
        %3182 = vmatprep.subr.bf16.mxu0 %v2964
        %3183 = vmatpush1.bf16.msra.mxu0 %v2963
        %3184 = vmatprep.mubr.bf16.mxu0 %v3030
        %3185 = vmatmul.mubr.bf16.gmra.mrb[0].mxu0 %v3029
        %v3186 = vpop.f32.mrb[0].mxu0
        %v3187 = vadd.f32 %v2992, %v3186
        %v3188 = vpop.f32.mrb[0].mxu0
        %v3189 = vadd.f32 %v2992, %v3188
        %v3190 = vpop.f32.mrb[0].mxu0
        %v3191 = vadd.f32 %v2997, %v3190
        %v3192 = vpop.f32.mrb[0].mxu0
        %v3193 = vadd.f32 %v2997, %v3192
        %3194 = vmatprep.mubr.bf16.mxu0 %v3033
        %3195 = vmatmul.mubr.bf16.gmra.mrb[0].mxu0 %v3032
        %v3196 = vpop.f32.mrb[0].mxu0
        %v3197 = vadd.f32 %v3002, %v3196
        %v3198 = vpop.f32.mrb[0].mxu0
        %v3199 = vadd.f32 %v3002, %v3198
        %v3200 = vpop.f32.mrb[0].mxu0
        %v3201 = vadd.f32 %v3007, %v3200
        %v3202 = vpop.f32.mrb[0].mxu0
        %v3203 = vadd.f32 %v3007, %v3202
        %3204 = vdwg.mxu0
        %3205 = vmatprep.subr.bf16.mxu0 %v2972
        %3206 = vmatpush1.bf16.msra.mxu0 %v2971
        %3207 = vmatprep.subr.bf16.mxu0 %v2980
        %3208 = vmatpush1.bf16.msra.mxu0 %v2979
        %3209 = vmatprep.subr.bf16.mxu0 0
        %3210 = vmatpush1.bf16.msra.mxu0 0
        %3211 = vmatprep.subr.bf16.mxu0 0
        %3212 = vmatpush1.bf16.msra.mxu0 0
        %3213 = vmatprep.subr.bf16.mxu0 0
        %3214 = vmatpush1.bf16.msra.mxu0 0
        %3215 = vmatprep.subr.bf16.mxu0 0
        %3216 = vmatpush1.bf16.msra.mxu0 0
        %3217 = vmatprep.subr.bf16.mxu0 0
        %3218 = vmatpush1.bf16.msra.mxu0 0
        %3219 = vmatprep.subr.bf16.mxu0 0
        %3220 = vmatpush1.bf16.msra.mxu0 0
        %3221 = vmatprep.subr.bf16.mxu0 0
        %3222 = vmatpush1.bf16.msra.mxu0 0
        %3223 = vmatprep.subr.bf16.mxu0 0
        %3224 = vmatpush1.bf16.msra.mxu0 0
        %3225 = vmatprep.subr.bf16.mxu0 0
        %3226 = vmatpush1.bf16.msra.mxu0 0
        %3227 = vmatprep.subr.bf16.mxu0 0
        %3228 = vmatpush1.bf16.msra.mxu0 0
        %3229 = vmatprep.subr.bf16.mxu0 0
        %3230 = vmatpush1.bf16.msra.mxu0 0
        %3231 = vmatprep.subr.bf16.mxu0 0
        %3232 = vmatpush1.bf16.msra.mxu0 0
        %3233 = vmatprep.subr.bf16.mxu0 0
        %3234 = vmatpush1.bf16.msra.mxu0 0
        %3235 = vmatprep.subr.bf16.mxu0 0
        %3236 = vmatpush1.bf16.msra.mxu0 0
        %3237 = vmatprep.mubr.bf16.mxu0 0
        %3238 = vmatmul.mubr.bf16.gmra.mrb[0].mxu0 %v3041
        %v3239 = vpop.f32.mrb[0].mxu0
        %v3240 = vadd.f32 %v3187, %v3239
        %v3241 = vpop.f32.mrb[0].mxu0
        %v3242 = vadd.f32 %v3189, %v3241
        %v3243 = vpop.f32.mrb[0].mxu0
        %v3244 = vadd.f32 %v3191, %v3243
        %v3245 = vpop.f32.mrb[0].mxu0
        %v3246 = vadd.f32 %v3193, %v3245
        %3247 = vmatprep.mubr.bf16.mxu0 0
        %3248 = vmatmul.mubr.bf16.gmra.mrb[0].mxu0 %v3044
        %v3249 = vpop.f32.mrb[0].mxu0
        %v3250 = vadd.f32 %v3197, %v3249
        %v3251 = vpop.f32.mrb[0].mxu0
        %v3252 = vadd.f32 %v3199, %v3251
        %v3253 = vpop.f32.mrb[0].mxu0
        %v3254 = vadd.f32 %v3201, %v3253
        %v3255 = vpop.f32.mrb[0].mxu0
        %v3256 = vadd.f32 %v3203, %v3255
        %3257 = vdwg.mxu0
        %3258 = vmatprep.subr.bf16.mxu0 %v2846
        %3259 = vmatpush1.bf16.msra.mxu0 %v2845
        %3260 = vmatprep.subr.bf16.mxu0 %v2854
        %3261 = vmatpush1.bf16.msra.mxu0 %v2853
        %3262 = vmatprep.subr.bf16.mxu0 %v2862
        %3263 = vmatpush1.bf16.msra.mxu0 %v2861
        %3264 = vmatprep.subr.bf16.mxu0 %v2870
        %3265 = vmatpush1.bf16.msra.mxu0 %v2869
        %3266 = vmatprep.subr.bf16.mxu0 %v2878
        %3267 = vmatpush1.bf16.msra.mxu0 %v2877
        %3268 = vmatprep.subr.bf16.mxu0 %v2886
        %3269 = vmatpush1.bf16.msra.mxu0 %v2885
        %3270 = vmatprep.subr.bf16.mxu0 %v2894
        %3271 = vmatpush1.bf16.msra.mxu0 %v2893
        %3272 = vmatprep.subr.bf16.mxu0 %v2902
        %3273 = vmatpush1.bf16.msra.mxu0 %v2901
        %3274 = vmatprep.subr.bf16.mxu0 %v2910
        %3275 = vmatpush1.bf16.msra.mxu0 %v2909
        %3276 = vmatprep.subr.bf16.mxu0 %v2918
        %3277 = vmatpush1.bf16.msra.mxu0 %v2917
        %3278 = vmatprep.subr.bf16.mxu0 %v2926
        %3279 = vmatpush1.bf16.msra.mxu0 %v2925
        %3280 = vmatprep.subr.bf16.mxu0 %v2934
        %3281 = vmatpush1.bf16.msra.mxu0 %v2933
        %3282 = vmatprep.subr.bf16.mxu0 %v2942
        %3283 = vmatpush1.bf16.msra.mxu0 %v2941
        %3284 = vmatprep.subr.bf16.mxu0 %v2950
        %3285 = vmatpush1.bf16.msra.mxu0 %v2949
        %3286 = vmatprep.subr.bf16.mxu0 %v2958
        %3287 = vmatpush1.bf16.msra.mxu0 %v2957
        %3288 = vmatprep.subr.bf16.mxu0 %v2966
        %3289 = vmatpush1.bf16.msra.mxu0 %v2965
        %3290 = vmatprep.mubr.bf16.mxu0 %v3030
        %3291 = vmatmul.mubr.bf16.gmra.mrb[0].mxu0 %v3029
        %v3292 = vpop.f32.mrb[0].mxu0
        %v3293 = vadd.f32 %v2992, %v3292
        %v3294 = vpop.f32.mrb[0].mxu0
        %v3295 = vadd.f32 %v2992, %v3294
        %v3296 = vpop.f32.mrb[0].mxu0
        %v3297 = vadd.f32 %v2997, %v3296
        %v3298 = vpop.f32.mrb[0].mxu0
        %v3299 = vadd.f32 %v2997, %v3298
        %3300 = vmatprep.mubr.bf16.mxu0 %v3033
        %3301 = vmatmul.mubr.bf16.gmra.mrb[0].mxu0 %v3032
        %v3302 = vpop.f32.mrb[0].mxu0
        %v3303 = vadd.f32 %v3002, %v3302
        %v3304 = vpop.f32.mrb[0].mxu0
        %v3305 = vadd.f32 %v3002, %v3304
        %v3306 = vpop.f32.mrb[0].mxu0
        %v3307 = vadd.f32 %v3007, %v3306
        %v3308 = vpop.f32.mrb[0].mxu0
        %v3309 = vadd.f32 %v3007, %v3308
        %3310 = vdwg.mxu0
        %3311 = vmatprep.subr.bf16.mxu0 %v2974
        %3312 = vmatpush1.bf16.msra.mxu0 %v2973
        %3313 = vmatprep.subr.bf16.mxu0 %v2982
        %3314 = vmatpush1.bf16.msra.mxu0 %v2981
        %3315 = vmatprep.subr.bf16.mxu0 0
        %3316 = vmatpush1.bf16.msra.mxu0 0
        %3317 = vmatprep.subr.bf16.mxu0 0
        %3318 = vmatpush1.bf16.msra.mxu0 0
        %3319 = vmatprep.subr.bf16.mxu0 0
        %3320 = vmatpush1.bf16.msra.mxu0 0
        %3321 = vmatprep.subr.bf16.mxu0 0
        %3322 = vmatpush1.bf16.msra.mxu0 0
        %3323 = vmatprep.subr.bf16.mxu0 0
        %3324 = vmatpush1.bf16.msra.mxu0 0
        %3325 = vmatprep.subr.bf16.mxu0 0
        %3326 = vmatpush1.bf16.msra.mxu0 0
        %3327 = vmatprep.subr.bf16.mxu0 0
        %3328 = vmatpush1.bf16.msra.mxu0 0
        %3329 = vmatprep.subr.bf16.mxu0 0
        %3330 = vmatpush1.bf16.msra.mxu0 0
        %3331 = vmatprep.subr.bf16.mxu0 0
        %3332 = vmatpush1.bf16.msra.mxu0 0
        %3333 = vmatprep.subr.bf16.mxu0 0
        %3334 = vmatpush1.bf16.msra.mxu0 0
        %3335 = vmatprep.subr.bf16.mxu0 0
        %3336 = vmatpush1.bf16.msra.mxu0 0
        %3337 = vmatprep.subr.bf16.mxu0 0
        %3338 = vmatpush1.bf16.msra.mxu0 0
        %3339 = vmatprep.subr.bf16.mxu0 0
        %3340 = vmatpush1.bf16.msra.mxu0 0
        %3341 = vmatprep.subr.bf16.mxu0 0
        %3342 = vmatpush1.bf16.msra.mxu0 0
        %3343 = vmatprep.mubr.bf16.mxu0 0
        %3344 = vmatmul.mubr.bf16.gmra.mrb[0].mxu0 %v3041
        %v3345 = vpop.f32.mrb[0].mxu0
        %v3346 = vadd.f32 %v3293, %v3345
        %v3347 = vpop.f32.mrb[0].mxu0
        %v3348 = vadd.f32 %v3295, %v3347
        %v3349 = vpop.f32.mrb[0].mxu0
        %v3350 = vadd.f32 %v3297, %v3349
        %v3351 = vpop.f32.mrb[0].mxu0
        %v3352 = vadd.f32 %v3299, %v3351
        %3353 = vmatprep.mubr.bf16.mxu0 0
        %3354 = vmatmul.mubr.bf16.gmra.mrb[0].mxu0 %v3044
        %v3355 = vpop.f32.mrb[0].mxu0
        %v3356 = vadd.f32 %v3303, %v3355
        %v3357 = vpop.f32.mrb[0].mxu0
        %v3358 = vadd.f32 %v3305, %v3357
        %v3359 = vpop.f32.mrb[0].mxu0
        %v3360 = vadd.f32 %v3307, %v3359
        %v3361 = vpop.f32.mrb[0].mxu0
        %v3362 = vadd.f32 %v3309, %v3361
        %3363 = vdwg.mxu0
        %3364 = vmatprep.subr.bf16.mxu0 %v2848
        %3365 = vmatpush1.bf16.msra.mxu0 %v2847
        %3366 = vmatprep.subr.bf16.mxu0 %v2856
        %3367 = vmatpush1.bf16.msra.mxu0 %v2855
        %3368 = vmatprep.subr.bf16.mxu0 %v2864
        %3369 = vmatpush1.bf16.msra.mxu0 %v2863
        %3370 = vmatprep.subr.bf16.mxu0 %v2872
        %3371 = vmatpush1.bf16.msra.mxu0 %v2871
        %3372 = vmatprep.subr.bf16.mxu0 %v2880
        %3373 = vmatpush1.bf16.msra.mxu0 %v2879
        %3374 = vmatprep.subr.bf16.mxu0 %v2888
        %3375 = vmatpush1.bf16.msra.mxu0 %v2887
        %3376 = vmatprep.subr.bf16.mxu0 %v2896
        %3377 = vmatpush1.bf16.msra.mxu0 %v2895
        %3378 = vmatprep.subr.bf16.mxu0 %v2904
        %3379 = vmatpush1.bf16.msra.mxu0 %v2903
        %3380 = vmatprep.subr.bf16.mxu0 %v2912
        %3381 = vmatpush1.bf16.msra.mxu0 %v2911
        %3382 = vmatprep.subr.bf16.mxu0 %v2920
        %3383 = vmatpush1.bf16.msra.mxu0 %v2919
        %3384 = vmatprep.subr.bf16.mxu0 %v2928
        %3385 = vmatpush1.bf16.msra.mxu0 %v2927
        %3386 = vmatprep.subr.bf16.mxu0 %v2936
        %3387 = vmatpush1.bf16.msra.mxu0 %v2935
        %3388 = vmatprep.subr.bf16.mxu0 %v2944
        %3389 = vmatpush1.bf16.msra.mxu0 %v2943
        %3390 = vmatprep.subr.bf16.mxu0 %v2952
        %3391 = vmatpush1.bf16.msra.mxu0 %v2951
        %3392 = vmatprep.subr.bf16.mxu0 %v2960
        %3393 = vmatpush1.bf16.msra.mxu0 %v2959
        %3394 = vmatprep.subr.bf16.mxu0 %v2968
        %3395 = vmatpush1.bf16.msra.mxu0 %v2967
        %3396 = vmatprep.mubr.bf16.mxu0 %v3030
        %3397 = vmatmul.mubr.bf16.gmra.mrb[0].mxu0 %v3029
        %v3398 = vpop.f32.mrb[0].mxu0
        %v3399 = vadd.f32 %v2992, %v3398
        %v3400 = vpop.f32.mrb[0].mxu0
        %v3401 = vadd.f32 %v2992, %v3400
        %v3402 = vpop.f32.mrb[0].mxu0
        %v3403 = vadd.f32 %v2997, %v3402
        %v3404 = vpop.f32.mrb[0].mxu0
        %v3405 = vadd.f32 %v2997, %v3404
        %3406 = vmatprep.mubr.bf16.mxu0 %v3033
        %3407 = vmatmul.mubr.bf16.gmra.mrb[0].mxu0 %v3032
        %v3408 = vpop.f32.mrb[0].mxu0
        %v3409 = vadd.f32 %v3002, %v3408
        %v3410 = vpop.f32.mrb[0].mxu0
        %v3411 = vadd.f32 %v3002, %v3410
        %v3412 = vpop.f32.mrb[0].mxu0
        %v3413 = vadd.f32 %v3007, %v3412
        %v3414 = vpop.f32.mrb[0].mxu0
        %v3415 = vadd.f32 %v3007, %v3414
        %3416 = vdwg.mxu0
        %3417 = vmatprep.subr.bf16.mxu0 %v2976
        %3418 = vmatpush1.bf16.msra.mxu0 %v2975
        %3419 = vmatprep.subr.bf16.mxu0 %v2984
        %3420 = vmatpush1.bf16.msra.mxu0 %v2983
        %3421 = vmatprep.subr.bf16.mxu0 0
        %3422 = vmatpush1.bf16.msra.mxu0 0
        %3423 = vmatprep.subr.bf16.mxu0 0
        %3424 = vmatpush1.bf16.msra.mxu0 0
        %3425 = vmatprep.subr.bf16.mxu0 0
        %3426 = vmatpush1.bf16.msra.mxu0 0
        %3427 = vmatprep.subr.bf16.mxu0 0
        %3428 = vmatpush1.bf16.msra.mxu0 0
        %3429 = vmatprep.subr.bf16.mxu0 0
        %3430 = vmatpush1.bf16.msra.mxu0 0
        %3431 = vmatprep.subr.bf16.mxu0 0
        %3432 = vmatpush1.bf16.msra.mxu0 0
        %3433 = vmatprep.subr.bf16.mxu0 0
        %3434 = vmatpush1.bf16.msra.mxu0 0
        %3435 = vmatprep.subr.bf16.mxu0 0
        %3436 = vmatpush1.bf16.msra.mxu0 0
        %3437 = vmatprep.subr.bf16.mxu0 0
        %3438 = vmatpush1.bf16.msra.mxu0 0
        %3439 = vmatprep.subr.bf16.mxu0 0
        %3440 = vmatpush1.bf16.msra.mxu0 0
        %3441 = vmatprep.subr.bf16.mxu0 0
        %3442 = vmatpush1.bf16.msra.mxu0 0
        %3443 = vmatprep.subr.bf16.mxu0 0
        %3444 = vmatpush1.bf16.msra.mxu0 0
        %3445 = vmatprep.subr.bf16.mxu0 0
        %3446 = vmatpush1.bf16.msra.mxu0 0
        %3447 = vmatprep.subr.bf16.mxu0 0
        %3448 = vmatpush1.bf16.msra.mxu0 0
        %3449 = vmatprep.mubr.bf16.mxu0 0
        %3450 = vmatmul.mubr.bf16.gmra.mrb[0].mxu0 %v3041
        %v3451 = vpop.f32.mrb[0].mxu0
        %v3452 = vadd.f32 %v3399, %v3451
        %v3453 = vpop.f32.mrb[0].mxu0
        %v3454 = vadd.f32 %v3401, %v3453
        %v3455 = vpop.f32.mrb[0].mxu0
        %v3456 = vadd.f32 %v3403, %v3455
        %v3457 = vpop.f32.mrb[0].mxu0
        %v3458 = vadd.f32 %v3405, %v3457
        %3459 = vmatprep.mubr.bf16.mxu0 0
        %3460 = vmatmul.mubr.bf16.gmra.mrb[0].mxu0 %v3044
        %v3461 = vpop.f32.mrb[0].mxu0
        %v3462 = vadd.f32 %v3409, %v3461
        %v3463 = vpop.f32.mrb[0].mxu0
        %v3464 = vadd.f32 %v3411, %v3463
        %v3465 = vpop.f32.mrb[0].mxu0
        %v3466 = vadd.f32 %v3413, %v3465
        %v3467 = vpop.f32.mrb[0].mxu0
        %v3468 = vadd.f32 %v3415, %v3467
        %3469 = vdwg.mxu0
        %3470 = vst [vmem:[%s257] sm:$0xff] %v3134
        %3471 = vst [vmem:[%s257 + $0x8] sm:$0xff] %v3136
        %3472 = vst [vmem:[%s257 + $0x10] sm:$0xff] %v3240
        %3473 = vst [vmem:[%s257 + $0x18] sm:$0xff] %v3242
        %3474 = vst [vmem:[%s257 + $0x20] sm:$0xff] %v3346
        %3475 = vst [vmem:[%s257 + $0x28] sm:$0xff] %v3348
        %3476 = vst [vmem:[%s257 + $0x30] sm:$0xff] %v3452
        %3477 = vst [vmem:[%s257 + $0x38] sm:$0xff] %v3454
        %3478 = vst [vmem:[%s257 + $0x40] sm:$0xff] %v3138
        %3479 = vst [vmem:[%s257 + $0x48] sm:$0xff] %v3140
        %3480 = vst [vmem:[%s257 + $0x50] sm:$0xff] %v3244
        %3481 = vst [vmem:[%s257 + $0x58] sm:$0xff] %v3246
        %3482 = vst [vmem:[%s257 + $0x60] sm:$0xff] %v3350
        %3483 = vst [vmem:[%s257 + $0x68] sm:$0xff] %v3352
        %3484 = vst [vmem:[%s257 + $0x70] sm:$0xff] %v3456
        %3485 = vst [vmem:[%s257 + $0x78] sm:$0xff] %v3458
        %3486 = vst [vmem:[%s257 + $0x80] sm:$0xff] %v3144
        %3487 = vst [vmem:[%s257 + $0x88] sm:$0xff] %v3146
        %3488 = vst [vmem:[%s257 + $0x90] sm:$0xff] %v3250
        %3489 = vst [vmem:[%s257 + $0x98] sm:$0xff] %v3252
        %3490 = vst [vmem:[%s257 + $0xa0] sm:$0xff] %v3356
        %3491 = vst [vmem:[%s257 + $0xa8] sm:$0xff] %v3358
        %3492 = vst [vmem:[%s257 + $0xb0] sm:$0xff] %v3462
        %3493 = vst [vmem:[%s257 + $0xb8] sm:$0xff] %v3464
        %3494 = vst [vmem:[%s257 + $0xc0] sm:$0xff] %v3148
        %3495 = vst [vmem:[%s257 + $0xc8] sm:$0xff] %v3150
        %3496 = vst [vmem:[%s257 + $0xd0] sm:$0xff] %v3254
        %3497 = vst [vmem:[%s257 + $0xd8] sm:$0xff] %v3256
        %3498 = vst [vmem:[%s257 + $0xe0] sm:$0xff] %v3360
        %3499 = vst [vmem:[%s257 + $0xe8] sm:$0xff] %v3362
        %3500 = vst [vmem:[%s257 + $0xf0] sm:$0xff] %v3466
        %3501 = vst [vmem:[%s257 + $0xf8] sm:$0xff] %v3468
        %s3502 = sand.u32 %s141, 1
        %s3503 = scalar_lea.sflag [#allocation6], %s3502
        %s3504 = sand.u32 %s141, 1
        %s3505 = smul.addr %s3504, 256
        %s3506 = scalar_lea.vmem [#allocation9], %s3505
        // Predicated region
        $region49: #{tpu_custom_call.1} parent=39 // pred_check
          %p3507 = pneg %p151
        $region50: #{tpu_custom_call.1} parent=39 // pred_check_branch
          %3509 = sbr.rel (%p3507) target = $region52
        $region51: #{tpu_custom_call.1} parent=39 // pred_region
          %s3511 = ssub.s32 4096, 4096
          %3512 = vsyncadd %s3503, %s3511
          %s3513 = smul.addr %s23, 32
          %s3514 = smul.addr %s3513, 128
          %s3515 = scalar_lea.hbm %s5, %s3514
          %s3516 = sshll.u32 %s3506, 4
          %s3517 = int_to_ptr.vmem [resolvable:$true] %s3516
          %3522 = dma.vmem_to_hbm [thread:$0]  %s3517, 4096, %s3515, %s3503, 1024, 1024, 64
        $region52: #{tpu_custom_call.1} parent=39 // pred_fallthru
          _
      $region40: #{tpu_custom_call.1} parent=5 // pred_fallthru
        _
      %p3523 = scmp.le.s32.totalorder 2, %s18
      // Predicated region
      $region53: #{tpu_custom_call.1} parent=5 // pred_check
        %p3524 = pneg %p3523
      $region54: #{tpu_custom_call.1} parent=5 // pred_check_branch
        %3526 = sbr.rel (%p3524) target = $region56
      $region55: #{tpu_custom_call.1} parent=5 // pred_region
        %s3527 = ssub.s32 %s18, 2
        // Predicated region
        $region57: #{tpu_custom_call.1} parent=55 // pred_check
          %p3528 = pneg %p157
        $region58: #{tpu_custom_call.1} parent=55 // pred_check_branch
          %3530 = sbr.rel (%p3528) target = $region60
        $region59: #{tpu_custom_call.1} parent=55 // pred_region
          %s3531 = sand.u32 %s142, 1
          %s3532 = scalar_lea.sflag [#allocation6], %s3531
          %s3533 = sand.u32 %s142, 1
          %s3534 = smul.addr %s3533, 256
          %s3535 = scalar_lea.vmem [#allocation9], %s3534
          %3536 = dma.done %s3532, 4096
        $region60: #{tpu_custom_call.1} parent=55 // pred_fallthru
          _
      $region56: #{tpu_custom_call.1} parent=5 // pred_fallthru
        _
    $region6: #{tpu_custom_call.1} parent=1 // loop_footer
      %s22 = sadd.s32 1, %s18
    $region7: #{tpu_custom_call.1} parent=1 // loop_footer_branch
      %17 = sbr.rel target = $region3
    $region8: #{tpu_custom_call.1} parent=1 // loop_exit
      _
    %3537 = vsyncpa [#allocation5], 1
    %s3538 = scalar_lea.sflag [#allocation5], 1
    %3539 = vsyncpa %s3538, 1
    %3540 = vsyncpa [#allocation8], 1
    %3541 = vsyncpa [#allocation6], 1
    %s3542 = scalar_lea.sflag [#allocation6], 1
    %3543 = vsyncpa %s3542, 1

</llo_original>
